<compile_context>
chip_gen: v7x
topology: tpu7x:2x2x1
jax: 0.10.0
libtpu: 0.0.40
codegen_flags: <defaults>
</compile_context>

<pallas_src>
import jax
import jax.numpy as jnp
from jax.experimental import pallas as pl
from jax.experimental.pallas import tpu as pltpu

IN_CHANNELS = 3
CONV_CHANNELS = [64, 64, 128]
MLP_DIMS = [512, 256, 128]
HEAD_CHANNELS = [256, 128]
OUT_FEATURES = 128
TILE_N = 2048  # points per grid step (cap; tiles are balanced & shrink for small N)


def _round_up(x, m):
    return ((x + m - 1) // m) * m


def _cdiv(a, b):
    return -(-a // b)


def _full_spec(shape):
    # whole-array block, constant index map (1-D grid) -> resident in VMEM
    return pl.BlockSpec(shape, lambda i: (0,) * len(shape))


def _resident_spec(shape):
    # constant across the grid -> single-buffered (no wasted double-buffer VMEM)
    return pl.BlockSpec(shape, lambda i: (0,) * len(shape), pipeline_mode=pl.Buffered(1))


# ----------------------------------------------------------------------------
# Shared conv stack: 3 -> 64 -> 64 -> 128, ReLU each, on a (tile, 3) slab.
# K=3 first layer as 3 VPU broadcast-FMAs (f32); the 64->64 / 64->128 matmuls
# use bf16 operands on the MXU with f32 accumulation.
# ----------------------------------------------------------------------------
def _conv_block(x, w1, b1, w2, b2, w3, b3):
    w1v = w1[...]  # (3, 64) f32
    h = b1[...]
    for k in range(IN_CHANNELS):
        h = h + x[:, k : k + 1] * w1v[k : k + 1, :]
    h = jnp.maximum(h, 0.0)                                   # (tile, 64) f32
    h = jnp.maximum(
        jnp.dot(h.astype(jnp.bfloat16), w2[...], preferred_element_type=jnp.float32)
        + b2[...], 0.0)                                       # (tile, 64) f32
    h = jnp.maximum(
        jnp.dot(h.astype(jnp.bfloat16), w3[...], preferred_element_type=jnp.float32)
        + b3[...], 0.0)                                       # (tile, 128) f32
    return h


# ----------------------------------------------------------------------------
# Kernel 1: conv stack + per-tile channel maxes (parallel grid, no accumulator).
# ----------------------------------------------------------------------------
def _conv_max_kernel(x_ref, w1, b1, w2, b2, w3, b3, pmax_ref):
    h = _conv_block(x_ref[...], w1, b1, w2, b2, w3, b3)       # (tile, 128)
    m = jnp.max(h, axis=0, keepdims=True)                     # (1, 128)
    pmax_ref[...] = jnp.broadcast_to(m, pmax_ref.shape)       # (8, 128) slab per tile


# ----------------------------------------------------------------------------
# Kernel G: global max -> global MLP -> hoisted global half of head layer 1.
# Single grid step; tiny (a few hundred Kflop) but keeps the whole dependency
# chain between the two big kernels inside one dispatch.
# ----------------------------------------------------------------------------
def _global_kernel(pmax_ref, mw1, mb1, mw2, mb2, mw3, mb3, wh1g, bh1, gpart_ref):
    g = jnp.max(pmax_ref[...], axis=0, keepdims=True)         # (1, 128)
    g = jnp.broadcast_to(g, (8, g.shape[1]))                  # (8, 128), MXU-friendly M
    g = jnp.maximum(jnp.dot(g, mw1[...], preferred_element_type=jnp.float32) + mb1[...], 0.0)
    g = jnp.maximum(jnp.dot(g, mw2[...], preferred_element_type=jnp.float32) + mb2[...], 0.0)
    g = jnp.maximum(jnp.dot(g, mw3[...], preferred_element_type=jnp.float32) + mb3[...], 0.0)
    # relu([g, pf] @ Wh1 + bh1) == relu(pf @ Wh1[128:] + (g @ Wh1[:128] + bh1))
    gpart_ref[...] = jnp.dot(g, wh1g[...], preferred_element_type=jnp.float32) + bh1[...]


# ----------------------------------------------------------------------------
# Kernel 2: recompute conv stack, add hoisted global row, head convs, final conv.
# ----------------------------------------------------------------------------
def _head_kernel(x_ref, w1, b1, w2, b2, w3, b3,
                 gpart, wh1p, wh2, bh2, wf, bf, out_ref):
    pf = _conv_block(x_ref[...], w1, b1, w2, b2, w3, b3)      # (tile, 128) f32
    gp = gpart[0:1, :]                                        # (1, 256) f32 (rows identical)
    h = jnp.maximum(
        jnp.dot(pf.astype(jnp.bfloat16), wh1p[...], preferred_element_type=jnp.float32)
        + gp, 0.0)                                            # (tile, 256)
    h = jnp.maximum(
        jnp.dot(h.astype(jnp.bfloat16), wh2[...], preferred_element_type=jnp.float32)
        + bh2[...], 0.0)                                      # (tile, 128)
    # TODO(synk): Dropout(p=0.3) is identity in eval mode; training-mode dropout not implemented.
    out_ref[...] = (
        jnp.dot(h.astype(jnp.bfloat16), wf[...], preferred_element_type=jnp.float32)
        + bf[...])                                            # (tile, 128) f32


# ----------------------------------------------------------------------------
# Wrapper
# ----------------------------------------------------------------------------
@jax.jit
def pointnet_feature_extractor(vertices, conv_p, mlp_p, head_p):
    """vertices: (N, 3) float32 -> (1, N, OUT_FEATURES)."""
    n = vertices.shape[0]
    n8 = _round_up(max(n, 1), 8)
    # Balanced tiles, capped at TILE_N, with a >=2-tile floor so the "parallel"
    # grid axis can shard across v7x's two TensorCores (no cost on v5e/v6e).
    num_tiles = max(2, _cdiv(n8, TILE_N))
    tile_n = _round_up(_cdiv(n8, num_tiles), 8)
    n_pad = num_tiles * tile_n

    x = vertices.astype(jnp.float32)
    if n_pad != n:
        # Replicate the last vertex: duplicates don't change the global max,
        # and padded rows are sliced off the final output.
        x = jnp.pad(x, ((0, n_pad - n), (0, 0)), mode="edge")

    grid = (num_tiles,)
    gridded_params = pltpu.CompilerParams(
        dimension_semantics=("parallel",),
        vmem_limit_bytes=32 * 1024 * 1024,
    )

    # Weight prep (depends only on params; off the data critical path).
    w1, b1, w2, b2, w3, b3 = conv_p
    conv_k = (w1, b1, w2.astype(jnp.bfloat16), b2, w3.astype(jnp.bfloat16), b3)
    wh1, bh1, wh2, bh2, wf, bf_ = head_p
    wh1_g = wh1[: MLP_DIMS[-1], :]                            # (128, 256) f32, global half
    wh1_p = wh1[MLP_DIMS[-1]:, :].astype(jnp.bfloat16)        # (128, 256) bf16, point half
    head_k = (wh1_p, wh2.astype(jnp.bfloat16), bh2, wf.astype(jnp.bfloat16), bf_)

    # --- Kernel 1: conv stack + per-tile partial channel maxes ---
    pmax = pl.pallas_call(
        _conv_max_kernel,
        out_shape=jax.ShapeDtypeStruct((num_tiles * 8, CONV_CHANNELS[-1]), jnp.float32),
        grid=grid,
        in_specs=[pl.BlockSpec((tile_n, IN_CHANNELS), lambda i: (i, 0))]
        + [_resident_spec(p.shape) for p in conv_k],
        out_specs=pl.BlockSpec((8, CONV_CHANNELS[-1]), lambda i: (i, 0)),
        compiler_params=gridded_params,
    )(x, *conv_k)

    # --- Kernel G: global max + global MLP + hoisted half of head layer 1 ---
    g_part = pl.pallas_call(
        _global_kernel,
        out_shape=jax.ShapeDtypeStruct((8, HEAD_CHANNELS[0]), jnp.float32),
        grid=(1,),
        in_specs=[_full_spec(pmax.shape)]
        + [_full_spec(p.shape) for p in mlp_p]
        + [_full_spec(wh1_g.shape), _full_spec(bh1.shape)],
        out_specs=pl.BlockSpec((8, HEAD_CHANNELS[0]), lambda i: (0, 0)),
        compiler_params=pltpu.CompilerParams(dimension_semantics=("arbitrary",)),
    )(pmax, *mlp_p, wh1_g, bh1)

    # --- Kernel 2: head (recomputes conv stack; no pf HBM round trip) ---
    out = pl.pallas_call(
        _head_kernel,
        out_shape=jax.ShapeDtypeStruct((n_pad, OUT_FEATURES), jnp.float32),
        grid=grid,
        in_specs=[pl.BlockSpec((tile_n, IN_CHANNELS), lambda i: (i, 0))]
        + [_resident_spec(p.shape) for p in conv_k]
        + [_resident_spec(g_part.shape)]
        + [_resident_spec(p.shape) for p in head_k],
        out_specs=pl.BlockSpec((tile_n, OUT_FEATURES), lambda i: (i, 0)),
        compiler_params=gridded_params,
    )(x, *conv_k, g_part, *head_k)

    return out[:n][None]  # (1, N, OUT_FEATURES)


# ----------------------------------------------------------------------------
# Deterministic parameter init (PyTorch-style uniform(-1/sqrt(fan_in), ...)).
# Weights are stored pre-transposed as (C_in, C_out) so kernels do x @ W + b.
# ----------------------------------------------------------------------------
def init_params(key):
    def linear(k, fan_in, fan_out):
        kw, kb = jax.random.split(k)
        bound = 1.0 / float(fan_in) ** 0.5
        w = jax.random.uniform(kw, (fan_in, fan_out), jnp.float32, -bound, bound)
        b = jax.random.uniform(kb, (1, fan_out), jnp.float32, -bound, bound)
        return w, b

    keys = jax.random.split(key, 9)
    conv_p, mlp_p, head_p = [], [], []

    dims = [IN_CHANNELS] + CONV_CHANNELS
    for i in range(len(CONV_CHANNELS)):
        conv_p.extend(linear(keys[i], dims[i], dims[i + 1]))

    mdims = [CONV_CHANNELS[-1]] + MLP_DIMS
    for i in range(len(MLP_DIMS)):
        mlp_p.extend(linear(keys[3 + i], mdims[i], mdims[i + 1]))

    hdims = [MLP_DIMS[-1] + CONV_CHANNELS[-1]] + HEAD_CHANNELS
    for i in range(len(HEAD_CHANNELS)):
        head_p.extend(linear(keys[6 + i], hdims[i], hdims[i + 1]))
    head_p.extend(linear(keys[8], HEAD_CHANNELS[-1], OUT_FEATURES))

    return tuple(conv_p), tuple(mlp_p), tuple(head_p)


# ----------------------------------------------------------------------------
# Pure-JAX reference (same math, f32 throughout, no Pallas) for a sanity check.
# ----------------------------------------------------------------------------
def reference_forward(vertices, conv_p, mlp_p, head_p):
    h = vertices.astype(jnp.float32)
    for i in range(0, len(conv_p), 2):
        h = jnp.maximum(h @ conv_p[i] + conv_p[i + 1], 0.0)
    pf = h
    g = jnp.max(h, axis=0, keepdims=True)
    for i in range(0, len(mlp_p), 2):
        g = jnp.maximum(g @ mlp_p[i] + mlp_p[i + 1], 0.0)
    x = jnp.concatenate([jnp.broadcast_to(g, (pf.shape[0], g.shape[1])), pf], axis=1)
    for i in range(0, len(head_p) - 2, 2):
        x = jnp.maximum(x @ head_p[i] + head_p[i + 1], 0.0)
    x = x @ head_p[-2] + head_p[-1]
    return x[None]


if __name__ == "__main__":
    key = jax.random.PRNGKey(0)
    k_params, k_verts = jax.random.split(key)

    n_vertices = 256
    vertices = jax.random.normal(k_verts, (n_vertices, IN_CHANNELS), jnp.float32)

    conv_p, mlp_p, head_p = init_params(k_params)

    out = pointnet_feature_extractor(vertices, conv_p, mlp_p, head_p)
    out = jax.block_until_ready(out)

    assert out.shape == (1, n_vertices, OUT_FEATURES), out.shape
    assert out.dtype == jnp.float32
    assert bool(jnp.all(jnp.isfinite(out)))

    ref = reference_forward(vertices, conv_p, mlp_p, head_p)
    max_err = float(jnp.max(jnp.abs(out - ref)))
    assert max_err < 5e-2, f"max abs error {max_err}"

    print("KERNEL_OK")
</pallas_src>

<mosaic_0001>
module attributes {stable_mosaic.version = 11 : i64} {
  func.func @_conv_max_kernel(%arg0: i32, %arg1: memref<128x3xf32, #tpu.memory_space<vmem>>, %arg2: memref<3x64xf32, #tpu.memory_space<vmem>>, %arg3: memref<1x64xf32, #tpu.memory_space<vmem>>, %arg4: memref<64x64xbf16, #tpu.memory_space<vmem>>, %arg5: memref<1x64xf32, #tpu.memory_space<vmem>>, %arg6: memref<64x128xbf16, #tpu.memory_space<vmem>>, %arg7: memref<1x128xf32, #tpu.memory_space<vmem>>, %arg8: memref<8x128xf32, #tpu.memory_space<vmem>>) attributes {dimension_semantics = [#tpu.dimension_semantics<parallel>], iteration_bounds = array<i64: 2>, scalar_prefetch = 0 : i64, scratch_operands = 0 : i64, tpu.core_type = #tpu.core_type<tc>, window_params = [{transform_indices = @transform_0, window_bounds = array<i64: 128, 3>}, {pipeline_mode = #tpu.pipeline_mode<synchronous>, transform_indices = @transform_1, window_bounds = array<i64: 3, 64>}, {pipeline_mode = #tpu.pipeline_mode<synchronous>, transform_indices = @transform_2, window_bounds = array<i64: 1, 64>}, {pipeline_mode = #tpu.pipeline_mode<synchronous>, transform_indices = @transform_3, window_bounds = array<i64: 64, 64>}, {pipeline_mode = #tpu.pipeline_mode<synchronous>, transform_indices = @transform_4, window_bounds = array<i64: 1, 64>}, {pipeline_mode = #tpu.pipeline_mode<synchronous>, transform_indices = @transform_5, window_bounds = array<i64: 64, 128>}, {pipeline_mode = #tpu.pipeline_mode<synchronous>, transform_indices = @transform_6, window_bounds = array<i64: 1, 128>}, {transform_indices = @transform_7, window_bounds = array<i64: 8, 128>}]} {
    %c0 = arith.constant 0 : index
    %c0_0 = arith.constant 0 : index
    %0 = vector.load %arg1[%c0, %c0_0] : memref<128x3xf32, #tpu.memory_space<vmem>>, vector<128x3xf32>
    %c0_1 = arith.constant 0 : index
    %c0_2 = arith.constant 0 : index
    %1 = vector.load %arg2[%c0_1, %c0_2] : memref<3x64xf32, #tpu.memory_space<vmem>>, vector<3x64xf32>
    %c0_3 = arith.constant 0 : index
    %c0_4 = arith.constant 0 : index
    %2 = vector.load %arg3[%c0_3, %c0_4] : memref<1x64xf32, #tpu.memory_space<vmem>>, vector<1x64xf32>
    %3 = vector.extract_strided_slice %0 {offsets = [0, 0], sizes = [128, 1], strides = [1, 1]} : vector<128x3xf32> to vector<128x1xf32>
    %4 = vector.extract_strided_slice %1 {offsets = [0, 0], sizes = [1, 64], strides = [1, 1]} : vector<3x64xf32> to vector<1x64xf32>
    %5 = vector.broadcast %3 : vector<128x1xf32> to vector<128x64xf32>
    %6 = vector.broadcast %4 : vector<1x64xf32> to vector<128x64xf32>
    %7 = arith.mulf %5, %6 : vector<128x64xf32>
    %8 = vector.broadcast %2 : vector<1x64xf32> to vector<128x64xf32>
    %9 = arith.addf %8, %7 : vector<128x64xf32>
    %10 = vector.extract_strided_slice %0 {offsets = [0, 1], sizes = [128, 1], strides = [1, 1]} : vector<128x3xf32> to vector<128x1xf32>
    %11 = vector.extract_strided_slice %1 {offsets = [1, 0], sizes = [1, 64], strides = [1, 1]} : vector<3x64xf32> to vector<1x64xf32>
    %12 = vector.broadcast %10 : vector<128x1xf32> to vector<128x64xf32>
    %13 = vector.broadcast %11 : vector<1x64xf32> to vector<128x64xf32>
    %14 = arith.mulf %12, %13 : vector<128x64xf32>
    %15 = arith.addf %9, %14 : vector<128x64xf32>
    %16 = vector.extract_strided_slice %0 {offsets = [0, 2], sizes = [128, 1], strides = [1, 1]} : vector<128x3xf32> to vector<128x1xf32>
    %17 = vector.extract_strided_slice %1 {offsets = [2, 0], sizes = [1, 64], strides = [1, 1]} : vector<3x64xf32> to vector<1x64xf32>
    %18 = vector.broadcast %16 : vector<128x1xf32> to vector<128x64xf32>
    %19 = vector.broadcast %17 : vector<1x64xf32> to vector<128x64xf32>
    %20 = arith.mulf %18, %19 : vector<128x64xf32>
    %21 = arith.addf %15, %20 : vector<128x64xf32>
    %cst = arith.constant 0.000000e+00 : f32
    %22 = vector.broadcast %cst : f32 to vector<128x64xf32>
    %23 = arith.maximumf %21, %22 : vector<128x64xf32>
    %24 = arith.truncf %23 : vector<128x64xf32> to vector<128x64xbf16>
    %c0_5 = arith.constant 0 : index
    %c0_6 = arith.constant 0 : index
    %25 = vector.load %arg4[%c0_5, %c0_6] : memref<64x64xbf16, #tpu.memory_space<vmem>>, vector<64x64xbf16>
    %cst_7 = arith.constant dense<0.000000e+00> : vector<128x64xf32>
    %26 = tpu.matmul %24, %25, %cst_7 {dimension_numbers = #tpu.dot_dimension_numbers<[1], [0], [0], [1], [0, 0, 1, 1], [], []>} : vector<128x64xbf16>, vector<64x64xbf16>, vector<128x64xf32> -> vector<128x64xf32>
    %c0_8 = arith.constant 0 : index
    %c0_9 = arith.constant 0 : index
    %27 = vector.load %arg5[%c0_8, %c0_9] : memref<1x64xf32, #tpu.memory_space<vmem>>, vector<1x64xf32>
    %28 = vector.broadcast %27 : vector<1x64xf32> to vector<128x64xf32>
    %29 = arith.addf %26, %28 : vector<128x64xf32>
    %cst_10 = arith.constant 0.000000e+00 : f32
    %30 = vector.broadcast %cst_10 : f32 to vector<128x64xf32>
    %31 = arith.maximumf %29, %30 : vector<128x64xf32>
    %32 = arith.truncf %31 : vector<128x64xf32> to vector<128x64xbf16>
    %c0_11 = arith.constant 0 : index
    %c0_12 = arith.constant 0 : index
    %33 = vector.load %arg6[%c0_11, %c0_12] : memref<64x128xbf16, #tpu.memory_space<vmem>>, vector<64x128xbf16>
    %cst_13 = arith.constant dense<0.000000e+00> : vector<128x128xf32>
    %34 = tpu.matmul %32, %33, %cst_13 {dimension_numbers = #tpu.dot_dimension_numbers<[1], [0], [0], [1], [0, 0, 1, 1], [], []>} : vector<128x64xbf16>, vector<64x128xbf16>, vector<128x128xf32> -> vector<128x128xf32>
    %c0_14 = arith.constant 0 : index
    %c0_15 = arith.constant 0 : index
    %35 = vector.load %arg7[%c0_14, %c0_15] : memref<1x128xf32, #tpu.memory_space<vmem>>, vector<1x128xf32>
    %36 = vector.broadcast %35 : vector<1x128xf32> to vector<128x128xf32>
    %37 = arith.addf %34, %36 : vector<128x128xf32>
    %cst_16 = arith.constant 0.000000e+00 : f32
    %38 = vector.broadcast %cst_16 : f32 to vector<128x128xf32>
    %39 = arith.maximumf %37, %38 : vector<128x128xf32>
    %cst_17 = arith.constant dense<0xFF800000> : vector<128xf32>
    %40 = vector.multi_reduction <maximumf>, %39, %cst_17 [0] : vector<128x128xf32> to vector<128xf32>
    %41 = vector.shape_cast %40 : vector<128xf32> to vector<1x128xf32>
    %42 = vector.shape_cast %41 : vector<1x128xf32> to vector<1x128xf32>
    %43 = vector.broadcast %42 : vector<1x128xf32> to vector<8x128xf32>
    %c0_18 = arith.constant 0 : index
    %c0_19 = arith.constant 0 : index
    %44 = vector.load %arg8[%c0_18, %c0_19] : memref<8x128xf32, #tpu.memory_space<vmem>>, vector<8x128xf32>
    tpu.vector_store %arg8[%c0_18, %c0_19], %43 {strides = array<i32>} : memref<8x128xf32, #tpu.memory_space<vmem>>, vector<8x128xf32>,
    return
  }
  func.func @transform_0(%arg0: i32) -> (i32, i32) {
    %c0_i32 = arith.constant 0 : i32
    %c0_i32_0 = arith.constant 0 : i32
    return %arg0, %c0_i32 : i32, i32
  }
  func.func @transform_1(%arg0: i32) -> (i32, i32) {
    %c0_i32 = arith.constant 0 : i32
    %c0_i32_0 = arith.constant 0 : i32
    %c0_i32_1 = arith.constant 0 : i32
    return %c0_i32, %c0_i32_0 : i32, i32
  }
  func.func @transform_2(%arg0: i32) -> (i32, i32) {
    %c0_i32 = arith.constant 0 : i32
    %c0_i32_0 = arith.constant 0 : i32
    %c0_i32_1 = arith.constant 0 : i32
    return %c0_i32, %c0_i32_0 : i32, i32
  }
  func.func @transform_3(%arg0: i32) -> (i32, i32) {
    %c0_i32 = arith.constant 0 : i32
    %c0_i32_0 = arith.constant 0 : i32
    %c0_i32_1 = arith.constant 0 : i32
    return %c0_i32, %c0_i32_0 : i32, i32
  }
  func.func @transform_4(%arg0: i32) -> (i32, i32) {
    %c0_i32 = arith.constant 0 : i32
    %c0_i32_0 = arith.constant 0 : i32
    %c0_i32_1 = arith.constant 0 : i32
    return %c0_i32, %c0_i32_0 : i32, i32
  }
  func.func @transform_5(%arg0: i32) -> (i32, i32) {
    %c0_i32 = arith.constant 0 : i32
    %c0_i32_0 = arith.constant 0 : i32
    %c0_i32_1 = arith.constant 0 : i32
    return %c0_i32, %c0_i32_0 : i32, i32
  }
  func.func @transform_6(%arg0: i32) -> (i32, i32) {
    %c0_i32 = arith.constant 0 : i32
    %c0_i32_0 = arith.constant 0 : i32
    %c0_i32_1 = arith.constant 0 : i32
    return %c0_i32, %c0_i32_0 : i32, i32
  }
  func.func @transform_7(%arg0: i32) -> (i32, i32) {
    %c0_i32 = arith.constant 0 : i32
    %c0_i32_0 = arith.constant 0 : i32
    return %arg0, %c0_i32 : i32, i32
  }
}

module attributes {stable_mosaic.version = 11 : i64} {
  func.func @_global_kernel(%arg0: i32, %arg1: memref<16x128xf32, #tpu.memory_space<vmem>>, %arg2: memref<128x512xf32, #tpu.memory_space<vmem>>, %arg3: memref<1x512xf32, #tpu.memory_space<vmem>>, %arg4: memref<512x256xf32, #tpu.memory_space<vmem>>, %arg5: memref<1x256xf32, #tpu.memory_space<vmem>>, %arg6: memref<256x128xf32, #tpu.memory_space<vmem>>, %arg7: memref<1x128xf32, #tpu.memory_space<vmem>>, %arg8: memref<128x256xf32, #tpu.memory_space<vmem>>, %arg9: memref<1x256xf32, #tpu.memory_space<vmem>>, %arg10: memref<8x256xf32, #tpu.memory_space<vmem>>) attributes {dimension_semantics = [#tpu.dimension_semantics<arbitrary>], iteration_bounds = array<i64: 1>, scalar_prefetch = 0 : i64, scratch_operands = 0 : i64, tpu.core_type = #tpu.core_type<tc>, window_params = [{pipeline_mode = #tpu.pipeline_mode<synchronous>, transform_indices = @transform_0, window_bounds = array<i64: 16, 128>}, {pipeline_mode = #tpu.pipeline_mode<synchronous>, transform_indices = @transform_1, window_bounds = array<i64: 128, 512>}, {pipeline_mode = #tpu.pipeline_mode<synchronous>, transform_indices = @transform_2, window_bounds = array<i64: 1, 512>}, {pipeline_mode = #tpu.pipeline_mode<synchronous>, transform_indices = @transform_3, window_bounds = array<i64: 512, 256>}, {pipeline_mode = #tpu.pipeline_mode<synchronous>, transform_indices = @transform_4, window_bounds = array<i64: 1, 256>}, {pipeline_mode = #tpu.pipeline_mode<synchronous>, transform_indices = @transform_5, window_bounds = array<i64: 256, 128>}, {pipeline_mode = #tpu.pipeline_mode<synchronous>, transform_indices = @transform_6, window_bounds = array<i64: 1, 128>}, {pipeline_mode = #tpu.pipeline_mode<synchronous>, transform_indices = @transform_7, window_bounds = array<i64: 128, 256>}, {pipeline_mode = #tpu.pipeline_mode<synchronous>, transform_indices = @transform_8, window_bounds = array<i64: 1, 256>}, {pipeline_mode = #tpu.pipeline_mode<synchronous>, transform_indices = @transform_9, window_bounds = array<i64: 8, 256>}]} {
    %c0 = arith.constant 0 : index
    %c0_0 = arith.constant 0 : index
    %0 = vector.load %arg1[%c0, %c0_0] : memref<16x128xf32, #tpu.memory_space<vmem>>, vector<16x128xf32>
    %cst = arith.constant dense<0xFF800000> : vector<128xf32>
    %1 = vector.multi_reduction <maximumf>, %0, %cst [0] : vector<16x128xf32> to vector<128xf32>
    %2 = vector.shape_cast %1 : vector<128xf32> to vector<1x128xf32>
    %3 = vector.shape_cast %2 : vector<1x128xf32> to vector<1x128xf32>
    %4 = vector.broadcast %3 : vector<1x128xf32> to vector<8x128xf32>
    %c0_1 = arith.constant 0 : index
    %c0_2 = arith.constant 0 : index
    %5 = vector.load %arg2[%c0_1, %c0_2] : memref<128x512xf32, #tpu.memory_space<vmem>>, vector<128x512xf32>
    %cst_3 = arith.constant dense<0.000000e+00> : vector<8x512xf32>
    %6 = tpu.matmul %4, %5, %cst_3 {dimension_numbers = #tpu.dot_dimension_numbers<[1], [0], [0], [1], [0, 0, 1, 1], [], []>} : vector<8x128xf32>, vector<128x512xf32>, vector<8x512xf32> -> vector<8x512xf32>
    %c0_4 = arith.constant 0 : index
    %c0_5 = arith.constant 0 : index
    %7 = vector.load %arg3[%c0_4, %c0_5] : memref<1x512xf32, #tpu.memory_space<vmem>>, vector<1x512xf32>
    %8 = vector.broadcast %7 : vector<1x512xf32> to vector<8x512xf32>
    %9 = arith.addf %6, %8 : vector<8x512xf32>
    %cst_6 = arith.constant 0.000000e+00 : f32
    %10 = vector.broadcast %cst_6 : f32 to vector<8x512xf32>
    %11 = arith.maximumf %9, %10 : vector<8x512xf32>
    %c0_7 = arith.constant 0 : index
    %c0_8 = arith.constant 0 : index
    %12 = vector.load %arg4[%c0_7, %c0_8] : memref<512x256xf32, #tpu.memory_space<vmem>>, vector<512x256xf32>
    %cst_9 = arith.constant dense<0.000000e+00> : vector<8x256xf32>
    %13 = tpu.matmul %11, %12, %cst_9 {dimension_numbers = #tpu.dot_dimension_numbers<[1], [0], [0], [1], [0, 0, 1, 1], [], []>} : vector<8x512xf32>, vector<512x256xf32>, vector<8x256xf32> -> vector<8x256xf32>
    %c0_10 = arith.constant 0 : index
    %c0_11 = arith.constant 0 : index
    %14 = vector.load %arg5[%c0_10, %c0_11] : memref<1x256xf32, #tpu.memory_space<vmem>>, vector<1x256xf32>
    %15 = vector.broadcast %14 : vector<1x256xf32> to vector<8x256xf32>
    %16 = arith.addf %13, %15 : vector<8x256xf32>
    %cst_12 = arith.constant 0.000000e+00 : f32
    %17 = vector.broadcast %cst_12 : f32 to vector<8x256xf32>
    %18 = arith.maximumf %16, %17 : vector<8x256xf32>
    %c0_13 = arith.constant 0 : index
    %c0_14 = arith.constant 0 : index
    %19 = vector.load %arg6[%c0_13, %c0_14] : memref<256x128xf32, #tpu.memory_space<vmem>>, vector<256x128xf32>
    %cst_15 = arith.constant dense<0.000000e+00> : vector<8x128xf32>
    %20 = tpu.matmul %18, %19, %cst_15 {dimension_numbers = #tpu.dot_dimension_numbers<[1], [0], [0], [1], [0, 0, 1, 1], [], []>} : vector<8x256xf32>, vector<256x128xf32>, vector<8x128xf32> -> vector<8x128xf32>
    %c0_16 = arith.constant 0 : index
    %c0_17 = arith.constant 0 : index
    %21 = vector.load %arg7[%c0_16, %c0_17] : memref<1x128xf32, #tpu.memory_space<vmem>>, vector<1x128xf32>
    %22 = vector.broadcast %21 : vector<1x128xf32> to vector<8x128xf32>
    %23 = arith.addf %20, %22 : vector<8x128xf32>
    %cst_18 = arith.constant 0.000000e+00 : f32
    %24 = vector.broadcast %cst_18 : f32 to vector<8x128xf32>
    %25 = arith.maximumf %23, %24 : vector<8x128xf32>
    %c0_19 = arith.constant 0 : index
    %c0_20 = arith.constant 0 : index
    %26 = vector.load %arg8[%c0_19, %c0_20] : memref<128x256xf32, #tpu.memory_space<vmem>>, vector<128x256xf32>
    %cst_21 = arith.constant dense<0.000000e+00> : vector<8x256xf32>
    %27 = tpu.matmul %25, %26, %cst_21 {dimension_numbers = #tpu.dot_dimension_numbers<[1], [0], [0], [1], [0, 0, 1, 1], [], []>} : vector<8x128xf32>, vector<128x256xf32>, vector<8x256xf32> -> vector<8x256xf32>
    %c0_22 = arith.constant 0 : index
    %c0_23 = arith.constant 0 : index
    %28 = vector.load %arg9[%c0_22, %c0_23] : memref<1x256xf32, #tpu.memory_space<vmem>>, vector<1x256xf32>
    %29 = vector.broadcast %28 : vector<1x256xf32> to vector<8x256xf32>
    %30 = arith.addf %27, %29 : vector<8x256xf32>
    %c0_24 = arith.constant 0 : index
    %c0_25 = arith.constant 0 : index
    %31 = vector.load %arg10[%c0_24, %c0_25] : memref<8x256xf32, #tpu.memory_space<vmem>>, vector<8x256xf32>
    tpu.vector_store %arg10[%c0_24, %c0_25], %30 {strides = array<i32>} : memref<8x256xf32, #tpu.memory_space<vmem>>, vector<8x256xf32>,
    return
  }
  func.func @transform_0(%arg0: i32) -> (i32, i32) {
    %c0_i32 = arith.constant 0 : i32
    %c0_i32_0 = arith.constant 0 : i32
    %c0_i32_1 = arith.constant 0 : i32
    return %c0_i32, %c0_i32_0 : i32, i32
  }
  func.func @transform_1(%arg0: i32) -> (i32, i32) {
    %c0_i32 = arith.constant 0 : i32
    %c0_i32_0 = arith.constant 0 : i32
    %c0_i32_1 = arith.constant 0 : i32
    return %c0_i32, %c0_i32_0 : i32, i32
  }
  func.func @transform_2(%arg0: i32) -> (i32, i32) {
    %c0_i32 = arith.constant 0 : i32
    %c0_i32_0 = arith.constant 0 : i32
    %c0_i32_1 = arith.constant 0 : i32
    return %c0_i32, %c0_i32_0 : i32, i32
  }
  func.func @transform_3(%arg0: i32) -> (i32, i32) {
    %c0_i32 = arith.constant 0 : i32
    %c0_i32_0 = arith.constant 0 : i32
    %c0_i32_1 = arith.constant 0 : i32
    return %c0_i32, %c0_i32_0 : i32, i32
  }
  func.func @transform_4(%arg0: i32) -> (i32, i32) {
    %c0_i32 = arith.constant 0 : i32
    %c0_i32_0 = arith.constant 0 : i32
    %c0_i32_1 = arith.constant 0 : i32
    return %c0_i32, %c0_i32_0 : i32, i32
  }
  func.func @transform_5(%arg0: i32) -> (i32, i32) {
    %c0_i32 = arith.constant 0 : i32
    %c0_i32_0 = arith.constant 0 : i32
    %c0_i32_1 = arith.constant 0 : i32
    return %c0_i32, %c0_i32_0 : i32, i32
  }
  func.func @transform_6(%arg0: i32) -> (i32, i32) {
    %c0_i32 = arith.constant 0 : i32
    %c0_i32_0 = arith.constant 0 : i32
    %c0_i32_1 = arith.constant 0 : i32
    return %c0_i32, %c0_i32_0 : i32, i32
  }
  func.func @transform_7(%arg0: i32) -> (i32, i32) {
    %c0_i32 = arith.constant 0 : i32
    %c0_i32_0 = arith.constant 0 : i32
    %c0_i32_1 = arith.constant 0 : i32
    return %c0_i32, %c0_i32_0 : i32, i32
  }
  func.func @transform_8(%arg0: i32) -> (i32, i32) {
    %c0_i32 = arith.constant 0 : i32
    %c0_i32_0 = arith.constant 0 : i32
    %c0_i32_1 = arith.constant 0 : i32
    return %c0_i32, %c0_i32_0 : i32, i32
  }
  func.func @transform_9(%arg0: i32) -> (i32, i32) {
    %c0_i32 = arith.constant 0 : i32
    %c0_i32_0 = arith.constant 0 : i32
    %c0_i32_1 = arith.constant 0 : i32
    return %c0_i32, %c0_i32_0 : i32, i32
  }
}

module attributes {stable_mosaic.version = 11 : i64} {
  func.func @_head_kernel(%arg0: i32, %arg1: memref<128x3xf32, #tpu.memory_space<vmem>>, %arg2: memref<3x64xf32, #tpu.memory_space<vmem>>, %arg3: memref<1x64xf32, #tpu.memory_space<vmem>>, %arg4: memref<64x64xbf16, #tpu.memory_space<vmem>>, %arg5: memref<1x64xf32, #tpu.memory_space<vmem>>, %arg6: memref<64x128xbf16, #tpu.memory_space<vmem>>, %arg7: memref<1x128xf32, #tpu.memory_space<vmem>>, %arg8: memref<8x256xf32, #tpu.memory_space<vmem>>, %arg9: memref<128x256xbf16, #tpu.memory_space<vmem>>, %arg10: memref<256x128xbf16, #tpu.memory_space<vmem>>, %arg11: memref<1x128xf32, #tpu.memory_space<vmem>>, %arg12: memref<128x128xbf16, #tpu.memory_space<vmem>>, %arg13: memref<1x128xf32, #tpu.memory_space<vmem>>, %arg14: memref<128x128xf32, #tpu.memory_space<vmem>>) attributes {dimension_semantics = [#tpu.dimension_semantics<parallel>], iteration_bounds = array<i64: 2>, scalar_prefetch = 0 : i64, scratch_operands = 0 : i64, tpu.core_type = #tpu.core_type<tc>, window_params = [{transform_indices = @transform_0, window_bounds = array<i64: 128, 3>}, {pipeline_mode = #tpu.pipeline_mode<synchronous>, transform_indices = @transform_1, window_bounds = array<i64: 3, 64>}, {pipeline_mode = #tpu.pipeline_mode<synchronous>, transform_indices = @transform_2, window_bounds = array<i64: 1, 64>}, {pipeline_mode = #tpu.pipeline_mode<synchronous>, transform_indices = @transform_3, window_bounds = array<i64: 64, 64>}, {pipeline_mode = #tpu.pipeline_mode<synchronous>, transform_indices = @transform_4, window_bounds = array<i64: 1, 64>}, {pipeline_mode = #tpu.pipeline_mode<synchronous>, transform_indices = @transform_5, window_bounds = array<i64: 64, 128>}, {pipeline_mode = #tpu.pipeline_mode<synchronous>, transform_indices = @transform_6, window_bounds = array<i64: 1, 128>}, {pipeline_mode = #tpu.pipeline_mode<synchronous>, transform_indices = @transform_7, window_bounds = array<i64: 8, 256>}, {pipeline_mode = #tpu.pipeline_mode<synchronous>, transform_indices = @transform_8, window_bounds = array<i64: 128, 256>}, {pipeline_mode = #tpu.pipeline_mode<synchronous>, transform_indices = @transform_9, window_bounds = array<i64: 256, 128>}, {pipeline_mode = #tpu.pipeline_mode<synchronous>, transform_indices = @transform_10, window_bounds = array<i64: 1, 128>}, {pipeline_mode = #tpu.pipeline_mode<synchronous>, transform_indices = @transform_11, window_bounds = array<i64: 128, 128>}, {pipeline_mode = #tpu.pipeline_mode<synchronous>, transform_indices = @transform_12, window_bounds = array<i64: 1, 128>}, {transform_indices = @transform_13, window_bounds = array<i64: 128, 128>}]} {
    %c0 = arith.constant 0 : index
    %c0_0 = arith.constant 0 : index
    %0 = vector.load %arg1[%c0, %c0_0] : memref<128x3xf32, #tpu.memory_space<vmem>>, vector<128x3xf32>
    %c0_1 = arith.constant 0 : index
    %c0_2 = arith.constant 0 : index
    %1 = vector.load %arg2[%c0_1, %c0_2] : memref<3x64xf32, #tpu.memory_space<vmem>>, vector<3x64xf32>
    %c0_3 = arith.constant 0 : index
    %c0_4 = arith.constant 0 : index
    %2 = vector.load %arg3[%c0_3, %c0_4] : memref<1x64xf32, #tpu.memory_space<vmem>>, vector<1x64xf32>
    %3 = vector.extract_strided_slice %0 {offsets = [0, 0], sizes = [128, 1], strides = [1, 1]} : vector<128x3xf32> to vector<128x1xf32>
    %4 = vector.extract_strided_slice %1 {offsets = [0, 0], sizes = [1, 64], strides = [1, 1]} : vector<3x64xf32> to vector<1x64xf32>
    %5 = vector.broadcast %3 : vector<128x1xf32> to vector<128x64xf32>
    %6 = vector.broadcast %4 : vector<1x64xf32> to vector<128x64xf32>
    %7 = arith.mulf %5, %6 : vector<128x64xf32>
    %8 = vector.broadcast %2 : vector<1x64xf32> to vector<128x64xf32>
    %9 = arith.addf %8, %7 : vector<128x64xf32>
    %10 = vector.extract_strided_slice %0 {offsets = [0, 1], sizes = [128, 1], strides = [1, 1]} : vector<128x3xf32> to vector<128x1xf32>
    %11 = vector.extract_strided_slice %1 {offsets = [1, 0], sizes = [1, 64], strides = [1, 1]} : vector<3x64xf32> to vector<1x64xf32>
    %12 = vector.broadcast %10 : vector<128x1xf32> to vector<128x64xf32>
    %13 = vector.broadcast %11 : vector<1x64xf32> to vector<128x64xf32>
    %14 = arith.mulf %12, %13 : vector<128x64xf32>
    %15 = arith.addf %9, %14 : vector<128x64xf32>
    %16 = vector.extract_strided_slice %0 {offsets = [0, 2], sizes = [128, 1], strides = [1, 1]} : vector<128x3xf32> to vector<128x1xf32>
    %17 = vector.extract_strided_slice %1 {offsets = [2, 0], sizes = [1, 64], strides = [1, 1]} : vector<3x64xf32> to vector<1x64xf32>
    %18 = vector.broadcast %16 : vector<128x1xf32> to vector<128x64xf32>
    %19 = vector.broadcast %17 : vector<1x64xf32> to vector<128x64xf32>
    %20 = arith.mulf %18, %19 : vector<128x64xf32>
    %21 = arith.addf %15, %20 : vector<128x64xf32>
    %cst = arith.constant 0.000000e+00 : f32
    %22 = vector.broadcast %cst : f32 to vector<128x64xf32>
    %23 = arith.maximumf %21, %22 : vector<128x64xf32>
    %24 = arith.truncf %23 : vector<128x64xf32> to vector<128x64xbf16>
    %c0_5 = arith.constant 0 : index
    %c0_6 = arith.constant 0 : index
    %25 = vector.load %arg4[%c0_5, %c0_6] : memref<64x64xbf16, #tpu.memory_space<vmem>>, vector<64x64xbf16>
    %cst_7 = arith.constant dense<0.000000e+00> : vector<128x64xf32>
    %26 = tpu.matmul %24, %25, %cst_7 {dimension_numbers = #tpu.dot_dimension_numbers<[1], [0], [0], [1], [0, 0, 1, 1], [], []>} : vector<128x64xbf16>, vector<64x64xbf16>, vector<128x64xf32> -> vector<128x64xf32>
    %c0_8 = arith.constant 0 : index
    %c0_9 = arith.constant 0 : index
    %27 = vector.load %arg5[%c0_8, %c0_9] : memref<1x64xf32, #tpu.memory_space<vmem>>, vector<1x64xf32>
    %28 = vector.broadcast %27 : vector<1x64xf32> to vector<128x64xf32>
    %29 = arith.addf %26, %28 : vector<128x64xf32>
    %cst_10 = arith.constant 0.000000e+00 : f32
    %30 = vector.broadcast %cst_10 : f32 to vector<128x64xf32>
    %31 = arith.maximumf %29, %30 : vector<128x64xf32>
    %32 = arith.truncf %31 : vector<128x64xf32> to vector<128x64xbf16>
    %c0_11 = arith.constant 0 : index
    %c0_12 = arith.constant 0 : index
    %33 = vector.load %arg6[%c0_11, %c0_12] : memref<64x128xbf16, #tpu.memory_space<vmem>>, vector<64x128xbf16>
    %cst_13 = arith.constant dense<0.000000e+00> : vector<128x128xf32>
    %34 = tpu.matmul %32, %33, %cst_13 {dimension_numbers = #tpu.dot_dimension_numbers<[1], [0], [0], [1], [0, 0, 1, 1], [], []>} : vector<128x64xbf16>, vector<64x128xbf16>, vector<128x128xf32> -> vector<128x128xf32>
    %c0_14 = arith.constant 0 : index
    %c0_15 = arith.constant 0 : index
    %35 = vector.load %arg7[%c0_14, %c0_15] : memref<1x128xf32, #tpu.memory_space<vmem>>, vector<1x128xf32>
    %36 = vector.broadcast %35 : vector<1x128xf32> to vector<128x128xf32>
    %37 = arith.addf %34, %36 : vector<128x128xf32>
    %cst_16 = arith.constant 0.000000e+00 : f32
    %38 = vector.broadcast %cst_16 : f32 to vector<128x128xf32>
    %39 = arith.maximumf %37, %38 : vector<128x128xf32>
    %c0_17 = arith.constant 0 : index
    %c0_18 = arith.constant 0 : index
    %40 = vector.load %arg8[%c0_17, %c0_18] : memref<8x256xf32, #tpu.memory_space<vmem>>, vector<1x256xf32>
    %41 = arith.truncf %39 : vector<128x128xf32> to vector<128x128xbf16>
    %c0_19 = arith.constant 0 : index
    %c0_20 = arith.constant 0 : index
    %42 = vector.load %arg9[%c0_19, %c0_20] : memref<128x256xbf16, #tpu.memory_space<vmem>>, vector<128x256xbf16>
    %cst_21 = arith.constant dense<0.000000e+00> : vector<128x256xf32>
    %43 = tpu.matmul %41, %42, %cst_21 {dimension_numbers = #tpu.dot_dimension_numbers<[1], [0], [0], [1], [0, 0, 1, 1], [], []>} : vector<128x128xbf16>, vector<128x256xbf16>, vector<128x256xf32> -> vector<128x256xf32>
    %44 = vector.broadcast %40 : vector<1x256xf32> to vector<128x256xf32>
    %45 = arith.addf %43, %44 : vector<128x256xf32>
    %cst_22 = arith.constant 0.000000e+00 : f32
    %46 = vector.broadcast %cst_22 : f32 to vector<128x256xf32>
    %47 = arith.maximumf %45, %46 : vector<128x256xf32>
    %48 = arith.truncf %47 : vector<128x256xf32> to vector<128x256xbf16>
    %c0_23 = arith.constant 0 : index
    %c0_24 = arith.constant 0 : index
    %49 = vector.load %arg10[%c0_23, %c0_24] : memref<256x128xbf16, #tpu.memory_space<vmem>>, vector<256x128xbf16>
    %cst_25 = arith.constant dense<0.000000e+00> : vector<128x128xf32>
    %50 = tpu.matmul %48, %49, %cst_25 {dimension_numbers = #tpu.dot_dimension_numbers<[1], [0], [0], [1], [0, 0, 1, 1], [], []>} : vector<128x256xbf16>, vector<256x128xbf16>, vector<128x128xf32> -> vector<128x128xf32>
    %c0_26 = arith.constant 0 : index
    %c0_27 = arith.constant 0 : index
    %51 = vector.load %arg11[%c0_26, %c0_27] : memref<1x128xf32, #tpu.memory_space<vmem>>, vector<1x128xf32>
    %52 = vector.broadcast %51 : vector<1x128xf32> to vector<128x128xf32>
    %53 = arith.addf %50, %52 : vector<128x128xf32>
    %cst_28 = arith.constant 0.000000e+00 : f32
    %54 = vector.broadcast %cst_28 : f32 to vector<128x128xf32>
    %55 = arith.maximumf %53, %54 : vector<128x128xf32>
    %56 = arith.truncf %55 : vector<128x128xf32> to vector<128x128xbf16>
    %c0_29 = arith.constant 0 : index
    %c0_30 = arith.constant 0 : index
    %57 = vector.load %arg12[%c0_29, %c0_30] : memref<128x128xbf16, #tpu.memory_space<vmem>>, vector<128x128xbf16>
    %cst_31 = arith.constant dense<0.000000e+00> : vector<128x128xf32>
    %58 = tpu.matmul %56, %57, %cst_31 {dimension_numbers = #tpu.dot_dimension_numbers<[1], [0], [0], [1], [0, 0, 1, 1], [], []>} : vector<128x128xbf16>, vector<128x128xbf16>, vector<128x128xf32> -> vector<128x128xf32>
    %c0_32 = arith.constant 0 : index
    %c0_33 = arith.constant 0 : index
    %59 = vector.load %arg13[%c0_32, %c0_33] : memref<1x128xf32, #tpu.memory_space<vmem>>, vector<1x128xf32>
    %60 = vector.broadcast %59 : vector<1x128xf32> to vector<128x128xf32>
    %61 = arith.addf %58, %60 : vector<128x128xf32>
    %c0_34 = arith.constant 0 : index
    %c0_35 = arith.constant 0 : index
    %62 = vector.load %arg14[%c0_34, %c0_35] : memref<128x128xf32, #tpu.memory_space<vmem>>, vector<128x128xf32>
    tpu.vector_store %arg14[%c0_34, %c0_35], %61 {strides = array<i32>} : memref<128x128xf32, #tpu.memory_space<vmem>>, vector<128x128xf32>,
    return
  }
  func.func @transform_0(%arg0: i32) -> (i32, i32) {
    %c0_i32 = arith.constant 0 : i32
    %c0_i32_0 = arith.constant 0 : i32
    return %arg0, %c0_i32 : i32, i32
  }
  func.func @transform_1(%arg0: i32) -> (i32, i32) {
    %c0_i32 = arith.constant 0 : i32
    %c0_i32_0 = arith.constant 0 : i32
    %c0_i32_1 = arith.constant 0 : i32
    return %c0_i32, %c0_i32_0 : i32, i32
  }
  func.func @transform_2(%arg0: i32) -> (i32, i32) {
    %c0_i32 = arith.constant 0 : i32
    %c0_i32_0 = arith.constant 0 : i32
    %c0_i32_1 = arith.constant 0 : i32
    return %c0_i32, %c0_i32_0 : i32, i32
  }
  func.func @transform_3(%arg0: i32) -> (i32, i32) {
    %c0_i32 = arith.constant 0 : i32
    %c0_i32_0 = arith.constant 0 : i32
    %c0_i32_1 = arith.constant 0 : i32
    return %c0_i32, %c0_i32_0 : i32, i32
  }
  func.func @transform_4(%arg0: i32) -> (i32, i32) {
    %c0_i32 = arith.constant 0 : i32
    %c0_i32_0 = arith.constant 0 : i32
    %c0_i32_1 = arith.constant 0 : i32
    return %c0_i32, %c0_i32_0 : i32, i32
  }
  func.func @transform_5(%arg0: i32) -> (i32, i32) {
    %c0_i32 = arith.constant 0 : i32
    %c0_i32_0 = arith.constant 0 : i32
    %c0_i32_1 = arith.constant 0 : i32
    return %c0_i32, %c0_i32_0 : i32, i32
  }
  func.func @transform_6(%arg0: i32) -> (i32, i32) {
    %c0_i32 = arith.constant 0 : i32
    %c0_i32_0 = arith.constant 0 : i32
    %c0_i32_1 = arith.constant 0 : i32
    return %c0_i32, %c0_i32_0 : i32, i32
  }
  func.func @transform_7(%arg0: i32) -> (i32, i32) {
    %c0_i32 = arith.constant 0 : i32
    %c0_i32_0 = arith.constant 0 : i32
    %c0_i32_1 = arith.constant 0 : i32
    return %c0_i32, %c0_i32_0 : i32, i32
  }
  func.func @transform_8(%arg0: i32) -> (i32, i32) {
    %c0_i32 = arith.constant 0 : i32
    %c0_i32_0 = arith.constant 0 : i32
    %c0_i32_1 = arith.constant 0 : i32
    return %c0_i32, %c0_i32_0 : i32, i32
  }
  func.func @transform_9(%arg0: i32) -> (i32, i32) {
    %c0_i32 = arith.constant 0 : i32
    %c0_i32_0 = arith.constant 0 : i32
    %c0_i32_1 = arith.constant 0 : i32
    return %c0_i32, %c0_i32_0 : i32, i32
  }
  func.func @transform_10(%arg0: i32) -> (i32, i32) {
    %c0_i32 = arith.constant 0 : i32
    %c0_i32_0 = arith.constant 0 : i32
    %c0_i32_1 = arith.constant 0 : i32
    return %c0_i32, %c0_i32_0 : i32, i32
  }
  func.func @transform_11(%arg0: i32) -> (i32, i32) {
    %c0_i32 = arith.constant 0 : i32
    %c0_i32_0 = arith.constant 0 : i32
    %c0_i32_1 = arith.constant 0 : i32
    return %c0_i32, %c0_i32_0 : i32, i32
  }
  func.func @transform_12(%arg0: i32) -> (i32, i32) {
    %c0_i32 = arith.constant 0 : i32
    %c0_i32_0 = arith.constant 0 : i32
    %c0_i32_1 = arith.constant 0 : i32
    return %c0_i32, %c0_i32_0 : i32, i32
  }
  func.func @transform_13(%arg0: i32) -> (i32, i32) {
    %c0_i32 = arith.constant 0 : i32
    %c0_i32_0 = arith.constant 0 : i32
    return %arg0, %c0_i32 : i32, i32
  }
}

</mosaic_0001>

<llo_original>
// kernel: pointnet_feature_extractor.3
$region0: #{pointnet_feature_extractor.3}
  #allocation0 [shape = 'u32[]', space=smem, size = 0x4, offset = 0x4, fixed_abs, tag = 'smem constant byte address 0x4 - core index']
  #allocation1 [shape = 'u32[144,128]{1,0:T(1,128)}', space=vmem, size = 0x12000, scoped, tag = 'internal scratch']
  %s0 = inlined_call_operand.vmem [shape: f32[256,3], index: 0, kind: input, shape index: {}]
  %s1 = inlined_call_operand.vmem [shape: f32[3,64], index: 1, kind: input, shape index: {}]
  %s2 = inlined_call_operand.vmem [shape: f32[1,64], index: 2, kind: input, shape index: {}]
  %s3 = inlined_call_operand.vmem [shape: bf16[64,64], index: 3, kind: input, shape index: {}]
  %s4 = inlined_call_operand.hbm [shape: f32[1,64], index: 4, kind: input, shape index: {}]
  %s5 = inlined_call_operand.vmem [shape: bf16[64,128], index: 5, kind: input, shape index: {}]
  %s6 = inlined_call_operand.hbm [shape: f32[1,128], index: 6, kind: input, shape index: {}]
  %s7 = inlined_call_operand.vmem [shape: f32[16,128], index: 7, kind: output, shape index: {}]
  %s8 = sld [smem:[#allocation0]]
  $region69: #{pointnet_feature_extractor.3} parent=0
    _
  %s10 = ssub.s32 1, %s8
  %s11 = scalar_select 0, %s10, %s8
  $region1: #{pointnet_feature_extractor.3} parent=0
    #allocation2 [shape = 'u8[512]{0}', space=vmem, size = 0x400, scoped, tag = 'input window, operand 4, single buffered']
    #allocation3 [shape = 's32[2]{0}', space=sflag, size = 0x8, scoped, tag = 'scoped memory for pointnet_feature_extractor.3']
    #allocation4 [shape = 'u8[512]{0}', space=vmem, size = 0x400, scoped, tag = 'input window, operand 6, single buffered']
    #allocation5 [shape = 's32[1]{0}', space=sflag, size = 0x4, scoped, tag = 'scoped memory for pointnet_feature_extractor.3']
    %12 = vsyncpa [#allocation3], 0
    %13 = vsyncpa [#allocation5], 0
    loop: start=0, step=1, limit=4
    $region2: #{pointnet_feature_extractor.3} parent=1 // loop_pre_header
      _
    $region3: #{pointnet_feature_extractor.3} parent=1 // loop_header
      %s15 = sphi 0, %s19
      %p16 = scmp.ge.s32.totalorder %s15, 4
      %s25 = sphi 0, %s27
      %s28 = sphi 0, %s25
      %s29 = sphi 0, %s28
      %s45 = sphi 0, %s29
      %s49 = sphi 0, %s49
      %s51 = sphi 0, %s49
      %s52 = sphi 0, %s51
      %s66 = sphi 0, %s52
      %s70 = sphi 0, %s70
      %s72 = sphi 0, %s70
      %s73 = sphi 0, %s72
      %s87 = sphi 0, %s73
      %s91 = sphi 0, %s91
      %s93 = sphi 0, %s91
      %s94 = sphi 0, %s93
      %s108 = sphi 0, %s94
      %s112 = sphi 0, %s112
      %s114 = sphi 0, %s112
      %s115 = sphi 0, %s114
      %s129 = sphi 0, %s115
      %s133 = sphi 0, %s133
      %s135 = sphi 0, %s133
      %s136 = sphi 0, %s135
      %s150 = sphi 0, %s136
      %s154 = sphi 0, %s154
      %s156 = sphi 0, %s154
      %s157 = sphi 0, %s156
      %s171 = sphi 0, %s157
      %s177 = sphi 0, %s179
      %s180 = sphi 0, %s177
      %s181 = sphi 0, %s180
      %s197 = sphi 0, %s181
    $region4: #{pointnet_feature_extractor.3} parent=1 // loop_header_branch
      %18 = sbr.rel (%p16) target = $region8
    $region5: #{pointnet_feature_extractor.3} parent=1 // loop_body
      %s20 = ssub.s32 %s15, 1
      %s21 = ssub.s32 %s15, 2
      %s22 = sadd.s32 %s15, 1
      %s23 = ssub.s32 %s15, %s22
      %p24 = scmp.eq.s32.totalorder %s23, 0
      %s26 = sadd.s32 %s25, 1
      %s27 = scalar_select %p24, %s25, %s26
      %p30 = pneg %p24
      %p31 = scmp.eq.s32.totalorder %s15, 1
      %p32 = por %p30, %p31
      %p33 = scmp.ne.s32.totalorder %s25, %s28
      %p34 = scmp.eq.s32.totalorder %s15, 0
      %p35 = por %p33, %p34
      %p36 = scmp.ne.s32.totalorder %s25, %s28
      %p37 = scmp.eq.s32.totalorder %s20, 1
      %p38 = por %p36, %p37
      %p39 = scmp.ne.s32.totalorder %s28, %s29
      %p40 = scmp.eq.s32.totalorder %s20, 0
      %p41 = por %p39, %p40
      %p42 = scmp.ne.s32.totalorder %s28, %s29
      %p43 = scmp.eq.s32.totalorder %s21, 1
      %p44 = por %p42, %p43
      %p46 = scmp.ne.s32.totalorder %s29, %s45
      %p47 = scmp.eq.s32.totalorder %s21, 0
      %p48 = por %p46, %p47
      %s50 = sadd.s32 %s49, 1
      %p53 = scmp.eq.s32.totalorder %s15, 1
      %p54 = scmp.ne.s32.totalorder %s49, %s51
      %p55 = scmp.eq.s32.totalorder %s15, 0
      %p56 = por %p54, %p55
      %p57 = scmp.ne.s32.totalorder %s49, %s51
      %p58 = scmp.eq.s32.totalorder %s20, 1
      %p59 = por %p57, %p58
      %p60 = scmp.ne.s32.totalorder %s51, %s52
      %p61 = scmp.eq.s32.totalorder %s20, 0
      %p62 = por %p60, %p61
      %p63 = scmp.ne.s32.totalorder %s51, %s52
      %p64 = scmp.eq.s32.totalorder %s21, 1
      %p65 = por %p63, %p64
      %p67 = scmp.ne.s32.totalorder %s52, %s66
      %p68 = scmp.eq.s32.totalorder %s21, 0
      %p69 = por %p67, %p68
      %s71 = sadd.s32 %s70, 1
      %p74 = scmp.eq.s32.totalorder %s15, 1
      %p75 = scmp.ne.s32.totalorder %s70, %s72
      %p76 = scmp.eq.s32.totalorder %s15, 0
      %p77 = por %p75, %p76
      %p78 = scmp.ne.s32.totalorder %s70, %s72
      %p79 = scmp.eq.s32.totalorder %s20, 1
      %p80 = por %p78, %p79
      %p81 = scmp.ne.s32.totalorder %s72, %s73
      %p82 = scmp.eq.s32.totalorder %s20, 0
      %p83 = por %p81, %p82
      %p84 = scmp.ne.s32.totalorder %s72, %s73
      %p85 = scmp.eq.s32.totalorder %s21, 1
      %p86 = por %p84, %p85
      %p88 = scmp.ne.s32.totalorder %s73, %s87
      %p89 = scmp.eq.s32.totalorder %s21, 0
      %p90 = por %p88, %p89
      %s92 = sadd.s32 %s91, 1
      %p95 = scmp.eq.s32.totalorder %s15, 1
      %p96 = scmp.ne.s32.totalorder %s91, %s93
      %p97 = scmp.eq.s32.totalorder %s15, 0
      %p98 = por %p96, %p97
      %p99 = scmp.ne.s32.totalorder %s91, %s93
      %p100 = scmp.eq.s32.totalorder %s20, 1
      %p101 = por %p99, %p100
      %p102 = scmp.ne.s32.totalorder %s93, %s94
      %p103 = scmp.eq.s32.totalorder %s20, 0
      %p104 = por %p102, %p103
      %p105 = scmp.ne.s32.totalorder %s93, %s94
      %p106 = scmp.eq.s32.totalorder %s21, 1
      %p107 = por %p105, %p106
      %p109 = scmp.ne.s32.totalorder %s94, %s108
      %p110 = scmp.eq.s32.totalorder %s21, 0
      %p111 = por %p109, %p110
      %s113 = sadd.s32 %s112, 1
      %p116 = scmp.eq.s32.totalorder %s15, 1
      %p117 = scmp.ne.s32.totalorder %s112, %s114
      %p118 = scmp.eq.s32.totalorder %s15, 0
      %p119 = por %p117, %p118
      %p120 = scmp.ne.s32.totalorder %s112, %s114
      %p121 = scmp.eq.s32.totalorder %s20, 1
      %p122 = por %p120, %p121
      %p123 = scmp.ne.s32.totalorder %s114, %s115
      %p124 = scmp.eq.s32.totalorder %s20, 0
      %p125 = por %p123, %p124
      %p126 = scmp.ne.s32.totalorder %s114, %s115
      %p127 = scmp.eq.s32.totalorder %s21, 1
      %p128 = por %p126, %p127
      %p130 = scmp.ne.s32.totalorder %s115, %s129
      %p131 = scmp.eq.s32.totalorder %s21, 0
      %p132 = por %p130, %p131
      %s134 = sadd.s32 %s133, 1
      %p137 = scmp.eq.s32.totalorder %s15, 1
      %p138 = scmp.ne.s32.totalorder %s133, %s135
      %p139 = scmp.eq.s32.totalorder %s15, 0
      %p140 = por %p138, %p139
      %p141 = scmp.ne.s32.totalorder %s133, %s135
      %p142 = scmp.eq.s32.totalorder %s20, 1
      %p143 = por %p141, %p142
      %p144 = scmp.ne.s32.totalorder %s135, %s136
      %p145 = scmp.eq.s32.totalorder %s20, 0
      %p146 = por %p144, %p145
      %p147 = scmp.ne.s32.totalorder %s135, %s136
      %p148 = scmp.eq.s32.totalorder %s21, 1
      %p149 = por %p147, %p148
      %p151 = scmp.ne.s32.totalorder %s136, %s150
      %p152 = scmp.eq.s32.totalorder %s21, 0
      %p153 = por %p151, %p152
      %s155 = sadd.s32 %s154, 1
      %p158 = scmp.eq.s32.totalorder %s15, 1
      %p159 = scmp.ne.s32.totalorder %s154, %s156
      %p160 = scmp.eq.s32.totalorder %s15, 0
      %p161 = por %p159, %p160
      %p162 = scmp.ne.s32.totalorder %s154, %s156
      %p163 = scmp.eq.s32.totalorder %s20, 1
      %p164 = por %p162, %p163
      %p165 = scmp.ne.s32.totalorder %s156, %s157
      %p166 = scmp.eq.s32.totalorder %s20, 0
      %p167 = por %p165, %p166
      %p168 = scmp.ne.s32.totalorder %s156, %s157
      %p169 = scmp.eq.s32.totalorder %s21, 1
      %p170 = por %p168, %p169
      %p172 = scmp.ne.s32.totalorder %s157, %s171
      %p173 = scmp.eq.s32.totalorder %s21, 0
      %p174 = por %p172, %p173
      %s175 = ssub.s32 %s15, %s22
      %p176 = scmp.eq.s32.totalorder %s175, 0
      %s178 = sadd.s32 %s177, 1
      %s179 = scalar_select %p176, %s177, %s178
      %p182 = pneg %p176
      %p183 = scmp.eq.s32.totalorder %s15, 1
      %p184 = por %p182, %p183
      %p185 = scmp.ne.s32.totalorder %s177, %s180
      %p186 = scmp.eq.s32.totalorder %s15, 0
      %p187 = por %p185, %p186
      %p188 = scmp.ne.s32.totalorder %s177, %s180
      %p189 = scmp.eq.s32.totalorder %s20, 1
      %p190 = por %p188, %p189
      %p191 = scmp.ne.s32.totalorder %s180, %s181
      %p192 = scmp.eq.s32.totalorder %s20, 0
      %p193 = por %p191, %p192
      %p194 = scmp.ne.s32.totalorder %s180, %s181
      %p195 = scmp.eq.s32.totalorder %s21, 1
      %p196 = por %p194, %p195
      %p198 = scmp.ne.s32.totalorder %s181, %s197
      %p199 = scmp.eq.s32.totalorder %s21, 0
      %p200 = por %p198, %p199
      %p201 = scmp.le.s32.totalorder 1, %s15
      %p202 = scmp.lt.s32.totalorder %s15, 3
      %p203 = pnand %p201, %p202
      %p204 = pneg %p203
      // Predicated region
      $region9: #{pointnet_feature_extractor.3} parent=5 // pred_check
        _
      $region10: #{pointnet_feature_extractor.3} parent=5 // pred_check_branch
        %206 = sbr.rel (%p203) target = $region12
      $region11: #{pointnet_feature_extractor.3} parent=5 // pred_region
        %s207 = ssub.s32 %s15, 1
        // Predicated region
        $region13: #{pointnet_feature_extractor.3} parent=11 // pred_check
          %p208 = pneg %p62
        $region14: #{pointnet_feature_extractor.3} parent=11 // pred_check_branch
          %210 = sbr.rel (%p208) target = $region16
        $region15: #{pointnet_feature_extractor.3} parent=11 // pred_region
          _
        $region16: #{pointnet_feature_extractor.3} parent=11 // pred_fallthru
          _
        // Predicated region
        $region17: #{pointnet_feature_extractor.3} parent=11 // pred_check
          %p211 = pneg %p83
        $region18: #{pointnet_feature_extractor.3} parent=11 // pred_check_branch
          %213 = sbr.rel (%p211) target = $region20
        $region19: #{pointnet_feature_extractor.3} parent=11 // pred_region
          _
        $region20: #{pointnet_feature_extractor.3} parent=11 // pred_fallthru
          _
        // Predicated region
        $region21: #{pointnet_feature_extractor.3} parent=11 // pred_check
          %p214 = pneg %p104
        $region22: #{pointnet_feature_extractor.3} parent=11 // pred_check_branch
          %216 = sbr.rel (%p214) target = $region24
        $region23: #{pointnet_feature_extractor.3} parent=11 // pred_region
          _
        $region24: #{pointnet_feature_extractor.3} parent=11 // pred_fallthru
          _
        // Predicated region
        $region25: #{pointnet_feature_extractor.3} parent=11 // pred_check
          %p217 = pneg %p125
        $region26: #{pointnet_feature_extractor.3} parent=11 // pred_check_branch
          %219 = sbr.rel (%p217) target = $region28
        $region27: #{pointnet_feature_extractor.3} parent=11 // pred_region
          %s221 = ssub.s32 16, 16
          %222 = vsyncadd [#allocation3], %s221
          %s224 = sshll.u32 [#allocation2], 4
          %s225 = int_to_ptr.vmem [resolvable:$true] %s224
          %227 = dma.hbm_to_vmem [thread:$0]  %s4, 16, %s225, [#allocation3]
        $region28: #{pointnet_feature_extractor.3} parent=11 // pred_fallthru
          _
        // Predicated region
        $region29: #{pointnet_feature_extractor.3} parent=11 // pred_check
          %p228 = pneg %p146
        $region30: #{pointnet_feature_extractor.3} parent=11 // pred_check_branch
          %230 = sbr.rel (%p228) target = $region32
        $region31: #{pointnet_feature_extractor.3} parent=11 // pred_region
          _
        $region32: #{pointnet_feature_extractor.3} parent=11 // pred_fallthru
          _
        // Predicated region
        $region33: #{pointnet_feature_extractor.3} parent=11 // pred_check
          %p231 = pneg %p167
        $region34: #{pointnet_feature_extractor.3} parent=11 // pred_check_branch
          %233 = sbr.rel (%p231) target = $region36
        $region35: #{pointnet_feature_extractor.3} parent=11 // pred_region
          %s235 = ssub.s32 16, 16
          %236 = vsyncadd [#allocation5], %s235
          %s238 = sshll.u32 [#allocation4], 4
          %s239 = int_to_ptr.vmem [resolvable:$true] %s238
          %241 = dma.hbm_to_vmem [thread:$0]  %s6, 16, %s239, [#allocation5]
        $region36: #{pointnet_feature_extractor.3} parent=11 // pred_fallthru
          _
      $region12: #{pointnet_feature_extractor.3} parent=5 // pred_fallthru
        _
      %p242 = scmp.lt.s32.totalorder %s15, 2
      // Predicated region
      $region37: #{pointnet_feature_extractor.3} parent=5 // pred_check
        %p243 = pneg %p242
      $region38: #{pointnet_feature_extractor.3} parent=5 // pred_check_branch
        %245 = sbr.rel (%p243) target = $region40
      $region39: #{pointnet_feature_extractor.3} parent=5 // pred_region
        // Predicated region
        $region41: #{pointnet_feature_extractor.3} parent=39 // pred_check
          %p246 = pneg %p35
        $region42: #{pointnet_feature_extractor.3} parent=39 // pred_check_branch
          %248 = sbr.rel (%p246) target = $region44
        $region43: #{pointnet_feature_extractor.3} parent=39 // pred_region
          %s249 = smul.u32 16, %s15
          %p250 = scmp.lt.s32.totalorder %s249, 31
          %s251 = scalar_select %p250, %s249, 31
          %s252 = smul.addr %s251, 8
          %s253 = scalar_lea.vmem %s0, %s252
          %s254 = smul.u32 16, %s15
        $region44: #{pointnet_feature_extractor.3} parent=39 // pred_fallthru
          _
      $region40: #{pointnet_feature_extractor.3} parent=5 // pred_fallthru
        _
      %p255 = scmp.le.s32.totalorder 1, %s15
      %p256 = scmp.lt.s32.totalorder %s15, 3
      %p257 = pnand %p255, %p256
      %p258 = pneg %p257
      // Predicated region
      $region45: #{pointnet_feature_extractor.3} parent=5 // pred_check
        _
      $region46: #{pointnet_feature_extractor.3} parent=5 // pred_check_branch
        %260 = sbr.rel (%p257) target = $region48
      $region47: #{pointnet_feature_extractor.3} parent=5 // pred_region
        %s261 = ssub.s32 %s15, 1
        // Predicated region
        $region49: #{pointnet_feature_extractor.3} parent=47 // pred_check
          %p262 = pneg %p125
        $region50: #{pointnet_feature_extractor.3} parent=47 // pred_check_branch
          %264 = sbr.rel (%p262) target = $region52
        $region51: #{pointnet_feature_extractor.3} parent=47 // pred_region
          %265 = dma.done [#allocation3], 16
        $region52: #{pointnet_feature_extractor.3} parent=47 // pred_fallthru
          _
        // Predicated region
        $region53: #{pointnet_feature_extractor.3} parent=47 // pred_check
          %p266 = pneg %p167
        $region54: #{pointnet_feature_extractor.3} parent=47 // pred_check_branch
          %268 = sbr.rel (%p266) target = $region56
        $region55: #{pointnet_feature_extractor.3} parent=47 // pred_region
          %269 = dma.done [#allocation5], 16
        $region56: #{pointnet_feature_extractor.3} parent=47 // pred_fallthru
          _
        %s270 = smul.u32 16, %s20
        %p271 = scmp.lt.s32.totalorder %s270, 31
        %s272 = scalar_select %p271, %s270, 31
        %s273 = smul.addr %s272, 8
        %s274 = scalar_lea.vmem %s0, %s273
        %p275 = pneg %p41
        %p276 = pneg %p38
        %p277 = pneg %p62
        %p278 = pneg %p59
        %p279 = pneg %p83
        %p280 = pneg %p80
        %p281 = pneg %p104
        %p282 = pneg %p101
        %p283 = pneg %p125
        %p284 = pneg %p122
        %p285 = pneg %p146
        %p286 = pneg %p143
        %p287 = pneg %p167
        %p288 = pneg %p164
        %p289 = pneg %p193
        %p290 = pneg %p190
        %p291 = scmp.lt.s32.totalorder %s20, 1
        %s292 = scalar_select %p291, %s20, 1
        %s293 = smul.addr %s292, 8
        %s294 = scalar_lea.vmem %s7, %s293
        %s295 = smul.u32 16, %s20
        %p296 = scmp.lt.s32.totalorder %s295, 31
        %s297 = scalar_select %p296, %s295, 31
        %s298 = smul.addr %s297, 8
        %s299 = scalar_lea.vmem %s0, %s298
        %s300 = smul.u32 16, %s20
        %p301 = scmp.lt.s32.totalorder %s20, 1
        %s302 = scalar_select %p301, %s20, 1
        %s303 = smul.addr %s302, 8
        %s304 = scalar_lea.vmem %s7, %s303
        %v306 = vld [vmem:[%s299] sm:$0xff]
        %v307 = vld [vmem:[%s299 + $0x8] sm:$0xff]
        %v308 = vld [vmem:[%s299 + $0x10] sm:$0xff]
        %v309 = vld [vmem:[%s299 + $0x18] sm:$0xff]
        %v310 = vld [vmem:[%s299 + $0x20] sm:$0xff]
        %v311 = vld [vmem:[%s299 + $0x28] sm:$0xff]
        %v312 = vld [vmem:[%s299 + $0x30] sm:$0xff]
        %v313 = vld [vmem:[%s299 + $0x38] sm:$0xff]
        %v314 = vld [vmem:[%s299 + $0x40] sm:$0xff]
        %v315 = vld [vmem:[%s299 + $0x48] sm:$0xff]
        %v316 = vld [vmem:[%s299 + $0x50] sm:$0xff]
        %v317 = vld [vmem:[%s299 + $0x58] sm:$0xff]
        %v318 = vld [vmem:[%s299 + $0x60] sm:$0xff]
        %v319 = vld [vmem:[%s299 + $0x68] sm:$0xff]
        %v320 = vld [vmem:[%s299 + $0x70] sm:$0xff]
        %v321 = vld [vmem:[%s299 + $0x78] sm:$0xff]
        %v322 = vld [vmem:[%s1] sm:$0x7]
        %v323 = vld [vmem:[%s2] sm:$0x1]
        %325 = vset.pattern.permute.xlu0 0
        %326 = vperm.xlu0 %325, %v306
        %v327 = vpop.permute.xlu0 %326
        %330 = vset.pattern.permute.xlu0 0
        %331 = vperm.xlu0 %330, %v307
        %v332 = vpop.permute.xlu0 %331
        %335 = vset.pattern.permute.xlu0 0
        %336 = vperm.xlu0 %335, %v308
        %v337 = vpop.permute.xlu0 %336
        %340 = vset.pattern.permute.xlu0 0
        %341 = vperm.xlu0 %340, %v309
        %v342 = vpop.permute.xlu0 %341
        %345 = vset.pattern.permute.xlu0 0
        %346 = vperm.xlu0 %345, %v310
        %v347 = vpop.permute.xlu0 %346
        %350 = vset.pattern.permute.xlu0 0
        %351 = vperm.xlu0 %350, %v311
        %v352 = vpop.permute.xlu0 %351
        %355 = vset.pattern.permute.xlu0 0
        %356 = vperm.xlu0 %355, %v312
        %v357 = vpop.permute.xlu0 %356
        %360 = vset.pattern.permute.xlu0 0
        %361 = vperm.xlu0 %360, %v313
        %v362 = vpop.permute.xlu0 %361
        %365 = vset.pattern.permute.xlu0 0
        %366 = vperm.xlu0 %365, %v314
        %v367 = vpop.permute.xlu0 %366
        %370 = vset.pattern.permute.xlu0 0
        %371 = vperm.xlu0 %370, %v315
        %v372 = vpop.permute.xlu0 %371
        %375 = vset.pattern.permute.xlu0 0
        %376 = vperm.xlu0 %375, %v316
        %v377 = vpop.permute.xlu0 %376
        %380 = vset.pattern.permute.xlu0 0
        %381 = vperm.xlu0 %380, %v317
        %v382 = vpop.permute.xlu0 %381
        %385 = vset.pattern.permute.xlu0 0
        %386 = vperm.xlu0 %385, %v318
        %v387 = vpop.permute.xlu0 %386
        %390 = vset.pattern.permute.xlu0 0
        %391 = vperm.xlu0 %390, %v319
        %v392 = vpop.permute.xlu0 %391
        %395 = vset.pattern.permute.xlu0 0
        %396 = vperm.xlu0 %395, %v320
        %v397 = vpop.permute.xlu0 %396
        %400 = vset.pattern.permute.xlu0 0
        %401 = vperm.xlu0 %400, %v321
        %v402 = vpop.permute.xlu0 %401
        %v404 = vlaneseq
        %v405 = vshrl.u32 %v404, 7
        %v406 = vsub.s32 0, %v405
        %v407 = vrot.slane %v322, %v406
        %v408 = vmul.f32 %v327, %v407
        %v409 = vmul.f32 %v332, %v407
        %v410 = vmul.f32 %v337, %v407
        %v411 = vmul.f32 %v342, %v407
        %v412 = vmul.f32 %v347, %v407
        %v413 = vmul.f32 %v352, %v407
        %v414 = vmul.f32 %v357, %v407
        %v415 = vmul.f32 %v362, %v407
        %v416 = vmul.f32 %v367, %v407
        %v417 = vmul.f32 %v372, %v407
        %v418 = vmul.f32 %v377, %v407
        %v419 = vmul.f32 %v382, %v407
        %v420 = vmul.f32 %v387, %v407
        %v421 = vmul.f32 %v392, %v407
        %v422 = vmul.f32 %v397, %v407
        %v423 = vmul.f32 %v402, %v407
        %v425 = vlaneseq
        %v426 = vshrl.u32 %v425, 7
        %v427 = vsub.s32 0, %v426
        %v428 = vrot.slane %v323, %v427
        %v430 = vadd.f32 %v428, %v408
        %v431 = vadd.f32 %v428, %v409
        %v432 = vadd.f32 %v428, %v410
        %v433 = vadd.f32 %v428, %v411
        %v434 = vadd.f32 %v428, %v412
        %v435 = vadd.f32 %v428, %v413
        %v436 = vadd.f32 %v428, %v414
        %v437 = vadd.f32 %v428, %v415
        %v438 = vadd.f32 %v428, %v416
        %v439 = vadd.f32 %v428, %v417
        %v440 = vadd.f32 %v428, %v418
        %v441 = vadd.f32 %v428, %v419
        %v442 = vadd.f32 %v428, %v420
        %v443 = vadd.f32 %v428, %v421
        %v444 = vadd.f32 %v428, %v422
        %v445 = vadd.f32 %v428, %v423
        %446 = vset.pattern.permute.xlu0 1
        %447 = vperm.xlu0 %446, %v306
        %v448 = vpop.permute.xlu0 %447
        %450 = vset.pattern.permute.xlu0 1
        %451 = vperm.xlu0 %450, %v307
        %v452 = vpop.permute.xlu0 %451
        %454 = vset.pattern.permute.xlu0 1
        %455 = vperm.xlu0 %454, %v308
        %v456 = vpop.permute.xlu0 %455
        %458 = vset.pattern.permute.xlu0 1
        %459 = vperm.xlu0 %458, %v309
        %v460 = vpop.permute.xlu0 %459
        %462 = vset.pattern.permute.xlu0 1
        %463 = vperm.xlu0 %462, %v310
        %v464 = vpop.permute.xlu0 %463
        %466 = vset.pattern.permute.xlu0 1
        %467 = vperm.xlu0 %466, %v311
        %v468 = vpop.permute.xlu0 %467
        %470 = vset.pattern.permute.xlu0 1
        %471 = vperm.xlu0 %470, %v312
        %v472 = vpop.permute.xlu0 %471
        %474 = vset.pattern.permute.xlu0 1
        %475 = vperm.xlu0 %474, %v313
        %v476 = vpop.permute.xlu0 %475
        %478 = vset.pattern.permute.xlu0 1
        %479 = vperm.xlu0 %478, %v314
        %v480 = vpop.permute.xlu0 %479
        %482 = vset.pattern.permute.xlu0 1
        %483 = vperm.xlu0 %482, %v315
        %v484 = vpop.permute.xlu0 %483
        %486 = vset.pattern.permute.xlu0 1
        %487 = vperm.xlu0 %486, %v316
        %v488 = vpop.permute.xlu0 %487
        %490 = vset.pattern.permute.xlu0 1
        %491 = vperm.xlu0 %490, %v317
        %v492 = vpop.permute.xlu0 %491
        %494 = vset.pattern.permute.xlu0 1
        %495 = vperm.xlu0 %494, %v318
        %v496 = vpop.permute.xlu0 %495
        %498 = vset.pattern.permute.xlu0 1
        %499 = vperm.xlu0 %498, %v319
        %v500 = vpop.permute.xlu0 %499
        %502 = vset.pattern.permute.xlu0 1
        %503 = vperm.xlu0 %502, %v320
        %v504 = vpop.permute.xlu0 %503
        %506 = vset.pattern.permute.xlu0 1
        %507 = vperm.xlu0 %506, %v321
        %v508 = vpop.permute.xlu0 %507
        %v510 = vlaneseq
        %v511 = vshrl.u32 %v510, 7
        %v512 = vsub.s32 1, %v511
        %v513 = vrot.slane %v322, %v512
        %v514 = vmul.f32 %v448, %v513
        %v515 = vmul.f32 %v452, %v513
        %v516 = vmul.f32 %v456, %v513
        %v517 = vmul.f32 %v460, %v513
        %v518 = vmul.f32 %v464, %v513
        %v519 = vmul.f32 %v468, %v513
        %v520 = vmul.f32 %v472, %v513
        %v521 = vmul.f32 %v476, %v513
        %v522 = vmul.f32 %v480, %v513
        %v523 = vmul.f32 %v484, %v513
        %v524 = vmul.f32 %v488, %v513
        %v525 = vmul.f32 %v492, %v513
        %v526 = vmul.f32 %v496, %v513
        %v527 = vmul.f32 %v500, %v513
        %v528 = vmul.f32 %v504, %v513
        %v529 = vmul.f32 %v508, %v513
        %v530 = vadd.f32 %v430, %v514
        %v531 = vadd.f32 %v431, %v515
        %v532 = vadd.f32 %v432, %v516
        %v533 = vadd.f32 %v433, %v517
        %v534 = vadd.f32 %v434, %v518
        %v535 = vadd.f32 %v435, %v519
        %v536 = vadd.f32 %v436, %v520
        %v537 = vadd.f32 %v437, %v521
        %v538 = vadd.f32 %v438, %v522
        %v539 = vadd.f32 %v439, %v523
        %v540 = vadd.f32 %v440, %v524
        %v541 = vadd.f32 %v441, %v525
        %v542 = vadd.f32 %v442, %v526
        %v543 = vadd.f32 %v443, %v527
        %v544 = vadd.f32 %v444, %v528
        %v545 = vadd.f32 %v445, %v529
        %546 = vset.pattern.permute.xlu0 2
        %547 = vperm.xlu0 %546, %v306
        %v548 = vpop.permute.xlu0 %547
        %550 = vset.pattern.permute.xlu0 2
        %551 = vperm.xlu0 %550, %v307
        %v552 = vpop.permute.xlu0 %551
        %554 = vset.pattern.permute.xlu0 2
        %555 = vperm.xlu0 %554, %v308
        %v556 = vpop.permute.xlu0 %555
        %558 = vset.pattern.permute.xlu0 2
        %559 = vperm.xlu0 %558, %v309
        %v560 = vpop.permute.xlu0 %559
        %562 = vset.pattern.permute.xlu0 2
        %563 = vperm.xlu0 %562, %v310
        %v564 = vpop.permute.xlu0 %563
        %566 = vset.pattern.permute.xlu0 2
        %567 = vperm.xlu0 %566, %v311
        %v568 = vpop.permute.xlu0 %567
        %570 = vset.pattern.permute.xlu0 2
        %571 = vperm.xlu0 %570, %v312
        %v572 = vpop.permute.xlu0 %571
        %574 = vset.pattern.permute.xlu0 2
        %575 = vperm.xlu0 %574, %v313
        %v576 = vpop.permute.xlu0 %575
        %578 = vset.pattern.permute.xlu0 2
        %579 = vperm.xlu0 %578, %v314
        %v580 = vpop.permute.xlu0 %579
        %582 = vset.pattern.permute.xlu0 2
        %583 = vperm.xlu0 %582, %v315
        %v584 = vpop.permute.xlu0 %583
        %586 = vset.pattern.permute.xlu0 2
        %587 = vperm.xlu0 %586, %v316
        %v588 = vpop.permute.xlu0 %587
        %590 = vset.pattern.permute.xlu0 2
        %591 = vperm.xlu0 %590, %v317
        %v592 = vpop.permute.xlu0 %591
        %594 = vset.pattern.permute.xlu0 2
        %595 = vperm.xlu0 %594, %v318
        %v596 = vpop.permute.xlu0 %595
        %598 = vset.pattern.permute.xlu0 2
        %599 = vperm.xlu0 %598, %v319
        %v600 = vpop.permute.xlu0 %599
        %602 = vset.pattern.permute.xlu0 2
        %603 = vperm.xlu0 %602, %v320
        %v604 = vpop.permute.xlu0 %603
        %606 = vset.pattern.permute.xlu0 2
        %607 = vperm.xlu0 %606, %v321
        %v608 = vpop.permute.xlu0 %607
        %v610 = vlaneseq
        %v611 = vshrl.u32 %v610, 7
        %v612 = vsub.s32 2, %v611
        %v613 = vrot.slane %v322, %v612
        %v614 = vmul.f32 %v548, %v613
        %v615 = vmul.f32 %v552, %v613
        %v616 = vmul.f32 %v556, %v613
        %v617 = vmul.f32 %v560, %v613
        %v618 = vmul.f32 %v564, %v613
        %v619 = vmul.f32 %v568, %v613
        %v620 = vmul.f32 %v572, %v613
        %v621 = vmul.f32 %v576, %v613
        %v622 = vmul.f32 %v580, %v613
        %v623 = vmul.f32 %v584, %v613
        %v624 = vmul.f32 %v588, %v613
        %v625 = vmul.f32 %v592, %v613
        %v626 = vmul.f32 %v596, %v613
        %v627 = vmul.f32 %v600, %v613
        %v628 = vmul.f32 %v604, %v613
        %v629 = vmul.f32 %v608, %v613
        %v630 = vadd.f32 %v530, %v614
        %v631 = vadd.f32 %v531, %v615
        %v632 = vadd.f32 %v532, %v616
        %v633 = vadd.f32 %v533, %v617
        %v634 = vadd.f32 %v534, %v618
        %v635 = vadd.f32 %v535, %v619
        %v636 = vadd.f32 %v536, %v620
        %v637 = vadd.f32 %v537, %v621
        %v638 = vadd.f32 %v538, %v622
        %v639 = vadd.f32 %v539, %v623
        %v640 = vadd.f32 %v540, %v624
        %v641 = vadd.f32 %v541, %v625
        %v642 = vadd.f32 %v542, %v626
        %v643 = vadd.f32 %v543, %v627
        %v644 = vadd.f32 %v544, %v628
        %v645 = vadd.f32 %v545, %v629
        %v646 = vmax.f32 %v630, 0.0
        %v647 = vmax.f32 %v631, 0.0
        %v648 = vmax.f32 %v632, 0.0
        %v649 = vmax.f32 %v633, 0.0
        %v650 = vmax.f32 %v634, 0.0
        %v651 = vmax.f32 %v635, 0.0
        %v652 = vmax.f32 %v636, 0.0
        %v653 = vmax.f32 %v637, 0.0
        %v654 = vmax.f32 %v638, 0.0
        %v655 = vmax.f32 %v639, 0.0
        %v656 = vmax.f32 %v640, 0.0
        %v657 = vmax.f32 %v641, 0.0
        %v658 = vmax.f32 %v642, 0.0
        %v659 = vmax.f32 %v643, 0.0
        %v660 = vmax.f32 %v644, 0.0
        %v661 = vmax.f32 %v645, 0.0
        %v662 = vpack.c.bf16 %v647, %v646
        %v663 = vpack.c.bf16 %v649, %v648
        %v664 = vpack.c.bf16 %v651, %v650
        %v665 = vpack.c.bf16 %v653, %v652
        %v666 = vpack.c.bf16 %v655, %v654
        %v667 = vpack.c.bf16 %v657, %v656
        %v668 = vpack.c.bf16 %v659, %v658
        %v669 = vpack.c.bf16 %v661, %v660
        %v670 = vld [vmem:[%s3] sm:$0xf]
        %v671 = vld [vmem:[%s3 + $0x4] sm:$0xf]
        %v672 = vld [vmem:[%s3 + $0x8] sm:$0xf]
        %v673 = vld [vmem:[%s3 + $0xc] sm:$0xf]
        %v674 = vld [vmem:[%s3 + $0x10] sm:$0xf]
        %v675 = vld [vmem:[%s3 + $0x14] sm:$0xf]
        %v676 = vld [vmem:[%s3 + $0x18] sm:$0xf]
        %v677 = vld [vmem:[%s3 + $0x1c] sm:$0xf]
        %v678 = vld [vmem:[#allocation2] sm:$0x1]
        %v680 = vlaneseq
        %v681 = vshrl.u32 %v680, 7
        %v682 = vsub.s32 0, %v681
        %v683 = vrot.slane %v678, %v682
        %v693 = vunpack.c.l.b16 %v670
        %v694 = vunpack.c.l.b16 %v671
        %v695 = vunpack.c.l.b16 %v672
        %v696 = vunpack.c.l.b16 %v673
        %v697 = vunpack.c.l.b16 %v674
        %v698 = vunpack.c.l.b16 %v675
        %v699 = vunpack.c.l.b16 %v676
        %v700 = vunpack.c.l.b16 %v677
        %v701 = vpack.c.b16 %v694, %v693
        %v702 = vpack.c.b16 %v696, %v695
        %v703 = vpack.c.b16 %v698, %v697
        %v704 = vpack.c.b16 %v700, %v699
        %vm709 = vcmask 523264
        %v711 = vsel %vm709, %v662, 0
        %v714 = vsel %vm709, %v663, 0
        %v717 = vsel %vm709, %v664, 0
        %v720 = vsel %vm709, %v665, 0
        %v723 = vsel %vm709, %v666, 0
        %v726 = vsel %vm709, %v667, 0
        %v729 = vsel %vm709, %v668, 0
        %v732 = vsel %vm709, %v669, 0
        %734 = vmatprep.subr.bf16.mxu0 0
        %735 = vmatpush1.bf16.msra.mxu0 %v701
        %736 = vmatprep.subr.bf16.mxu0 0
        %737 = vmatpush1.bf16.msra.mxu0 %v702
        %738 = vmatprep.subr.bf16.mxu0 0
        %739 = vmatpush1.bf16.msra.mxu0 %v703
        %740 = vmatprep.subr.bf16.mxu0 0
        %741 = vmatpush1.bf16.msra.mxu0 %v704
        %742 = vmatprep.subr.bf16.mxu0 0
        %743 = vmatpush1.bf16.msra.mxu0 0
        %744 = vmatprep.subr.bf16.mxu0 0
        %745 = vmatpush1.bf16.msra.mxu0 0
        %746 = vmatprep.subr.bf16.mxu0 0
        %747 = vmatpush1.bf16.msra.mxu0 0
        %748 = vmatprep.subr.bf16.mxu0 0
        %749 = vmatpush1.bf16.msra.mxu0 0
        %750 = vmatprep.subr.bf16.mxu0 0
        %751 = vmatpush1.bf16.msra.mxu0 0
        %752 = vmatprep.subr.bf16.mxu0 0
        %753 = vmatpush1.bf16.msra.mxu0 0
        %754 = vmatprep.subr.bf16.mxu0 0
        %755 = vmatpush1.bf16.msra.mxu0 0
        %756 = vmatprep.subr.bf16.mxu0 0
        %757 = vmatpush1.bf16.msra.mxu0 0
        %758 = vmatprep.subr.bf16.mxu0 0
        %759 = vmatpush1.bf16.msra.mxu0 0
        %760 = vmatprep.subr.bf16.mxu0 0
        %761 = vmatpush1.bf16.msra.mxu0 0
        %762 = vmatprep.subr.bf16.mxu0 0
        %763 = vmatpush1.bf16.msra.mxu0 0
        %764 = vmatprep.subr.bf16.mxu0 0
        %765 = vmatpush1.bf16.msra.mxu0 0
        %766 = vmatprep.mubr.bf16.mxu0 0
        %767 = vmatmul.mubr.bf16.gmra.mrb[0].mxu0 %v711
        %v768 = vpop.f32.mrb[0].mxu0
        %v769 = vadd.f32 %v683, %v768
        %v770 = vpop.f32.mrb[0].mxu0
        %v771 = vpop.f32.mrb[0].mxu0
        %v772 = vadd.f32 %v683, %v771
        %v773 = vpop.f32.mrb[0].mxu0
        %774 = vmatprep.mubr.bf16.mxu0 0
        %775 = vmatmul.mubr.bf16.gmra.mrb[0].mxu0 %v714
        %v776 = vpop.f32.mrb[0].mxu0
        %v777 = vadd.f32 %v683, %v776
        %v778 = vpop.f32.mrb[0].mxu0
        %v779 = vpop.f32.mrb[0].mxu0
        %v780 = vadd.f32 %v683, %v779
        %v781 = vpop.f32.mrb[0].mxu0
        %782 = vmatprep.mubr.bf16.mxu0 0
        %783 = vmatmul.mubr.bf16.gmra.mrb[0].mxu0 %v717
        %v784 = vpop.f32.mrb[0].mxu0
        %v785 = vadd.f32 %v683, %v784
        %v786 = vpop.f32.mrb[0].mxu0
        %v787 = vpop.f32.mrb[0].mxu0
        %v788 = vadd.f32 %v683, %v787
        %v789 = vpop.f32.mrb[0].mxu0
        %790 = vmatprep.mubr.bf16.mxu0 0
        %791 = vmatmul.mubr.bf16.gmra.mrb[0].mxu0 %v720
        %v792 = vpop.f32.mrb[0].mxu0
        %v793 = vadd.f32 %v683, %v792
        %v794 = vpop.f32.mrb[0].mxu0
        %v795 = vpop.f32.mrb[0].mxu0
        %v796 = vadd.f32 %v683, %v795
        %v797 = vpop.f32.mrb[0].mxu0
        %798 = vmatprep.mubr.bf16.mxu0 0
        %799 = vmatmul.mubr.bf16.gmra.mrb[0].mxu0 %v723
        %v800 = vpop.f32.mrb[0].mxu0
        %v801 = vadd.f32 %v683, %v800
        %v802 = vpop.f32.mrb[0].mxu0
        %v803 = vpop.f32.mrb[0].mxu0
        %v804 = vadd.f32 %v683, %v803
        %v805 = vpop.f32.mrb[0].mxu0
        %806 = vmatprep.mubr.bf16.mxu0 0
        %807 = vmatmul.mubr.bf16.gmra.mrb[0].mxu0 %v726
        %v808 = vpop.f32.mrb[0].mxu0
        %v809 = vadd.f32 %v683, %v808
        %v810 = vpop.f32.mrb[0].mxu0
        %v811 = vpop.f32.mrb[0].mxu0
        %v812 = vadd.f32 %v683, %v811
        %v813 = vpop.f32.mrb[0].mxu0
        %814 = vmatprep.mubr.bf16.mxu0 0
        %815 = vmatmul.mubr.bf16.gmra.mrb[0].mxu0 %v729
        %v816 = vpop.f32.mrb[0].mxu0
        %v817 = vadd.f32 %v683, %v816
        %v818 = vpop.f32.mrb[0].mxu0
        %v819 = vpop.f32.mrb[0].mxu0
        %v820 = vadd.f32 %v683, %v819
        %v821 = vpop.f32.mrb[0].mxu0
        %822 = vmatprep.mubr.bf16.mxu0 0
        %823 = vmatmul.mubr.bf16.gmra.mrb[0].mxu0 %v732
        %v824 = vpop.f32.mrb[0].mxu0
        %v825 = vadd.f32 %v683, %v824
        %v826 = vpop.f32.mrb[0].mxu0
        %v827 = vpop.f32.mrb[0].mxu0
        %v828 = vadd.f32 %v683, %v827
        %v829 = vpop.f32.mrb[0].mxu0
        %830 = vdwg.mxu0
        %v831 = vmax.f32 %v769, 0.0
        %v832 = vmax.f32 %v772, 0.0
        %v833 = vmax.f32 %v777, 0.0
        %v834 = vmax.f32 %v780, 0.0
        %v835 = vmax.f32 %v785, 0.0
        %v836 = vmax.f32 %v788, 0.0
        %v837 = vmax.f32 %v793, 0.0
        %v838 = vmax.f32 %v796, 0.0
        %v839 = vmax.f32 %v801, 0.0
        %v840 = vmax.f32 %v804, 0.0
        %v841 = vmax.f32 %v809, 0.0
        %v842 = vmax.f32 %v812, 0.0
        %v843 = vmax.f32 %v817, 0.0
        %v844 = vmax.f32 %v820, 0.0
        %v845 = vmax.f32 %v825, 0.0
        %v846 = vmax.f32 %v828, 0.0
        %v847 = vpack.c.bf16 %v832, %v831
        %v848 = vpack.c.bf16 %v834, %v833
        %v849 = vpack.c.bf16 %v836, %v835
        %v850 = vpack.c.bf16 %v838, %v837
        %v851 = vpack.c.bf16 %v840, %v839
        %v852 = vpack.c.bf16 %v842, %v841
        %v853 = vpack.c.bf16 %v844, %v843
        %v854 = vpack.c.bf16 %v846, %v845
        %v855 = vld [vmem:[%s5] sm:$0xf]
        %v856 = vld [vmem:[%s5 + $0x4] sm:$0xf]
        %v857 = vld [vmem:[%s5 + $0x8] sm:$0xf]
        %v858 = vld [vmem:[%s5 + $0xc] sm:$0xf]
        %v859 = vld [vmem:[%s5 + $0x10] sm:$0xf]
        %v860 = vld [vmem:[%s5 + $0x14] sm:$0xf]
        %v861 = vld [vmem:[%s5 + $0x18] sm:$0xf]
        %v862 = vld [vmem:[%s5 + $0x1c] sm:$0xf]
        %v863 = vld [vmem:[#allocation4] sm:$0x1]
        %v865 = vlaneseq
        %v866 = vshrl.u32 %v865, 7
        %v867 = vsub.s32 0, %v866
        %v868 = vrot.slane %v863, %v867
        %v878 = vunpack.c.l.b16 %v855
        %v879 = vunpack.c.l.b16 %v856
        %v880 = vunpack.c.l.b16 %v857
        %v881 = vunpack.c.l.b16 %v858
        %v882 = vunpack.c.l.b16 %v859
        %v883 = vunpack.c.l.b16 %v860
        %v884 = vunpack.c.l.b16 %v861
        %v885 = vunpack.c.l.b16 %v862
        %v886 = vpack.c.b16 %v879, %v878
        %v887 = vpack.c.b16 %v881, %v880
        %v888 = vpack.c.b16 %v883, %v882
        %v889 = vpack.c.b16 %v885, %v884
        %v895 = vsel %vm709, %v847, 0
        %v898 = vsel %vm709, %v848, 0
        %v901 = vsel %vm709, %v849, 0
        %v904 = vsel %vm709, %v850, 0
        %v907 = vsel %vm709, %v851, 0
        %v910 = vsel %vm709, %v852, 0
        %v913 = vsel %vm709, %v853, 0
        %v916 = vsel %vm709, %v854, 0
        %918 = vmatprep.subr.bf16.mxu0 0
        %919 = vmatpush1.bf16.msra.mxu0 %v886
        %920 = vmatprep.subr.bf16.mxu0 0
        %921 = vmatpush1.bf16.msra.mxu0 %v887
        %922 = vmatprep.subr.bf16.mxu0 0
        %923 = vmatpush1.bf16.msra.mxu0 %v888
        %924 = vmatprep.subr.bf16.mxu0 0
        %925 = vmatpush1.bf16.msra.mxu0 %v889
        %926 = vmatprep.subr.bf16.mxu0 0
        %927 = vmatpush1.bf16.msra.mxu0 0
        %928 = vmatprep.subr.bf16.mxu0 0
        %929 = vmatpush1.bf16.msra.mxu0 0
        %930 = vmatprep.subr.bf16.mxu0 0
        %931 = vmatpush1.bf16.msra.mxu0 0
        %932 = vmatprep.subr.bf16.mxu0 0
        %933 = vmatpush1.bf16.msra.mxu0 0
        %934 = vmatprep.subr.bf16.mxu0 0
        %935 = vmatpush1.bf16.msra.mxu0 0
        %936 = vmatprep.subr.bf16.mxu0 0
        %937 = vmatpush1.bf16.msra.mxu0 0
        %938 = vmatprep.subr.bf16.mxu0 0
        %939 = vmatpush1.bf16.msra.mxu0 0
        %940 = vmatprep.subr.bf16.mxu0 0
        %941 = vmatpush1.bf16.msra.mxu0 0
        %942 = vmatprep.subr.bf16.mxu0 0
        %943 = vmatpush1.bf16.msra.mxu0 0
        %944 = vmatprep.subr.bf16.mxu0 0
        %945 = vmatpush1.bf16.msra.mxu0 0
        %946 = vmatprep.subr.bf16.mxu0 0
        %947 = vmatpush1.bf16.msra.mxu0 0
        %948 = vmatprep.subr.bf16.mxu0 0
        %949 = vmatpush1.bf16.msra.mxu0 0
        %950 = vmatprep.mubr.bf16.mxu0 0
        %951 = vmatmul.mubr.bf16.gmra.mrb[0].mxu0 %v895
        %v952 = vpop.f32.mrb[0].mxu0
        %v953 = vadd.f32 %v868, %v952
        %v954 = vpop.f32.mrb[0].mxu0
        %v955 = vpop.f32.mrb[0].mxu0
        %v956 = vadd.f32 %v868, %v955
        %v957 = vpop.f32.mrb[0].mxu0
        %958 = vmatprep.mubr.bf16.mxu0 0
        %959 = vmatmul.mubr.bf16.gmra.mrb[0].mxu0 %v898
        %v960 = vpop.f32.mrb[0].mxu0
        %v961 = vadd.f32 %v868, %v960
        %v962 = vpop.f32.mrb[0].mxu0
        %v963 = vpop.f32.mrb[0].mxu0
        %v964 = vadd.f32 %v868, %v963
        %v965 = vpop.f32.mrb[0].mxu0
        %966 = vmatprep.mubr.bf16.mxu0 0
        %967 = vmatmul.mubr.bf16.gmra.mrb[0].mxu0 %v901
        %v968 = vpop.f32.mrb[0].mxu0
        %v969 = vadd.f32 %v868, %v968
        %v970 = vpop.f32.mrb[0].mxu0
        %v971 = vpop.f32.mrb[0].mxu0
        %v972 = vadd.f32 %v868, %v971
        %v973 = vpop.f32.mrb[0].mxu0
        %974 = vmatprep.mubr.bf16.mxu0 0
        %975 = vmatmul.mubr.bf16.gmra.mrb[0].mxu0 %v904
        %v976 = vpop.f32.mrb[0].mxu0
        %v977 = vadd.f32 %v868, %v976
        %v978 = vpop.f32.mrb[0].mxu0
        %v979 = vpop.f32.mrb[0].mxu0
        %v980 = vadd.f32 %v868, %v979
        %v981 = vpop.f32.mrb[0].mxu0
        %982 = vmatprep.mubr.bf16.mxu0 0
        %983 = vmatmul.mubr.bf16.gmra.mrb[0].mxu0 %v907
        %v984 = vpop.f32.mrb[0].mxu0
        %v985 = vadd.f32 %v868, %v984
        %v986 = vpop.f32.mrb[0].mxu0
        %v987 = vpop.f32.mrb[0].mxu0
        %v988 = vadd.f32 %v868, %v987
        %v989 = vpop.f32.mrb[0].mxu0
        %990 = vmatprep.mubr.bf16.mxu0 0
        %991 = vmatmul.mubr.bf16.gmra.mrb[0].mxu0 %v910
        %v992 = vpop.f32.mrb[0].mxu0
        %v993 = vadd.f32 %v868, %v992
        %v994 = vpop.f32.mrb[0].mxu0
        %v995 = vpop.f32.mrb[0].mxu0
        %v996 = vadd.f32 %v868, %v995
        %v997 = vpop.f32.mrb[0].mxu0
        %998 = vmatprep.mubr.bf16.mxu0 0
        %999 = vmatmul.mubr.bf16.gmra.mrb[0].mxu0 %v913
        %v1000 = vpop.f32.mrb[0].mxu0
        %v1001 = vadd.f32 %v868, %v1000
        %v1002 = vpop.f32.mrb[0].mxu0
        %v1003 = vpop.f32.mrb[0].mxu0
        %v1004 = vadd.f32 %v868, %v1003
        %v1005 = vpop.f32.mrb[0].mxu0
        %1006 = vmatprep.mubr.bf16.mxu0 0
        %1007 = vmatmul.mubr.bf16.gmra.mrb[0].mxu0 %v916
        %v1008 = vpop.f32.mrb[0].mxu0
        %v1009 = vadd.f32 %v868, %v1008
        %v1010 = vpop.f32.mrb[0].mxu0
        %v1011 = vpop.f32.mrb[0].mxu0
        %v1012 = vadd.f32 %v868, %v1011
        %v1013 = vpop.f32.mrb[0].mxu0
        %1014 = vdwg.mxu0
        %v1015 = vmax.f32 %v953, 0.0
        %v1016 = vmax.f32 %v956, 0.0
        %v1017 = vmax.f32 %v961, 0.0
        %v1018 = vmax.f32 %v964, 0.0
        %v1019 = vmax.f32 %v969, 0.0
        %v1020 = vmax.f32 %v972, 0.0
        %v1021 = vmax.f32 %v977, 0.0
        %v1022 = vmax.f32 %v980, 0.0
        %v1023 = vmax.f32 %v985, 0.0
        %v1024 = vmax.f32 %v988, 0.0
        %v1025 = vmax.f32 %v993, 0.0
        %v1026 = vmax.f32 %v996, 0.0
        %v1027 = vmax.f32 %v1001, 0.0
        %v1028 = vmax.f32 %v1004, 0.0
        %v1029 = vmax.f32 %v1009, 0.0
        %v1030 = vmax.f32 %v1012, 0.0
        %v1031 = vmax.f32 %v1015, %v1019
        %v1032 = vmax.f32 %v1016, %v1020
        %v1033 = vmax.f32 %v1017, %v1021
        %v1034 = vmax.f32 %v1018, %v1022
        %v1035 = vmax.f32 %v1031, %v1023
        %v1036 = vmax.f32 %v1032, %v1024
        %v1037 = vmax.f32 %v1033, %v1025
        %v1038 = vmax.f32 %v1034, %v1026
        %v1039 = vmax.f32 %v1035, %v1027
        %v1040 = vmax.f32 %v1036, %v1028
        %v1041 = vmax.f32 %v1037, %v1029
        %v1042 = vmax.f32 %v1038, %v1030
        %v1043 = vmax.f32 %v1039, %v1040
        %v1044 = vmax.f32 %v1041, %v1042
        %v1045 = vmax.f32 %v1043, %v1044
        %v1046 = vrot.slane %v1045, 4
        %v1047 = vmax.f32 %v1045, %v1046
        %v1048 = vrot.slane %v1047, 2
        %v1049 = vmax.f32 %v1047, %v1048
        %v1050 = vrot.slane %v1049, 1
        %v1051 = vmax.f32 %v1049, %v1050
        %1052 = vst [vmem:[%s304] sm:$0xff] %v1051
        %p1053 = scmp.lt.s32.totalorder %s20, 1
        %s1054 = scalar_select %p1053, %s20, 1
        %s1055 = smul.addr %s1054, 8
        %s1056 = scalar_lea.vmem %s7, %s1055
        // Predicated region
        $region57: #{pointnet_feature_extractor.3} parent=47 // pred_check
          %p1057 = pneg %p190
        $region58: #{pointnet_feature_extractor.3} parent=47 // pred_check_branch
          %1059 = sbr.rel (%p1057) target = $region60
        $region59: #{pointnet_feature_extractor.3} parent=47 // pred_region
          _
        $region60: #{pointnet_feature_extractor.3} parent=47 // pred_fallthru
          _
      $region48: #{pointnet_feature_extractor.3} parent=5 // pred_fallthru
        _
      %p1060 = scmp.le.s32.totalorder 2, %s15
      // Predicated region
      $region61: #{pointnet_feature_extractor.3} parent=5 // pred_check
        %p1061 = pneg %p1060
      $region62: #{pointnet_feature_extractor.3} parent=5 // pred_check_branch
        %1063 = sbr.rel (%p1061) target = $region64
      $region63: #{pointnet_feature_extractor.3} parent=5 // pred_region
        %s1064 = ssub.s32 %s15, 2
        // Predicated region
        $region65: #{pointnet_feature_extractor.3} parent=63 // pred_check
          %p1065 = pneg %p196
        $region66: #{pointnet_feature_extractor.3} parent=63 // pred_check_branch
          %1067 = sbr.rel (%p1065) target = $region68
        $region67: #{pointnet_feature_extractor.3} parent=63 // pred_region
          %p1068 = scmp.lt.s32.totalorder %s21, 1
          %s1069 = scalar_select %p1068, %s21, 1
          %s1070 = smul.addr %s1069, 8
          %s1071 = scalar_lea.vmem %s7, %s1070
        $region68: #{pointnet_feature_extractor.3} parent=63 // pred_fallthru
          _
      $region64: #{pointnet_feature_extractor.3} parent=5 // pred_fallthru
        _
    $region6: #{pointnet_feature_extractor.3} parent=1 // loop_footer
      %s19 = sadd.s32 1, %s15
    $region7: #{pointnet_feature_extractor.3} parent=1 // loop_footer_branch
      %14 = sbr.rel target = $region3
    $region8: #{pointnet_feature_extractor.3} parent=1 // loop_exit
      _
    %1072 = vsyncpa [#allocation3], 1
    %s1073 = scalar_lea.sflag [#allocation3], 1
    %1074 = vsyncpa %s1073, 1
    %1075 = vsyncpa [#allocation5], 1

// kernel: pointnet_feature_extractor.4
$region0: #{pointnet_feature_extractor.4}
  #allocation0 [shape = 'u32[]', space=smem, size = 0x4, offset = 0x4, fixed_abs, tag = 'smem constant byte address 0x4 - core index']
  #allocation1 [shape = 'u32[144,128]{1,0:T(1,128)}', space=vmem, size = 0x12000, scoped, tag = 'internal scratch']
  %s0 = inlined_call_operand.vmem [shape: f32[16,128], index: 0, kind: input, shape index: {}]
  %s1 = inlined_call_operand.hbm [shape: f32[128,512], index: 1, kind: input, shape index: {}]
  %s2 = inlined_call_operand.hbm [shape: f32[1,512], index: 2, kind: input, shape index: {}]
  %s3 = inlined_call_operand.vmem [shape: f32[512,256], index: 3, kind: input, shape index: {}]
  %s4 = inlined_call_operand.hbm [shape: f32[1,256], index: 4, kind: input, shape index: {}]
  %s5 = inlined_call_operand.hbm [shape: f32[256,128], index: 5, kind: input, shape index: {}]
  %s6 = inlined_call_operand.hbm [shape: f32[1,128], index: 6, kind: input, shape index: {}]
  %s7 = inlined_call_operand.vmem [shape: f32[128,256], index: 7, kind: input, shape index: {}]
  %s8 = inlined_call_operand.hbm [shape: f32[1,256], index: 8, kind: input, shape index: {}]
  %s9 = inlined_call_operand.vmem [shape: f32[8,256], index: 9, kind: output, shape index: {}]
  %s10 = sld [smem:[#allocation0]]
  $region70: #{pointnet_feature_extractor.4} parent=0
    _
  %s12 = ssub.s32 1, %s10
  %s13 = scalar_select 0, %s12, %s10
  $region1: #{pointnet_feature_extractor.4} parent=0
    #allocation2 [shape = 'u8[262144]{0}', space=vmem, size = 0x40000, scoped, tag = 'input window, operand 1, single buffered']
    #allocation3 [shape = 's32[1]{0}', space=sflag, size = 0x4, scoped, tag = 'scoped memory for pointnet_feature_extractor.4']
    #allocation4 [shape = 'u8[2048]{0}', space=vmem, size = 0x800, scoped, tag = 'input window, operand 2, single buffered']
    #allocation5 [shape = 's32[1]{0}', space=sflag, size = 0x4, scoped, tag = 'scoped memory for pointnet_feature_extractor.4']
    #allocation6 [shape = 'u8[1024]{0}', space=vmem, size = 0x400, scoped, tag = 'input window, operand 4, single buffered']
    #allocation7 [shape = 'u8[131072]{0}', space=vmem, size = 0x20000, scoped, tag = 'input window, operand 5, single buffered']
    #allocation8 [shape = 's32[1]{0}', space=sflag, size = 0x4, scoped, tag = 'scoped memory for pointnet_feature_extractor.4']
    #allocation9 [shape = 'u8[512]{0}', space=vmem, size = 0x400, scoped, tag = 'input window, operand 6, single buffered']
    #allocation10 [shape = 'u8[1024]{0}', space=vmem, size = 0x400, scoped, tag = 'input window, operand 8, single buffered']
    #allocation11 [shape = 's32[1]{0}', space=sflag, size = 0x4, scoped, tag = 'scoped memory for pointnet_feature_extractor.4']
    %14 = vsyncpa [#allocation3], 0
    %15 = vsyncpa [#allocation5], 0
    %16 = vsyncpa [#allocation8], 0
    %17 = vsyncpa [#allocation11], 0
    // Predicated region
    $region2: #{pointnet_feature_extractor.4} parent=1 // pred_check
      _
    $region3: #{pointnet_feature_extractor.4} parent=1 // pred_check_branch
      %19 = sbr.rel (0) target = $region5
    $region4: #{pointnet_feature_extractor.4} parent=1 // pred_region
      _
    $region5: #{pointnet_feature_extractor.4} parent=1 // pred_fallthru
      _
    // Predicated region
    $region6: #{pointnet_feature_extractor.4} parent=1 // pred_check
      _
    $region7: #{pointnet_feature_extractor.4} parent=1 // pred_check_branch
      %21 = sbr.rel (0) target = $region9
    $region8: #{pointnet_feature_extractor.4} parent=1 // pred_region
      %s23 = ssub.s32 8192, 8192
      %24 = vsyncadd [#allocation3], %s23
      %s25 = sshll.u32 [#allocation2], 4
      %s26 = int_to_ptr.vmem [resolvable:$true] %s25
      %31 = dma.hbm_to_vmem [thread:$0]  %s1, 8192, %s26, [#allocation3], 512, 512, 32
    $region9: #{pointnet_feature_extractor.4} parent=1 // pred_fallthru
      _
    // Predicated region
    $region10: #{pointnet_feature_extractor.4} parent=1 // pred_check
      _
    $region11: #{pointnet_feature_extractor.4} parent=1 // pred_check_branch
      %33 = sbr.rel (0) target = $region13
    $region12: #{pointnet_feature_extractor.4} parent=1 // pred_region
      %s35 = ssub.s32 64, 64
      %36 = vsyncadd [#allocation5], %s35
      %s38 = sshll.u32 [#allocation4], 4
      %s39 = int_to_ptr.vmem [resolvable:$true] %s38
      %41 = dma.hbm_to_vmem [thread:$0]  %s2, 64, %s39, [#allocation5]
    $region13: #{pointnet_feature_extractor.4} parent=1 // pred_fallthru
      _
    // Predicated region
    $region14: #{pointnet_feature_extractor.4} parent=1 // pred_check
      _
    $region15: #{pointnet_feature_extractor.4} parent=1 // pred_check_branch
      %43 = sbr.rel (0) target = $region17
    $region16: #{pointnet_feature_extractor.4} parent=1 // pred_region
      _
    $region17: #{pointnet_feature_extractor.4} parent=1 // pred_fallthru
      _
    // Predicated region
    $region18: #{pointnet_feature_extractor.4} parent=1 // pred_check
      _
    $region19: #{pointnet_feature_extractor.4} parent=1 // pred_check_branch
      %45 = sbr.rel (0) target = $region21
    $region20: #{pointnet_feature_extractor.4} parent=1 // pred_region
      %s47 = ssub.s32 32, 32
      %48 = vsyncadd [#allocation5], %s47
      %s50 = sshll.u32 [#allocation6], 4
      %s51 = int_to_ptr.vmem [resolvable:$true] %s50
      %53 = dma.hbm_to_vmem [thread:$0]  %s4, 32, %s51, [#allocation5]
    $region21: #{pointnet_feature_extractor.4} parent=1 // pred_fallthru
      _
    // Predicated region
    $region22: #{pointnet_feature_extractor.4} parent=1 // pred_check
      _
    $region23: #{pointnet_feature_extractor.4} parent=1 // pred_check_branch
      %55 = sbr.rel (0) target = $region25
    $region24: #{pointnet_feature_extractor.4} parent=1 // pred_region
      %s57 = ssub.s32 4096, 4096
      %58 = vsyncadd [#allocation8], %s57
      %s59 = sshll.u32 [#allocation7], 4
      %s60 = int_to_ptr.vmem [resolvable:$true] %s59
      %65 = dma.hbm_to_vmem [thread:$0]  %s5, 4096, %s60, [#allocation8], 128, 128, 8
    $region25: #{pointnet_feature_extractor.4} parent=1 // pred_fallthru
      _
    // Predicated region
    $region26: #{pointnet_feature_extractor.4} parent=1 // pred_check
      _
    $region27: #{pointnet_feature_extractor.4} parent=1 // pred_check_branch
      %67 = sbr.rel (0) target = $region29
    $region28: #{pointnet_feature_extractor.4} parent=1 // pred_region
      %s69 = ssub.s32 16, 16
      %70 = vsyncadd [#allocation8], %s69
      %s72 = sshll.u32 [#allocation9], 4
      %s73 = int_to_ptr.vmem [resolvable:$true] %s72
      %75 = dma.hbm_to_vmem [thread:$0]  %s6, 16, %s73, [#allocation8]
    $region29: #{pointnet_feature_extractor.4} parent=1 // pred_fallthru
      _
    // Predicated region
    $region30: #{pointnet_feature_extractor.4} parent=1 // pred_check
      _
    $region31: #{pointnet_feature_extractor.4} parent=1 // pred_check_branch
      %77 = sbr.rel (0) target = $region33
    $region32: #{pointnet_feature_extractor.4} parent=1 // pred_region
      _
    $region33: #{pointnet_feature_extractor.4} parent=1 // pred_fallthru
      _
    // Predicated region
    $region34: #{pointnet_feature_extractor.4} parent=1 // pred_check
      _
    $region35: #{pointnet_feature_extractor.4} parent=1 // pred_check_branch
      %79 = sbr.rel (0) target = $region37
    $region36: #{pointnet_feature_extractor.4} parent=1 // pred_region
      %s81 = ssub.s32 32, 32
      %82 = vsyncadd [#allocation11], %s81
      %s84 = sshll.u32 [#allocation10], 4
      %s85 = int_to_ptr.vmem [resolvable:$true] %s84
      %87 = dma.hbm_to_vmem [thread:$0]  %s8, 32, %s85, [#allocation11]
    $region37: #{pointnet_feature_extractor.4} parent=1 // pred_fallthru
      _
    // Predicated region
    $region38: #{pointnet_feature_extractor.4} parent=1 // pred_check
      _
    $region39: #{pointnet_feature_extractor.4} parent=1 // pred_check_branch
      %89 = sbr.rel (0) target = $region41
    $region40: #{pointnet_feature_extractor.4} parent=1 // pred_region
      %90 = dma.done [#allocation3], 8192
    $region41: #{pointnet_feature_extractor.4} parent=1 // pred_fallthru
      _
    // Predicated region
    $region42: #{pointnet_feature_extractor.4} parent=1 // pred_check
      _
    $region43: #{pointnet_feature_extractor.4} parent=1 // pred_check_branch
      %92 = sbr.rel (0) target = $region45
    $region44: #{pointnet_feature_extractor.4} parent=1 // pred_region
      %93 = dma.done [#allocation5], 64
    $region45: #{pointnet_feature_extractor.4} parent=1 // pred_fallthru
      _
    // Predicated region
    $region46: #{pointnet_feature_extractor.4} parent=1 // pred_check
      _
    $region47: #{pointnet_feature_extractor.4} parent=1 // pred_check_branch
      %95 = sbr.rel (0) target = $region49
    $region48: #{pointnet_feature_extractor.4} parent=1 // pred_region
      %96 = dma.done [#allocation5], 32
    $region49: #{pointnet_feature_extractor.4} parent=1 // pred_fallthru
      _
    // Predicated region
    $region50: #{pointnet_feature_extractor.4} parent=1 // pred_check
      _
    $region51: #{pointnet_feature_extractor.4} parent=1 // pred_check_branch
      %98 = sbr.rel (0) target = $region53
    $region52: #{pointnet_feature_extractor.4} parent=1 // pred_region
      %99 = dma.done [#allocation8], 4096
    $region53: #{pointnet_feature_extractor.4} parent=1 // pred_fallthru
      _
    // Predicated region
    $region54: #{pointnet_feature_extractor.4} parent=1 // pred_check
      _
    $region55: #{pointnet_feature_extractor.4} parent=1 // pred_check_branch
      %101 = sbr.rel (0) target = $region57
    $region56: #{pointnet_feature_extractor.4} parent=1 // pred_region
      %102 = dma.done [#allocation8], 16
    $region57: #{pointnet_feature_extractor.4} parent=1 // pred_fallthru
      _
    // Predicated region
    $region58: #{pointnet_feature_extractor.4} parent=1 // pred_check
      _
    $region59: #{pointnet_feature_extractor.4} parent=1 // pred_check_branch
      %104 = sbr.rel (0) target = $region61
    $region60: #{pointnet_feature_extractor.4} parent=1 // pred_region
      %105 = dma.done [#allocation11], 32
    $region61: #{pointnet_feature_extractor.4} parent=1 // pred_fallthru
      _
    %v106 = vld [vmem:[%s0] sm:$0xff]
    %v107 = vld [vmem:[%s0 + $0x8] sm:$0xff]
    %v108 = vmax.f32 %v106, %v107
    %v109 = vrot.slane %v108, 4
    %v110 = vmax.f32 %v108, %v109
    %v111 = vrot.slane %v110, 2
    %v112 = vmax.f32 %v110, %v111
    %v113 = vrot.slane %v112, 1
    %v114 = vmax.f32 %v112, %v113
    %v115 = vld [vmem:[#allocation2] sm:$0xff]
    %v116 = vld [vmem:[#allocation2 + $0x8] sm:$0xff]
    %v117 = vld [vmem:[#allocation2 + $0x10] sm:$0xff]
    %v118 = vld [vmem:[#allocation2 + $0x18] sm:$0xff]
    %v119 = vld [vmem:[#allocation2 + $0x20] sm:$0xff]
    %v120 = vld [vmem:[#allocation2 + $0x28] sm:$0xff]
    %v121 = vld [vmem:[#allocation2 + $0x30] sm:$0xff]
    %v122 = vld [vmem:[#allocation2 + $0x38] sm:$0xff]
    %v123 = vld [vmem:[#allocation2 + $0x40] sm:$0xff]
    %v124 = vld [vmem:[#allocation2 + $0x48] sm:$0xff]
    %v125 = vld [vmem:[#allocation2 + $0x50] sm:$0xff]
    %v126 = vld [vmem:[#allocation2 + $0x58] sm:$0xff]
    %v127 = vld [vmem:[#allocation2 + $0x60] sm:$0xff]
    %v128 = vld [vmem:[#allocation2 + $0x68] sm:$0xff]
    %v129 = vld [vmem:[#allocation2 + $0x70] sm:$0xff]
    %v130 = vld [vmem:[#allocation2 + $0x78] sm:$0xff]
    %v131 = vld [vmem:[#allocation2 + $0x80] sm:$0xff]
    %v132 = vld [vmem:[#allocation2 + $0x88] sm:$0xff]
    %v133 = vld [vmem:[#allocation2 + $0x90] sm:$0xff]
    %v134 = vld [vmem:[#allocation2 + $0x98] sm:$0xff]
    %v135 = vld [vmem:[#allocation2 + $0xa0] sm:$0xff]
    %v136 = vld [vmem:[#allocation2 + $0xa8] sm:$0xff]
    %v137 = vld [vmem:[#allocation2 + $0xb0] sm:$0xff]
    %v138 = vld [vmem:[#allocation2 + $0xb8] sm:$0xff]
    %v139 = vld [vmem:[#allocation2 + $0xc0] sm:$0xff]
    %v140 = vld [vmem:[#allocation2 + $0xc8] sm:$0xff]
    %v141 = vld [vmem:[#allocation2 + $0xd0] sm:$0xff]
    %v142 = vld [vmem:[#allocation2 + $0xd8] sm:$0xff]
    %v143 = vld [vmem:[#allocation2 + $0xe0] sm:$0xff]
    %v144 = vld [vmem:[#allocation2 + $0xe8] sm:$0xff]
    %v145 = vld [vmem:[#allocation2 + $0xf0] sm:$0xff]
    %v146 = vld [vmem:[#allocation2 + $0xf8] sm:$0xff]
    %v147 = vld [vmem:[#allocation2 + $0x100] sm:$0xff]
    %v148 = vld [vmem:[#allocation2 + $0x108] sm:$0xff]
    %v149 = vld [vmem:[#allocation2 + $0x110] sm:$0xff]
    %v150 = vld [vmem:[#allocation2 + $0x118] sm:$0xff]
    %v151 = vld [vmem:[#allocation2 + $0x120] sm:$0xff]
    %v152 = vld [vmem:[#allocation2 + $0x128] sm:$0xff]
    %v153 = vld [vmem:[#allocation2 + $0x130] sm:$0xff]
    %v154 = vld [vmem:[#allocation2 + $0x138] sm:$0xff]
    %v155 = vld [vmem:[#allocation2 + $0x140] sm:$0xff]
    %v156 = vld [vmem:[#allocation2 + $0x148] sm:$0xff]
    %v157 = vld [vmem:[#allocation2 + $0x150] sm:$0xff]
    %v158 = vld [vmem:[#allocation2 + $0x158] sm:$0xff]
    %v159 = vld [vmem:[#allocation2 + $0x160] sm:$0xff]
    %v160 = vld [vmem:[#allocation2 + $0x168] sm:$0xff]
    %v161 = vld [vmem:[#allocation2 + $0x170] sm:$0xff]
    %v162 = vld [vmem:[#allocation2 + $0x178] sm:$0xff]
    %v163 = vld [vmem:[#allocation2 + $0x180] sm:$0xff]
    %v164 = vld [vmem:[#allocation2 + $0x188] sm:$0xff]
    %v165 = vld [vmem:[#allocation2 + $0x190] sm:$0xff]
    %v166 = vld [vmem:[#allocation2 + $0x198] sm:$0xff]
    %v167 = vld [vmem:[#allocation2 + $0x1a0] sm:$0xff]
    %v168 = vld [vmem:[#allocation2 + $0x1a8] sm:$0xff]
    %v169 = vld [vmem:[#allocation2 + $0x1b0] sm:$0xff]
    %v170 = vld [vmem:[#allocation2 + $0x1b8] sm:$0xff]
    %v171 = vld [vmem:[#allocation2 + $0x1c0] sm:$0xff]
    %v172 = vld [vmem:[#allocation2 + $0x1c8] sm:$0xff]
    %v173 = vld [vmem:[#allocation2 + $0x1d0] sm:$0xff]
    %v174 = vld [vmem:[#allocation2 + $0x1d8] sm:$0xff]
    %v175 = vld [vmem:[#allocation2 + $0x1e0] sm:$0xff]
    %v176 = vld [vmem:[#allocation2 + $0x1e8] sm:$0xff]
    %v177 = vld [vmem:[#allocation2 + $0x1f0] sm:$0xff]
    %v178 = vld [vmem:[#allocation2 + $0x1f8] sm:$0xff]
    %v179 = vld [vmem:[#allocation4] sm:$0xf]
    %v181 = vlaneseq
    %v182 = vshrl.u32 %v181, 7
    %v183 = vsub.s32 0, %v182
    %v184 = vrot.slane %v179, %v183
    %v185 = vlaneseq
    %v186 = vshrl.u32 %v185, 7
    %v187 = vsub.s32 1, %v186
    %v188 = vrot.slane %v179, %v187
    %v189 = vlaneseq
    %v190 = vshrl.u32 %v189, 7
    %v191 = vsub.s32 2, %v190
    %v192 = vrot.slane %v179, %v191
    %v193 = vlaneseq
    %v194 = vshrl.u32 %v193, 7
    %v195 = vsub.s32 3, %v194
    %v196 = vrot.slane %v179, %v195
    %201 = vmatprep.subr.mxu0 %v116
    %202 = vmatpush1.msra.mxu0 %v115
    %203 = vmatprep.subr.mxu0 %v120
    %204 = vmatpush1.msra.mxu0 %v119
    %205 = vmatprep.subr.mxu0 %v124
    %206 = vmatpush1.msra.mxu0 %v123
    %207 = vmatprep.subr.mxu0 %v128
    %208 = vmatpush1.msra.mxu0 %v127
    %209 = vmatprep.subr.mxu0 %v132
    %210 = vmatpush1.msra.mxu0 %v131
    %211 = vmatprep.subr.mxu0 %v136
    %212 = vmatpush1.msra.mxu0 %v135
    %213 = vmatprep.subr.mxu0 %v140
    %214 = vmatpush1.msra.mxu0 %v139
    %215 = vmatprep.subr.mxu0 %v144
    %216 = vmatpush1.msra.mxu0 %v143
    %217 = vmatprep.subr.mxu0 %v148
    %218 = vmatpush1.msra.mxu0 %v147
    %219 = vmatprep.subr.mxu0 %v152
    %220 = vmatpush1.msra.mxu0 %v151
    %221 = vmatprep.subr.mxu0 %v156
    %222 = vmatpush1.msra.mxu0 %v155
    %223 = vmatprep.subr.mxu0 %v160
    %224 = vmatpush1.msra.mxu0 %v159
    %225 = vmatprep.subr.mxu0 %v164
    %226 = vmatpush1.msra.mxu0 %v163
    %227 = vmatprep.subr.mxu0 %v168
    %228 = vmatpush1.msra.mxu0 %v167
    %229 = vmatprep.subr.mxu0 %v172
    %230 = vmatpush1.msra.mxu0 %v171
    %231 = vmatprep.subr.mxu0 %v176
    %232 = vmatpush1.msra.mxu0 %v175
    %233 = vmatprep.subr.mxu0 0.0
    %234 = vmatpush1.msra.mxu0 0.0
    %235 = vmatprep.subr.mxu0 0.0
    %236 = vmatpush1.msra.mxu0 0.0
    %237 = vmatprep.subr.mxu0 0.0
    %238 = vmatpush1.msra.mxu0 0.0
    %239 = vmatprep.subr.mxu0 0.0
    %240 = vmatpush1.msra.mxu0 0.0
    %241 = vmatprep.subr.mxu0 0.0
    %242 = vmatpush1.msra.mxu0 0.0
    %243 = vmatprep.subr.mxu0 0.0
    %244 = vmatpush1.msra.mxu0 0.0
    %245 = vmatprep.subr.mxu0 0.0
    %246 = vmatpush1.msra.mxu0 0.0
    %247 = vmatprep.subr.mxu0 0.0
    %248 = vmatpush1.msra.mxu0 0.0
    %249 = vmatprep.subr.mxu0 0.0
    %250 = vmatpush1.msra.mxu0 0.0
    %251 = vmatprep.subr.mxu0 0.0
    %252 = vmatpush1.msra.mxu0 0.0
    %253 = vmatprep.subr.mxu0 0.0
    %254 = vmatpush1.msra.mxu0 0.0
    %255 = vmatprep.subr.mxu0 0.0
    %256 = vmatpush1.msra.mxu0 0.0
    %257 = vmatprep.subr.mxu0 0.0
    %258 = vmatpush1.msra.mxu0 0.0
    %259 = vmatprep.subr.mxu0 0.0
    %260 = vmatpush1.msra.mxu0 0.0
    %261 = vmatprep.subr.mxu0 0.0
    %262 = vmatpush1.msra.mxu0 0.0
    %263 = vmatprep.subr.mxu0 0.0
    %264 = vmatpush1.msra.mxu0 0.0
    %265 = vmatprep.mubr.f32.mxu0 0.0
    %266 = vmatmul.mubr.f32.gmra.mrb[0].mxu0 %v114
    %v267 = vpop.f32.mrb[0].mxu0
    %v268 = vadd.f32 %v184, %v267
    %v269 = vpop.f32.mrb[0].mxu0
    %v270 = vadd.f32 %v188, %v269
    %271 = vdwg.mxu0
    %272 = vmatprep.subr.mxu0 %v118
    %273 = vmatpush1.msra.mxu0 %v117
    %274 = vmatprep.subr.mxu0 %v122
    %275 = vmatpush1.msra.mxu0 %v121
    %276 = vmatprep.subr.mxu0 %v126
    %277 = vmatpush1.msra.mxu0 %v125
    %278 = vmatprep.subr.mxu0 %v130
    %279 = vmatpush1.msra.mxu0 %v129
    %280 = vmatprep.subr.mxu0 %v134
    %281 = vmatpush1.msra.mxu0 %v133
    %282 = vmatprep.subr.mxu0 %v138
    %283 = vmatpush1.msra.mxu0 %v137
    %284 = vmatprep.subr.mxu0 %v142
    %285 = vmatpush1.msra.mxu0 %v141
    %286 = vmatprep.subr.mxu0 %v146
    %287 = vmatpush1.msra.mxu0 %v145
    %288 = vmatprep.subr.mxu0 %v150
    %289 = vmatpush1.msra.mxu0 %v149
    %290 = vmatprep.subr.mxu0 %v154
    %291 = vmatpush1.msra.mxu0 %v153
    %292 = vmatprep.subr.mxu0 %v158
    %293 = vmatpush1.msra.mxu0 %v157
    %294 = vmatprep.subr.mxu0 %v162
    %295 = vmatpush1.msra.mxu0 %v161
    %296 = vmatprep.subr.mxu0 %v166
    %297 = vmatpush1.msra.mxu0 %v165
    %298 = vmatprep.subr.mxu0 %v170
    %299 = vmatpush1.msra.mxu0 %v169
    %300 = vmatprep.subr.mxu0 %v174
    %301 = vmatpush1.msra.mxu0 %v173
    %302 = vmatprep.subr.mxu0 %v178
    %303 = vmatpush1.msra.mxu0 %v177
    %304 = vmatprep.subr.mxu0 0.0
    %305 = vmatpush1.msra.mxu0 0.0
    %306 = vmatprep.subr.mxu0 0.0
    %307 = vmatpush1.msra.mxu0 0.0
    %308 = vmatprep.subr.mxu0 0.0
    %309 = vmatpush1.msra.mxu0 0.0
    %310 = vmatprep.subr.mxu0 0.0
    %311 = vmatpush1.msra.mxu0 0.0
    %312 = vmatprep.subr.mxu0 0.0
    %313 = vmatpush1.msra.mxu0 0.0
    %314 = vmatprep.subr.mxu0 0.0
    %315 = vmatpush1.msra.mxu0 0.0
    %316 = vmatprep.subr.mxu0 0.0
    %317 = vmatpush1.msra.mxu0 0.0
    %318 = vmatprep.subr.mxu0 0.0
    %319 = vmatpush1.msra.mxu0 0.0
    %320 = vmatprep.subr.mxu0 0.0
    %321 = vmatpush1.msra.mxu0 0.0
    %322 = vmatprep.subr.mxu0 0.0
    %323 = vmatpush1.msra.mxu0 0.0
    %324 = vmatprep.subr.mxu0 0.0
    %325 = vmatpush1.msra.mxu0 0.0
    %326 = vmatprep.subr.mxu0 0.0
    %327 = vmatpush1.msra.mxu0 0.0
    %328 = vmatprep.subr.mxu0 0.0
    %329 = vmatpush1.msra.mxu0 0.0
    %330 = vmatprep.subr.mxu0 0.0
    %331 = vmatpush1.msra.mxu0 0.0
    %332 = vmatprep.subr.mxu0 0.0
    %333 = vmatpush1.msra.mxu0 0.0
    %334 = vmatprep.subr.mxu0 0.0
    %335 = vmatpush1.msra.mxu0 0.0
    %336 = vmatprep.mubr.f32.mxu0 0.0
    %337 = vmatmul.mubr.f32.gmra.mrb[0].mxu0 %v114
    %v338 = vpop.f32.mrb[0].mxu0
    %v339 = vadd.f32 %v192, %v338
    %v340 = vpop.f32.mrb[0].mxu0
    %v341 = vadd.f32 %v196, %v340
    %342 = vdwg.mxu0
    %v343 = vmax.f32 %v268, 0.0
    %v344 = vmax.f32 %v270, 0.0
    %v345 = vmax.f32 %v339, 0.0
    %v346 = vmax.f32 %v341, 0.0
    %v347 = vld [vmem:[%s3] sm:$0xff]
    %v348 = vld [vmem:[%s3 + $0x8] sm:$0xff]
    %v349 = vld [vmem:[%s3 + $0x10] sm:$0xff]
    %v350 = vld [vmem:[%s3 + $0x18] sm:$0xff]
    %v351 = vld [vmem:[%s3 + $0x20] sm:$0xff]
    %v352 = vld [vmem:[%s3 + $0x28] sm:$0xff]
    %v353 = vld [vmem:[%s3 + $0x30] sm:$0xff]
    %v354 = vld [vmem:[%s3 + $0x38] sm:$0xff]
    %v355 = vld [vmem:[%s3 + $0x40] sm:$0xff]
    %v356 = vld [vmem:[%s3 + $0x48] sm:$0xff]
    %v357 = vld [vmem:[%s3 + $0x50] sm:$0xff]
    %v358 = vld [vmem:[%s3 + $0x58] sm:$0xff]
    %v359 = vld [vmem:[%s3 + $0x60] sm:$0xff]
    %v360 = vld [vmem:[%s3 + $0x68] sm:$0xff]
    %v361 = vld [vmem:[%s3 + $0x70] sm:$0xff]
    %v362 = vld [vmem:[%s3 + $0x78] sm:$0xff]
    %v363 = vld [vmem:[%s3 + $0x80] sm:$0xff]
    %v364 = vld [vmem:[%s3 + $0x88] sm:$0xff]
    %v365 = vld [vmem:[%s3 + $0x90] sm:$0xff]
    %v366 = vld [vmem:[%s3 + $0x98] sm:$0xff]
    %v367 = vld [vmem:[%s3 + $0xa0] sm:$0xff]
    %v368 = vld [vmem:[%s3 + $0xa8] sm:$0xff]
    %v369 = vld [vmem:[%s3 + $0xb0] sm:$0xff]
    %v370 = vld [vmem:[%s3 + $0xb8] sm:$0xff]
    %v371 = vld [vmem:[%s3 + $0xc0] sm:$0xff]
    %v372 = vld [vmem:[%s3 + $0xc8] sm:$0xff]
    %v373 = vld [vmem:[%s3 + $0xd0] sm:$0xff]
    %v374 = vld [vmem:[%s3 + $0xd8] sm:$0xff]
    %v375 = vld [vmem:[%s3 + $0xe0] sm:$0xff]
    %v376 = vld [vmem:[%s3 + $0xe8] sm:$0xff]
    %v377 = vld [vmem:[%s3 + $0xf0] sm:$0xff]
    %v378 = vld [vmem:[%s3 + $0xf8] sm:$0xff]
    %v379 = vld [vmem:[%s3 + $0x100] sm:$0xff]
    %v380 = vld [vmem:[%s3 + $0x108] sm:$0xff]
    %v381 = vld [vmem:[%s3 + $0x110] sm:$0xff]
    %v382 = vld [vmem:[%s3 + $0x118] sm:$0xff]
    %v383 = vld [vmem:[%s3 + $0x120] sm:$0xff]
    %v384 = vld [vmem:[%s3 + $0x128] sm:$0xff]
    %v385 = vld [vmem:[%s3 + $0x130] sm:$0xff]
    %v386 = vld [vmem:[%s3 + $0x138] sm:$0xff]
    %v387 = vld [vmem:[%s3 + $0x140] sm:$0xff]
    %v388 = vld [vmem:[%s3 + $0x148] sm:$0xff]
    %v389 = vld [vmem:[%s3 + $0x150] sm:$0xff]
    %v390 = vld [vmem:[%s3 + $0x158] sm:$0xff]
    %v391 = vld [vmem:[%s3 + $0x160] sm:$0xff]
    %v392 = vld [vmem:[%s3 + $0x168] sm:$0xff]
    %v393 = vld [vmem:[%s3 + $0x170] sm:$0xff]
    %v394 = vld [vmem:[%s3 + $0x178] sm:$0xff]
    %v395 = vld [vmem:[%s3 + $0x180] sm:$0xff]
    %v396 = vld [vmem:[%s3 + $0x188] sm:$0xff]
    %v397 = vld [vmem:[%s3 + $0x190] sm:$0xff]
    %v398 = vld [vmem:[%s3 + $0x198] sm:$0xff]
    %v399 = vld [vmem:[%s3 + $0x1a0] sm:$0xff]
    %v400 = vld [vmem:[%s3 + $0x1a8] sm:$0xff]
    %v401 = vld [vmem:[%s3 + $0x1b0] sm:$0xff]
    %v402 = vld [vmem:[%s3 + $0x1b8] sm:$0xff]
    %v403 = vld [vmem:[%s3 + $0x1c0] sm:$0xff]
    %v404 = vld [vmem:[%s3 + $0x1c8] sm:$0xff]
    %v405 = vld [vmem:[%s3 + $0x1d0] sm:$0xff]
    %v406 = vld [vmem:[%s3 + $0x1d8] sm:$0xff]
    %v407 = vld [vmem:[%s3 + $0x1e0] sm:$0xff]
    %v408 = vld [vmem:[%s3 + $0x1e8] sm:$0xff]
    %v409 = vld [vmem:[%s3 + $0x1f0] sm:$0xff]
    %v410 = vld [vmem:[%s3 + $0x1f8] sm:$0xff]
    %v411 = vld [vmem:[%s3 + $0x200] sm:$0xff]
    %v412 = vld [vmem:[%s3 + $0x208] sm:$0xff]
    %v413 = vld [vmem:[%s3 + $0x210] sm:$0xff]
    %v414 = vld [vmem:[%s3 + $0x218] sm:$0xff]
    %v415 = vld [vmem:[%s3 + $0x220] sm:$0xff]
    %v416 = vld [vmem:[%s3 + $0x228] sm:$0xff]
    %v417 = vld [vmem:[%s3 + $0x230] sm:$0xff]
    %v418 = vld [vmem:[%s3 + $0x238] sm:$0xff]
    %v419 = vld [vmem:[%s3 + $0x240] sm:$0xff]
    %v420 = vld [vmem:[%s3 + $0x248] sm:$0xff]
    %v421 = vld [vmem:[%s3 + $0x250] sm:$0xff]
    %v422 = vld [vmem:[%s3 + $0x258] sm:$0xff]
    %v423 = vld [vmem:[%s3 + $0x260] sm:$0xff]
    %v424 = vld [vmem:[%s3 + $0x268] sm:$0xff]
    %v425 = vld [vmem:[%s3 + $0x270] sm:$0xff]
    %v426 = vld [vmem:[%s3 + $0x278] sm:$0xff]
    %v427 = vld [vmem:[%s3 + $0x280] sm:$0xff]
    %v428 = vld [vmem:[%s3 + $0x288] sm:$0xff]
    %v429 = vld [vmem:[%s3 + $0x290] sm:$0xff]
    %v430 = vld [vmem:[%s3 + $0x298] sm:$0xff]
    %v431 = vld [vmem:[%s3 + $0x2a0] sm:$0xff]
    %v432 = vld [vmem:[%s3 + $0x2a8] sm:$0xff]
    %v433 = vld [vmem:[%s3 + $0x2b0] sm:$0xff]
    %v434 = vld [vmem:[%s3 + $0x2b8] sm:$0xff]
    %v435 = vld [vmem:[%s3 + $0x2c0] sm:$0xff]
    %v436 = vld [vmem:[%s3 + $0x2c8] sm:$0xff]
    %v437 = vld [vmem:[%s3 + $0x2d0] sm:$0xff]
    %v438 = vld [vmem:[%s3 + $0x2d8] sm:$0xff]
    %v439 = vld [vmem:[%s3 + $0x2e0] sm:$0xff]
    %v440 = vld [vmem:[%s3 + $0x2e8] sm:$0xff]
    %v441 = vld [vmem:[%s3 + $0x2f0] sm:$0xff]
    %v442 = vld [vmem:[%s3 + $0x2f8] sm:$0xff]
    %v443 = vld [vmem:[%s3 + $0x300] sm:$0xff]
    %v444 = vld [vmem:[%s3 + $0x308] sm:$0xff]
    %v445 = vld [vmem:[%s3 + $0x310] sm:$0xff]
    %v446 = vld [vmem:[%s3 + $0x318] sm:$0xff]
    %v447 = vld [vmem:[%s3 + $0x320] sm:$0xff]
    %v448 = vld [vmem:[%s3 + $0x328] sm:$0xff]
    %v449 = vld [vmem:[%s3 + $0x330] sm:$0xff]
    %v450 = vld [vmem:[%s3 + $0x338] sm:$0xff]
    %v451 = vld [vmem:[%s3 + $0x340] sm:$0xff]
    %v452 = vld [vmem:[%s3 + $0x348] sm:$0xff]
    %v453 = vld [vmem:[%s3 + $0x350] sm:$0xff]
    %v454 = vld [vmem:[%s3 + $0x358] sm:$0xff]
    %v455 = vld [vmem:[%s3 + $0x360] sm:$0xff]
    %v456 = vld [vmem:[%s3 + $0x368] sm:$0xff]
    %v457 = vld [vmem:[%s3 + $0x370] sm:$0xff]
    %v458 = vld [vmem:[%s3 + $0x378] sm:$0xff]
    %v459 = vld [vmem:[%s3 + $0x380] sm:$0xff]
    %v460 = vld [vmem:[%s3 + $0x388] sm:$0xff]
    %v461 = vld [vmem:[%s3 + $0x390] sm:$0xff]
    %v462 = vld [vmem:[%s3 + $0x398] sm:$0xff]
    %v463 = vld [vmem:[%s3 + $0x3a0] sm:$0xff]
    %v464 = vld [vmem:[%s3 + $0x3a8] sm:$0xff]
    %v465 = vld [vmem:[%s3 + $0x3b0] sm:$0xff]
    %v466 = vld [vmem:[%s3 + $0x3b8] sm:$0xff]
    %v467 = vld [vmem:[%s3 + $0x3c0] sm:$0xff]
    %v468 = vld [vmem:[%s3 + $0x3c8] sm:$0xff]
    %v469 = vld [vmem:[%s3 + $0x3d0] sm:$0xff]
    %v470 = vld [vmem:[%s3 + $0x3d8] sm:$0xff]
    %v471 = vld [vmem:[%s3 + $0x3e0] sm:$0xff]
    %v472 = vld [vmem:[%s3 + $0x3e8] sm:$0xff]
    %v473 = vld [vmem:[%s3 + $0x3f0] sm:$0xff]
    %v474 = vld [vmem:[%s3 + $0x3f8] sm:$0xff]
    %v475 = vld [vmem:[#allocation6] sm:$0x3]
    %v477 = vlaneseq
    %v478 = vshrl.u32 %v477, 7
    %v479 = vsub.s32 0, %v478
    %v480 = vrot.slane %v475, %v479
    %v481 = vlaneseq
    %v482 = vshrl.u32 %v481, 7
    %v483 = vsub.s32 1, %v482
    %v484 = vrot.slane %v475, %v483
    %487 = vmatprep.subr.mxu0 %v348
    %488 = vmatpush1.msra.mxu0 %v347
    %489 = vmatprep.subr.mxu0 %v350
    %490 = vmatpush1.msra.mxu0 %v349
    %491 = vmatprep.subr.mxu0 %v352
    %492 = vmatpush1.msra.mxu0 %v351
    %493 = vmatprep.subr.mxu0 %v354
    %494 = vmatpush1.msra.mxu0 %v353
    %495 = vmatprep.subr.mxu0 %v356
    %496 = vmatpush1.msra.mxu0 %v355
    %497 = vmatprep.subr.mxu0 %v358
    %498 = vmatpush1.msra.mxu0 %v357
    %499 = vmatprep.subr.mxu0 %v360
    %500 = vmatpush1.msra.mxu0 %v359
    %501 = vmatprep.subr.mxu0 %v362
    %502 = vmatpush1.msra.mxu0 %v361
    %503 = vmatprep.subr.mxu0 %v364
    %504 = vmatpush1.msra.mxu0 %v363
    %505 = vmatprep.subr.mxu0 %v366
    %506 = vmatpush1.msra.mxu0 %v365
    %507 = vmatprep.subr.mxu0 %v368
    %508 = vmatpush1.msra.mxu0 %v367
    %509 = vmatprep.subr.mxu0 %v370
    %510 = vmatpush1.msra.mxu0 %v369
    %511 = vmatprep.subr.mxu0 %v372
    %512 = vmatpush1.msra.mxu0 %v371
    %513 = vmatprep.subr.mxu0 %v374
    %514 = vmatpush1.msra.mxu0 %v373
    %515 = vmatprep.subr.mxu0 %v376
    %516 = vmatpush1.msra.mxu0 %v375
    %517 = vmatprep.subr.mxu0 %v378
    %518 = vmatpush1.msra.mxu0 %v377
    %519 = vmatprep.subr.mxu0 %v380
    %520 = vmatpush1.msra.mxu0 %v379
    %521 = vmatprep.subr.mxu0 %v382
    %522 = vmatpush1.msra.mxu0 %v381
    %523 = vmatprep.subr.mxu0 %v384
    %524 = vmatpush1.msra.mxu0 %v383
    %525 = vmatprep.subr.mxu0 %v386
    %526 = vmatpush1.msra.mxu0 %v385
    %527 = vmatprep.subr.mxu0 %v388
    %528 = vmatpush1.msra.mxu0 %v387
    %529 = vmatprep.subr.mxu0 %v390
    %530 = vmatpush1.msra.mxu0 %v389
    %531 = vmatprep.subr.mxu0 %v392
    %532 = vmatpush1.msra.mxu0 %v391
    %533 = vmatprep.subr.mxu0 %v394
    %534 = vmatpush1.msra.mxu0 %v393
    %535 = vmatprep.subr.mxu0 %v396
    %536 = vmatpush1.msra.mxu0 %v395
    %537 = vmatprep.subr.mxu0 %v398
    %538 = vmatpush1.msra.mxu0 %v397
    %539 = vmatprep.subr.mxu0 %v400
    %540 = vmatpush1.msra.mxu0 %v399
    %541 = vmatprep.subr.mxu0 %v402
    %542 = vmatpush1.msra.mxu0 %v401
    %543 = vmatprep.subr.mxu0 %v404
    %544 = vmatpush1.msra.mxu0 %v403
    %545 = vmatprep.subr.mxu0 %v406
    %546 = vmatpush1.msra.mxu0 %v405
    %547 = vmatprep.subr.mxu0 %v408
    %548 = vmatpush1.msra.mxu0 %v407
    %549 = vmatprep.subr.mxu0 %v410
    %550 = vmatpush1.msra.mxu0 %v409
    %551 = vmatprep.mubr.f32.mxu0 %v344
    %552 = vmatmul.mubr.f32.gmra.mrb[0].mxu0 %v343
    %v553 = vpop.f32.mrb[0].mxu0
    %v554 = vadd.f32 %v480, %v553
    %v555 = vpop.f32.mrb[0].mxu0
    %v556 = vadd.f32 %v484, %v555
    %557 = vdwg.mxu0
    %558 = vmatprep.subr.mxu0 %v412
    %559 = vmatpush1.msra.mxu0 %v411
    %560 = vmatprep.subr.mxu0 %v414
    %561 = vmatpush1.msra.mxu0 %v413
    %562 = vmatprep.subr.mxu0 %v416
    %563 = vmatpush1.msra.mxu0 %v415
    %564 = vmatprep.subr.mxu0 %v418
    %565 = vmatpush1.msra.mxu0 %v417
    %566 = vmatprep.subr.mxu0 %v420
    %567 = vmatpush1.msra.mxu0 %v419
    %568 = vmatprep.subr.mxu0 %v422
    %569 = vmatpush1.msra.mxu0 %v421
    %570 = vmatprep.subr.mxu0 %v424
    %571 = vmatpush1.msra.mxu0 %v423
    %572 = vmatprep.subr.mxu0 %v426
    %573 = vmatpush1.msra.mxu0 %v425
    %574 = vmatprep.subr.mxu0 %v428
    %575 = vmatpush1.msra.mxu0 %v427
    %576 = vmatprep.subr.mxu0 %v430
    %577 = vmatpush1.msra.mxu0 %v429
    %578 = vmatprep.subr.mxu0 %v432
    %579 = vmatpush1.msra.mxu0 %v431
    %580 = vmatprep.subr.mxu0 %v434
    %581 = vmatpush1.msra.mxu0 %v433
    %582 = vmatprep.subr.mxu0 %v436
    %583 = vmatpush1.msra.mxu0 %v435
    %584 = vmatprep.subr.mxu0 %v438
    %585 = vmatpush1.msra.mxu0 %v437
    %586 = vmatprep.subr.mxu0 %v440
    %587 = vmatpush1.msra.mxu0 %v439
    %588 = vmatprep.subr.mxu0 %v442
    %589 = vmatpush1.msra.mxu0 %v441
    %590 = vmatprep.subr.mxu0 %v444
    %591 = vmatpush1.msra.mxu0 %v443
    %592 = vmatprep.subr.mxu0 %v446
    %593 = vmatpush1.msra.mxu0 %v445
    %594 = vmatprep.subr.mxu0 %v448
    %595 = vmatpush1.msra.mxu0 %v447
    %596 = vmatprep.subr.mxu0 %v450
    %597 = vmatpush1.msra.mxu0 %v449
    %598 = vmatprep.subr.mxu0 %v452
    %599 = vmatpush1.msra.mxu0 %v451
    %600 = vmatprep.subr.mxu0 %v454
    %601 = vmatpush1.msra.mxu0 %v453
    %602 = vmatprep.subr.mxu0 %v456
    %603 = vmatpush1.msra.mxu0 %v455
    %604 = vmatprep.subr.mxu0 %v458
    %605 = vmatpush1.msra.mxu0 %v457
    %606 = vmatprep.subr.mxu0 %v460
    %607 = vmatpush1.msra.mxu0 %v459
    %608 = vmatprep.subr.mxu0 %v462
    %609 = vmatpush1.msra.mxu0 %v461
    %610 = vmatprep.subr.mxu0 %v464
    %611 = vmatpush1.msra.mxu0 %v463
    %612 = vmatprep.subr.mxu0 %v466
    %613 = vmatpush1.msra.mxu0 %v465
    %614 = vmatprep.subr.mxu0 %v468
    %615 = vmatpush1.msra.mxu0 %v467
    %616 = vmatprep.subr.mxu0 %v470
    %617 = vmatpush1.msra.mxu0 %v469
    %618 = vmatprep.subr.mxu0 %v472
    %619 = vmatpush1.msra.mxu0 %v471
    %620 = vmatprep.subr.mxu0 %v474
    %621 = vmatpush1.msra.mxu0 %v473
    %622 = vmatprep.mubr.f32.mxu0 %v346
    %623 = vmatmul.mubr.f32.gmra.mrb[0].mxu0 %v345
    %v624 = vpop.f32.mrb[0].mxu0
    %v625 = vadd.f32 %v554, %v624
    %v626 = vpop.f32.mrb[0].mxu0
    %v627 = vadd.f32 %v556, %v626
    %628 = vdwg.mxu0
    %v629 = vmax.f32 %v625, 0.0
    %v630 = vmax.f32 %v627, 0.0
    %v631 = vld [vmem:[#allocation7] sm:$0xff]
    %v632 = vld [vmem:[#allocation7 + $0x8] sm:$0xff]
    %v633 = vld [vmem:[#allocation7 + $0x10] sm:$0xff]
    %v634 = vld [vmem:[#allocation7 + $0x18] sm:$0xff]
    %v635 = vld [vmem:[#allocation7 + $0x20] sm:$0xff]
    %v636 = vld [vmem:[#allocation7 + $0x28] sm:$0xff]
    %v637 = vld [vmem:[#allocation7 + $0x30] sm:$0xff]
    %v638 = vld [vmem:[#allocation7 + $0x38] sm:$0xff]
    %v639 = vld [vmem:[#allocation7 + $0x40] sm:$0xff]
    %v640 = vld [vmem:[#allocation7 + $0x48] sm:$0xff]
    %v641 = vld [vmem:[#allocation7 + $0x50] sm:$0xff]
    %v642 = vld [vmem:[#allocation7 + $0x58] sm:$0xff]
    %v643 = vld [vmem:[#allocation7 + $0x60] sm:$0xff]
    %v644 = vld [vmem:[#allocation7 + $0x68] sm:$0xff]
    %v645 = vld [vmem:[#allocation7 + $0x70] sm:$0xff]
    %v646 = vld [vmem:[#allocation7 + $0x78] sm:$0xff]
    %v647 = vld [vmem:[#allocation7 + $0x80] sm:$0xff]
    %v648 = vld [vmem:[#allocation7 + $0x88] sm:$0xff]
    %v649 = vld [vmem:[#allocation7 + $0x90] sm:$0xff]
    %v650 = vld [vmem:[#allocation7 + $0x98] sm:$0xff]
    %v651 = vld [vmem:[#allocation7 + $0xa0] sm:$0xff]
    %v652 = vld [vmem:[#allocation7 + $0xa8] sm:$0xff]
    %v653 = vld [vmem:[#allocation7 + $0xb0] sm:$0xff]
    %v654 = vld [vmem:[#allocation7 + $0xb8] sm:$0xff]
    %v655 = vld [vmem:[#allocation7 + $0xc0] sm:$0xff]
    %v656 = vld [vmem:[#allocation7 + $0xc8] sm:$0xff]
    %v657 = vld [vmem:[#allocation7 + $0xd0] sm:$0xff]
    %v658 = vld [vmem:[#allocation7 + $0xd8] sm:$0xff]
    %v659 = vld [vmem:[#allocation7 + $0xe0] sm:$0xff]
    %v660 = vld [vmem:[#allocation7 + $0xe8] sm:$0xff]
    %v661 = vld [vmem:[#allocation7 + $0xf0] sm:$0xff]
    %v662 = vld [vmem:[#allocation7 + $0xf8] sm:$0xff]
    %v663 = vld [vmem:[#allocation9] sm:$0x1]
    %v665 = vlaneseq
    %v666 = vshrl.u32 %v665, 7
    %v667 = vsub.s32 0, %v666
    %v668 = vrot.slane %v663, %v667
    %670 = vmatprep.subr.mxu0 0.0
    %671 = vmatpush1.msra.mxu0 %v631
    %672 = vmatprep.subr.mxu0 0.0
    %673 = vmatpush1.msra.mxu0 %v632
    %674 = vmatprep.subr.mxu0 0.0
    %675 = vmatpush1.msra.mxu0 %v633
    %676 = vmatprep.subr.mxu0 0.0
    %677 = vmatpush1.msra.mxu0 %v634
    %678 = vmatprep.subr.mxu0 0.0
    %679 = vmatpush1.msra.mxu0 %v635
    %680 = vmatprep.subr.mxu0 0.0
    %681 = vmatpush1.msra.mxu0 %v636
    %682 = vmatprep.subr.mxu0 0.0
    %683 = vmatpush1.msra.mxu0 %v637
    %684 = vmatprep.subr.mxu0 0.0
    %685 = vmatpush1.msra.mxu0 %v638
    %686 = vmatprep.subr.mxu0 0.0
    %687 = vmatpush1.msra.mxu0 %v639
    %688 = vmatprep.subr.mxu0 0.0
    %689 = vmatpush1.msra.mxu0 %v640
    %690 = vmatprep.subr.mxu0 0.0
    %691 = vmatpush1.msra.mxu0 %v641
    %692 = vmatprep.subr.mxu0 0.0
    %693 = vmatpush1.msra.mxu0 %v642
    %694 = vmatprep.subr.mxu0 0.0
    %695 = vmatpush1.msra.mxu0 %v643
    %696 = vmatprep.subr.mxu0 0.0
    %697 = vmatpush1.msra.mxu0 %v644
    %698 = vmatprep.subr.mxu0 0.0
    %699 = vmatpush1.msra.mxu0 %v645
    %700 = vmatprep.subr.mxu0 0.0
    %701 = vmatpush1.msra.mxu0 %v646
    %702 = vmatprep.subr.mxu0 0.0
    %703 = vmatpush1.msra.mxu0 %v647
    %704 = vmatprep.subr.mxu0 0.0
    %705 = vmatpush1.msra.mxu0 %v648
    %706 = vmatprep.subr.mxu0 0.0
    %707 = vmatpush1.msra.mxu0 %v649
    %708 = vmatprep.subr.mxu0 0.0
    %709 = vmatpush1.msra.mxu0 %v650
    %710 = vmatprep.subr.mxu0 0.0
    %711 = vmatpush1.msra.mxu0 %v651
    %712 = vmatprep.subr.mxu0 0.0
    %713 = vmatpush1.msra.mxu0 %v652
    %714 = vmatprep.subr.mxu0 0.0
    %715 = vmatpush1.msra.mxu0 %v653
    %716 = vmatprep.subr.mxu0 0.0
    %717 = vmatpush1.msra.mxu0 %v654
    %718 = vmatprep.subr.mxu0 0.0
    %719 = vmatpush1.msra.mxu0 %v655
    %720 = vmatprep.subr.mxu0 0.0
    %721 = vmatpush1.msra.mxu0 %v656
    %722 = vmatprep.subr.mxu0 0.0
    %723 = vmatpush1.msra.mxu0 %v657
    %724 = vmatprep.subr.mxu0 0.0
    %725 = vmatpush1.msra.mxu0 %v658
    %726 = vmatprep.subr.mxu0 0.0
    %727 = vmatpush1.msra.mxu0 %v659
    %728 = vmatprep.subr.mxu0 0.0
    %729 = vmatpush1.msra.mxu0 %v660
    %730 = vmatprep.subr.mxu0 0.0
    %731 = vmatpush1.msra.mxu0 %v661
    %732 = vmatprep.subr.mxu0 0.0
    %733 = vmatpush1.msra.mxu0 %v662
    %734 = vmatprep.mubr.f32.mxu0 %v630
    %735 = vmatmul.mubr.f32.gmra.mrb[0].mxu0 %v629
    %v736 = vpop.f32.mrb[0].mxu0
    %v737 = vadd.f32 %v668, %v736
    %v738 = vpop.f32.mrb[0].mxu0
    %739 = vdwg.mxu0
    %v740 = vmax.f32 %v737, 0.0
    %v741 = vld [vmem:[%s7] sm:$0xff]
    %v742 = vld [vmem:[%s7 + $0x8] sm:$0xff]
    %v743 = vld [vmem:[%s7 + $0x10] sm:$0xff]
    %v744 = vld [vmem:[%s7 + $0x18] sm:$0xff]
    %v745 = vld [vmem:[%s7 + $0x20] sm:$0xff]
    %v746 = vld [vmem:[%s7 + $0x28] sm:$0xff]
    %v747 = vld [vmem:[%s7 + $0x30] sm:$0xff]
    %v748 = vld [vmem:[%s7 + $0x38] sm:$0xff]
    %v749 = vld [vmem:[%s7 + $0x40] sm:$0xff]
    %v750 = vld [vmem:[%s7 + $0x48] sm:$0xff]
    %v751 = vld [vmem:[%s7 + $0x50] sm:$0xff]
    %v752 = vld [vmem:[%s7 + $0x58] sm:$0xff]
    %v753 = vld [vmem:[%s7 + $0x60] sm:$0xff]
    %v754 = vld [vmem:[%s7 + $0x68] sm:$0xff]
    %v755 = vld [vmem:[%s7 + $0x70] sm:$0xff]
    %v756 = vld [vmem:[%s7 + $0x78] sm:$0xff]
    %v757 = vld [vmem:[%s7 + $0x80] sm:$0xff]
    %v758 = vld [vmem:[%s7 + $0x88] sm:$0xff]
    %v759 = vld [vmem:[%s7 + $0x90] sm:$0xff]
    %v760 = vld [vmem:[%s7 + $0x98] sm:$0xff]
    %v761 = vld [vmem:[%s7 + $0xa0] sm:$0xff]
    %v762 = vld [vmem:[%s7 + $0xa8] sm:$0xff]
    %v763 = vld [vmem:[%s7 + $0xb0] sm:$0xff]
    %v764 = vld [vmem:[%s7 + $0xb8] sm:$0xff]
    %v765 = vld [vmem:[%s7 + $0xc0] sm:$0xff]
    %v766 = vld [vmem:[%s7 + $0xc8] sm:$0xff]
    %v767 = vld [vmem:[%s7 + $0xd0] sm:$0xff]
    %v768 = vld [vmem:[%s7 + $0xd8] sm:$0xff]
    %v769 = vld [vmem:[%s7 + $0xe0] sm:$0xff]
    %v770 = vld [vmem:[%s7 + $0xe8] sm:$0xff]
    %v771 = vld [vmem:[%s7 + $0xf0] sm:$0xff]
    %v772 = vld [vmem:[%s7 + $0xf8] sm:$0xff]
    %v773 = vld [vmem:[#allocation10] sm:$0x3]
    %v775 = vlaneseq
    %v776 = vshrl.u32 %v775, 7
    %v777 = vsub.s32 0, %v776
    %v778 = vrot.slane %v773, %v777
    %v779 = vlaneseq
    %v780 = vshrl.u32 %v779, 7
    %v781 = vsub.s32 1, %v780
    %v782 = vrot.slane %v773, %v781
    %785 = vmatprep.subr.mxu0 %v742
    %786 = vmatpush1.msra.mxu0 %v741
    %787 = vmatprep.subr.mxu0 %v744
    %788 = vmatpush1.msra.mxu0 %v743
    %789 = vmatprep.subr.mxu0 %v746
    %790 = vmatpush1.msra.mxu0 %v745
    %791 = vmatprep.subr.mxu0 %v748
    %792 = vmatpush1.msra.mxu0 %v747
    %793 = vmatprep.subr.mxu0 %v750
    %794 = vmatpush1.msra.mxu0 %v749
    %795 = vmatprep.subr.mxu0 %v752
    %796 = vmatpush1.msra.mxu0 %v751
    %797 = vmatprep.subr.mxu0 %v754
    %798 = vmatpush1.msra.mxu0 %v753
    %799 = vmatprep.subr.mxu0 %v756
    %800 = vmatpush1.msra.mxu0 %v755
    %801 = vmatprep.subr.mxu0 %v758
    %802 = vmatpush1.msra.mxu0 %v757
    %803 = vmatprep.subr.mxu0 %v760
    %804 = vmatpush1.msra.mxu0 %v759
    %805 = vmatprep.subr.mxu0 %v762
    %806 = vmatpush1.msra.mxu0 %v761
    %807 = vmatprep.subr.mxu0 %v764
    %808 = vmatpush1.msra.mxu0 %v763
    %809 = vmatprep.subr.mxu0 %v766
    %810 = vmatpush1.msra.mxu0 %v765
    %811 = vmatprep.subr.mxu0 %v768
    %812 = vmatpush1.msra.mxu0 %v767
    %813 = vmatprep.subr.mxu0 %v770
    %814 = vmatpush1.msra.mxu0 %v769
    %815 = vmatprep.subr.mxu0 %v772
    %816 = vmatpush1.msra.mxu0 %v771
    %817 = vmatprep.subr.mxu0 0.0
    %818 = vmatpush1.msra.mxu0 0.0
    %819 = vmatprep.subr.mxu0 0.0
    %820 = vmatpush1.msra.mxu0 0.0
    %821 = vmatprep.subr.mxu0 0.0
    %822 = vmatpush1.msra.mxu0 0.0
    %823 = vmatprep.subr.mxu0 0.0
    %824 = vmatpush1.msra.mxu0 0.0
    %825 = vmatprep.subr.mxu0 0.0
    %826 = vmatpush1.msra.mxu0 0.0
    %827 = vmatprep.subr.mxu0 0.0
    %828 = vmatpush1.msra.mxu0 0.0
    %829 = vmatprep.subr.mxu0 0.0
    %830 = vmatpush1.msra.mxu0 0.0
    %831 = vmatprep.subr.mxu0 0.0
    %832 = vmatpush1.msra.mxu0 0.0
    %833 = vmatprep.subr.mxu0 0.0
    %834 = vmatpush1.msra.mxu0 0.0
    %835 = vmatprep.subr.mxu0 0.0
    %836 = vmatpush1.msra.mxu0 0.0
    %837 = vmatprep.subr.mxu0 0.0
    %838 = vmatpush1.msra.mxu0 0.0
    %839 = vmatprep.subr.mxu0 0.0
    %840 = vmatpush1.msra.mxu0 0.0
    %841 = vmatprep.subr.mxu0 0.0
    %842 = vmatpush1.msra.mxu0 0.0
    %843 = vmatprep.subr.mxu0 0.0
    %844 = vmatpush1.msra.mxu0 0.0
    %845 = vmatprep.subr.mxu0 0.0
    %846 = vmatpush1.msra.mxu0 0.0
    %847 = vmatprep.subr.mxu0 0.0
    %848 = vmatpush1.msra.mxu0 0.0
    %849 = vmatprep.mubr.f32.mxu0 0.0
    %850 = vmatmul.mubr.f32.gmra.mrb[0].mxu0 %v740
    %v851 = vpop.f32.mrb[0].mxu0
    %v852 = vadd.f32 %v778, %v851
    %v853 = vpop.f32.mrb[0].mxu0
    %v854 = vadd.f32 %v782, %v853
    %855 = vdwg.mxu0
    %856 = vst [vmem:[%s9] sm:$0xff] %v852
    %857 = vst [vmem:[%s9 + $0x8] sm:$0xff] %v854
    // Predicated region
    $region62: #{pointnet_feature_extractor.4} parent=1 // pred_check
      _
    $region63: #{pointnet_feature_extractor.4} parent=1 // pred_check_branch
      %859 = sbr.rel (0) target = $region65
    $region64: #{pointnet_feature_extractor.4} parent=1 // pred_region
      _
    $region65: #{pointnet_feature_extractor.4} parent=1 // pred_fallthru
      _
    // Predicated region
    $region66: #{pointnet_feature_extractor.4} parent=1 // pred_check
      _
    $region67: #{pointnet_feature_extractor.4} parent=1 // pred_check_branch
      %861 = sbr.rel (0) target = $region69
    $region68: #{pointnet_feature_extractor.4} parent=1 // pred_region
      _
    $region69: #{pointnet_feature_extractor.4} parent=1 // pred_fallthru
      _
    %862 = vsyncpa [#allocation3], 1
    %863 = vsyncpa [#allocation5], 1
    %864 = vsyncpa [#allocation8], 1
    %865 = vsyncpa [#allocation11], 1

// kernel: pointnet_feature_extractor.5
$region0: #{pointnet_feature_extractor.5}
  #allocation0 [shape = 'u32[]', space=smem, size = 0x4, offset = 0x4, fixed_abs, tag = 'smem constant byte address 0x4 - core index']
  #allocation1 [shape = 'u32[144,128]{1,0:T(1,128)}', space=vmem, size = 0x12000, scoped, tag = 'internal scratch']
  %s0 = inlined_call_operand.vmem [shape: f32[256,3], index: 0, kind: input, shape index: {}]
  %s1 = inlined_call_operand.vmem [shape: f32[3,64], index: 1, kind: input, shape index: {}]
  %s2 = inlined_call_operand.vmem [shape: f32[1,64], index: 2, kind: input, shape index: {}]
  %s3 = inlined_call_operand.vmem [shape: bf16[64,64], index: 3, kind: input, shape index: {}]
  %s4 = inlined_call_operand.vmem [shape: f32[1,64], index: 4, kind: input, shape index: {}]
  %s5 = inlined_call_operand.vmem [shape: bf16[64,128], index: 5, kind: input, shape index: {}]
  %s6 = inlined_call_operand.vmem [shape: f32[1,128], index: 6, kind: input, shape index: {}]
  %s7 = inlined_call_operand.vmem [shape: f32[8,256], index: 7, kind: input, shape index: {}]
  %s8 = inlined_call_operand.vmem [shape: bf16[128,256], index: 8, kind: input, shape index: {}]
  %s9 = inlined_call_operand.vmem [shape: bf16[256,128], index: 9, kind: input, shape index: {}]
  %s10 = inlined_call_operand.vmem [shape: f32[1,128], index: 10, kind: input, shape index: {}]
  %s11 = inlined_call_operand.vmem [shape: bf16[128,128], index: 11, kind: input, shape index: {}]
  %s12 = inlined_call_operand.vmem [shape: f32[1,128], index: 12, kind: input, shape index: {}]
  %s13 = inlined_call_operand.hbm [shape: f32[256,128], index: 13, kind: output, shape index: {}]
  %s14 = sld [smem:[#allocation0]]
  $region85: #{pointnet_feature_extractor.5} parent=0
    _
  %s16 = ssub.s32 1, %s14
  %s17 = scalar_select 0, %s16, %s14
  $region1: #{pointnet_feature_extractor.5} parent=0
    #allocation2 [shape = 'u8[131072]{0}', space=vmem, size = 0x20000, scoped, tag = 'output window, operand 0']
    #allocation3 [shape = 's32[2]{0}', space=sflag, size = 0x8, scoped, tag = 'scoped memory for pointnet_feature_extractor.5']
    %18 = vsyncpa [#allocation3], 0
    %s19 = scalar_lea.sflag [#allocation3], 1
    %20 = vsyncpa %s19, 0
    loop: start=0, step=1, limit=4
    $region2: #{pointnet_feature_extractor.5} parent=1 // loop_pre_header
      _
    $region3: #{pointnet_feature_extractor.5} parent=1 // loop_header
      %s22 = sphi 0, %s26
      %p23 = scmp.ge.s32.totalorder %s22, 4
      %s32 = sphi 0, %s34
      %s35 = sphi 0, %s32
      %s36 = sphi 0, %s35
      %s52 = sphi 0, %s36
      %s56 = sphi 0, %s56
      %s58 = sphi 0, %s56
      %s59 = sphi 0, %s58
      %s73 = sphi 0, %s59
      %s77 = sphi 0, %s77
      %s79 = sphi 0, %s77
      %s80 = sphi 0, %s79
      %s94 = sphi 0, %s80
      %s98 = sphi 0, %s98
      %s100 = sphi 0, %s98
      %s101 = sphi 0, %s100
      %s115 = sphi 0, %s101
      %s119 = sphi 0, %s119
      %s121 = sphi 0, %s119
      %s122 = sphi 0, %s121
      %s136 = sphi 0, %s122
      %s140 = sphi 0, %s140
      %s142 = sphi 0, %s140
      %s143 = sphi 0, %s142
      %s157 = sphi 0, %s143
      %s161 = sphi 0, %s161
      %s163 = sphi 0, %s161
      %s164 = sphi 0, %s163
      %s178 = sphi 0, %s164
      %s182 = sphi 0, %s182
      %s184 = sphi 0, %s182
      %s185 = sphi 0, %s184
      %s199 = sphi 0, %s185
      %s203 = sphi 0, %s203
      %s205 = sphi 0, %s203
      %s206 = sphi 0, %s205
      %s220 = sphi 0, %s206
      %s224 = sphi 0, %s224
      %s226 = sphi 0, %s224
      %s227 = sphi 0, %s226
      %s241 = sphi 0, %s227
      %s245 = sphi 0, %s245
      %s247 = sphi 0, %s245
      %s248 = sphi 0, %s247
      %s262 = sphi 0, %s248
      %s266 = sphi 0, %s266
      %s268 = sphi 0, %s266
      %s269 = sphi 0, %s268
      %s283 = sphi 0, %s269
      %s287 = sphi 0, %s287
      %s289 = sphi 0, %s287
      %s290 = sphi 0, %s289
      %s304 = sphi 0, %s290
      %s310 = sphi 0, %s312
      %s313 = sphi 0, %s310
      %s314 = sphi 0, %s313
      %s330 = sphi 0, %s314
    $region4: #{pointnet_feature_extractor.5} parent=1 // loop_header_branch
      %25 = sbr.rel (%p23) target = $region8
    $region5: #{pointnet_feature_extractor.5} parent=1 // loop_body
      %s27 = ssub.s32 %s22, 1
      %s28 = ssub.s32 %s22, 2
      %s29 = sadd.s32 %s22, 1
      %s30 = ssub.s32 %s22, %s29
      %p31 = scmp.eq.s32.totalorder %s30, 0
      %s33 = sadd.s32 %s32, 1
      %s34 = scalar_select %p31, %s32, %s33
      %p37 = pneg %p31
      %p38 = scmp.eq.s32.totalorder %s22, 1
      %p39 = por %p37, %p38
      %p40 = scmp.ne.s32.totalorder %s32, %s35
      %p41 = scmp.eq.s32.totalorder %s22, 0
      %p42 = por %p40, %p41
      %p43 = scmp.ne.s32.totalorder %s32, %s35
      %p44 = scmp.eq.s32.totalorder %s27, 1
      %p45 = por %p43, %p44
      %p46 = scmp.ne.s32.totalorder %s35, %s36
      %p47 = scmp.eq.s32.totalorder %s27, 0
      %p48 = por %p46, %p47
      %p49 = scmp.ne.s32.totalorder %s35, %s36
      %p50 = scmp.eq.s32.totalorder %s28, 1
      %p51 = por %p49, %p50
      %p53 = scmp.ne.s32.totalorder %s36, %s52
      %p54 = scmp.eq.s32.totalorder %s28, 0
      %p55 = por %p53, %p54
      %s57 = sadd.s32 %s56, 1
      %p60 = scmp.eq.s32.totalorder %s22, 1
      %p61 = scmp.ne.s32.totalorder %s56, %s58
      %p62 = scmp.eq.s32.totalorder %s22, 0
      %p63 = por %p61, %p62
      %p64 = scmp.ne.s32.totalorder %s56, %s58
      %p65 = scmp.eq.s32.totalorder %s27, 1
      %p66 = por %p64, %p65
      %p67 = scmp.ne.s32.totalorder %s58, %s59
      %p68 = scmp.eq.s32.totalorder %s27, 0
      %p69 = por %p67, %p68
      %p70 = scmp.ne.s32.totalorder %s58, %s59
      %p71 = scmp.eq.s32.totalorder %s28, 1
      %p72 = por %p70, %p71
      %p74 = scmp.ne.s32.totalorder %s59, %s73
      %p75 = scmp.eq.s32.totalorder %s28, 0
      %p76 = por %p74, %p75
      %s78 = sadd.s32 %s77, 1
      %p81 = scmp.eq.s32.totalorder %s22, 1
      %p82 = scmp.ne.s32.totalorder %s77, %s79
      %p83 = scmp.eq.s32.totalorder %s22, 0
      %p84 = por %p82, %p83
      %p85 = scmp.ne.s32.totalorder %s77, %s79
      %p86 = scmp.eq.s32.totalorder %s27, 1
      %p87 = por %p85, %p86
      %p88 = scmp.ne.s32.totalorder %s79, %s80
      %p89 = scmp.eq.s32.totalorder %s27, 0
      %p90 = por %p88, %p89
      %p91 = scmp.ne.s32.totalorder %s79, %s80
      %p92 = scmp.eq.s32.totalorder %s28, 1
      %p93 = por %p91, %p92
      %p95 = scmp.ne.s32.totalorder %s80, %s94
      %p96 = scmp.eq.s32.totalorder %s28, 0
      %p97 = por %p95, %p96
      %s99 = sadd.s32 %s98, 1
      %p102 = scmp.eq.s32.totalorder %s22, 1
      %p103 = scmp.ne.s32.totalorder %s98, %s100
      %p104 = scmp.eq.s32.totalorder %s22, 0
      %p105 = por %p103, %p104
      %p106 = scmp.ne.s32.totalorder %s98, %s100
      %p107 = scmp.eq.s32.totalorder %s27, 1
      %p108 = por %p106, %p107
      %p109 = scmp.ne.s32.totalorder %s100, %s101
      %p110 = scmp.eq.s32.totalorder %s27, 0
      %p111 = por %p109, %p110
      %p112 = scmp.ne.s32.totalorder %s100, %s101
      %p113 = scmp.eq.s32.totalorder %s28, 1
      %p114 = por %p112, %p113
      %p116 = scmp.ne.s32.totalorder %s101, %s115
      %p117 = scmp.eq.s32.totalorder %s28, 0
      %p118 = por %p116, %p117
      %s120 = sadd.s32 %s119, 1
      %p123 = scmp.eq.s32.totalorder %s22, 1
      %p124 = scmp.ne.s32.totalorder %s119, %s121
      %p125 = scmp.eq.s32.totalorder %s22, 0
      %p126 = por %p124, %p125
      %p127 = scmp.ne.s32.totalorder %s119, %s121
      %p128 = scmp.eq.s32.totalorder %s27, 1
      %p129 = por %p127, %p128
      %p130 = scmp.ne.s32.totalorder %s121, %s122
      %p131 = scmp.eq.s32.totalorder %s27, 0
      %p132 = por %p130, %p131
      %p133 = scmp.ne.s32.totalorder %s121, %s122
      %p134 = scmp.eq.s32.totalorder %s28, 1
      %p135 = por %p133, %p134
      %p137 = scmp.ne.s32.totalorder %s122, %s136
      %p138 = scmp.eq.s32.totalorder %s28, 0
      %p139 = por %p137, %p138
      %s141 = sadd.s32 %s140, 1
      %p144 = scmp.eq.s32.totalorder %s22, 1
      %p145 = scmp.ne.s32.totalorder %s140, %s142
      %p146 = scmp.eq.s32.totalorder %s22, 0
      %p147 = por %p145, %p146
      %p148 = scmp.ne.s32.totalorder %s140, %s142
      %p149 = scmp.eq.s32.totalorder %s27, 1
      %p150 = por %p148, %p149
      %p151 = scmp.ne.s32.totalorder %s142, %s143
      %p152 = scmp.eq.s32.totalorder %s27, 0
      %p153 = por %p151, %p152
      %p154 = scmp.ne.s32.totalorder %s142, %s143
      %p155 = scmp.eq.s32.totalorder %s28, 1
      %p156 = por %p154, %p155
      %p158 = scmp.ne.s32.totalorder %s143, %s157
      %p159 = scmp.eq.s32.totalorder %s28, 0
      %p160 = por %p158, %p159
      %s162 = sadd.s32 %s161, 1
      %p165 = scmp.eq.s32.totalorder %s22, 1
      %p166 = scmp.ne.s32.totalorder %s161, %s163
      %p167 = scmp.eq.s32.totalorder %s22, 0
      %p168 = por %p166, %p167
      %p169 = scmp.ne.s32.totalorder %s161, %s163
      %p170 = scmp.eq.s32.totalorder %s27, 1
      %p171 = por %p169, %p170
      %p172 = scmp.ne.s32.totalorder %s163, %s164
      %p173 = scmp.eq.s32.totalorder %s27, 0
      %p174 = por %p172, %p173
      %p175 = scmp.ne.s32.totalorder %s163, %s164
      %p176 = scmp.eq.s32.totalorder %s28, 1
      %p177 = por %p175, %p176
      %p179 = scmp.ne.s32.totalorder %s164, %s178
      %p180 = scmp.eq.s32.totalorder %s28, 0
      %p181 = por %p179, %p180
      %s183 = sadd.s32 %s182, 1
      %p186 = scmp.eq.s32.totalorder %s22, 1
      %p187 = scmp.ne.s32.totalorder %s182, %s184
      %p188 = scmp.eq.s32.totalorder %s22, 0
      %p189 = por %p187, %p188
      %p190 = scmp.ne.s32.totalorder %s182, %s184
      %p191 = scmp.eq.s32.totalorder %s27, 1
      %p192 = por %p190, %p191
      %p193 = scmp.ne.s32.totalorder %s184, %s185
      %p194 = scmp.eq.s32.totalorder %s27, 0
      %p195 = por %p193, %p194
      %p196 = scmp.ne.s32.totalorder %s184, %s185
      %p197 = scmp.eq.s32.totalorder %s28, 1
      %p198 = por %p196, %p197
      %p200 = scmp.ne.s32.totalorder %s185, %s199
      %p201 = scmp.eq.s32.totalorder %s28, 0
      %p202 = por %p200, %p201
      %s204 = sadd.s32 %s203, 1
      %p207 = scmp.eq.s32.totalorder %s22, 1
      %p208 = scmp.ne.s32.totalorder %s203, %s205
      %p209 = scmp.eq.s32.totalorder %s22, 0
      %p210 = por %p208, %p209
      %p211 = scmp.ne.s32.totalorder %s203, %s205
      %p212 = scmp.eq.s32.totalorder %s27, 1
      %p213 = por %p211, %p212
      %p214 = scmp.ne.s32.totalorder %s205, %s206
      %p215 = scmp.eq.s32.totalorder %s27, 0
      %p216 = por %p214, %p215
      %p217 = scmp.ne.s32.totalorder %s205, %s206
      %p218 = scmp.eq.s32.totalorder %s28, 1
      %p219 = por %p217, %p218
      %p221 = scmp.ne.s32.totalorder %s206, %s220
      %p222 = scmp.eq.s32.totalorder %s28, 0
      %p223 = por %p221, %p222
      %s225 = sadd.s32 %s224, 1
      %p228 = scmp.eq.s32.totalorder %s22, 1
      %p229 = scmp.ne.s32.totalorder %s224, %s226
      %p230 = scmp.eq.s32.totalorder %s22, 0
      %p231 = por %p229, %p230
      %p232 = scmp.ne.s32.totalorder %s224, %s226
      %p233 = scmp.eq.s32.totalorder %s27, 1
      %p234 = por %p232, %p233
      %p235 = scmp.ne.s32.totalorder %s226, %s227
      %p236 = scmp.eq.s32.totalorder %s27, 0
      %p237 = por %p235, %p236
      %p238 = scmp.ne.s32.totalorder %s226, %s227
      %p239 = scmp.eq.s32.totalorder %s28, 1
      %p240 = por %p238, %p239
      %p242 = scmp.ne.s32.totalorder %s227, %s241
      %p243 = scmp.eq.s32.totalorder %s28, 0
      %p244 = por %p242, %p243
      %s246 = sadd.s32 %s245, 1
      %p249 = scmp.eq.s32.totalorder %s22, 1
      %p250 = scmp.ne.s32.totalorder %s245, %s247
      %p251 = scmp.eq.s32.totalorder %s22, 0
      %p252 = por %p250, %p251
      %p253 = scmp.ne.s32.totalorder %s245, %s247
      %p254 = scmp.eq.s32.totalorder %s27, 1
      %p255 = por %p253, %p254
      %p256 = scmp.ne.s32.totalorder %s247, %s248
      %p257 = scmp.eq.s32.totalorder %s27, 0
      %p258 = por %p256, %p257
      %p259 = scmp.ne.s32.totalorder %s247, %s248
      %p260 = scmp.eq.s32.totalorder %s28, 1
      %p261 = por %p259, %p260
      %p263 = scmp.ne.s32.totalorder %s248, %s262
      %p264 = scmp.eq.s32.totalorder %s28, 0
      %p265 = por %p263, %p264
      %s267 = sadd.s32 %s266, 1
      %p270 = scmp.eq.s32.totalorder %s22, 1
      %p271 = scmp.ne.s32.totalorder %s266, %s268
      %p272 = scmp.eq.s32.totalorder %s22, 0
      %p273 = por %p271, %p272
      %p274 = scmp.ne.s32.totalorder %s266, %s268
      %p275 = scmp.eq.s32.totalorder %s27, 1
      %p276 = por %p274, %p275
      %p277 = scmp.ne.s32.totalorder %s268, %s269
      %p278 = scmp.eq.s32.totalorder %s27, 0
      %p279 = por %p277, %p278
      %p280 = scmp.ne.s32.totalorder %s268, %s269
      %p281 = scmp.eq.s32.totalorder %s28, 1
      %p282 = por %p280, %p281
      %p284 = scmp.ne.s32.totalorder %s269, %s283
      %p285 = scmp.eq.s32.totalorder %s28, 0
      %p286 = por %p284, %p285
      %s288 = sadd.s32 %s287, 1
      %p291 = scmp.eq.s32.totalorder %s22, 1
      %p292 = scmp.ne.s32.totalorder %s287, %s289
      %p293 = scmp.eq.s32.totalorder %s22, 0
      %p294 = por %p292, %p293
      %p295 = scmp.ne.s32.totalorder %s287, %s289
      %p296 = scmp.eq.s32.totalorder %s27, 1
      %p297 = por %p295, %p296
      %p298 = scmp.ne.s32.totalorder %s289, %s290
      %p299 = scmp.eq.s32.totalorder %s27, 0
      %p300 = por %p298, %p299
      %p301 = scmp.ne.s32.totalorder %s289, %s290
      %p302 = scmp.eq.s32.totalorder %s28, 1
      %p303 = por %p301, %p302
      %p305 = scmp.ne.s32.totalorder %s290, %s304
      %p306 = scmp.eq.s32.totalorder %s28, 0
      %p307 = por %p305, %p306
      %s308 = ssub.s32 %s22, %s29
      %p309 = scmp.eq.s32.totalorder %s308, 0
      %s311 = sadd.s32 %s310, 1
      %s312 = scalar_select %p309, %s310, %s311
      %p315 = pneg %p309
      %p316 = scmp.eq.s32.totalorder %s22, 1
      %p317 = por %p315, %p316
      %p318 = scmp.ne.s32.totalorder %s310, %s313
      %p319 = scmp.eq.s32.totalorder %s22, 0
      %p320 = por %p318, %p319
      %p321 = scmp.ne.s32.totalorder %s310, %s313
      %p322 = scmp.eq.s32.totalorder %s27, 1
      %p323 = por %p321, %p322
      %p324 = scmp.ne.s32.totalorder %s313, %s314
      %p325 = scmp.eq.s32.totalorder %s27, 0
      %p326 = por %p324, %p325
      %p327 = scmp.ne.s32.totalorder %s313, %s314
      %p328 = scmp.eq.s32.totalorder %s28, 1
      %p329 = por %p327, %p328
      %p331 = scmp.ne.s32.totalorder %s314, %s330
      %p332 = scmp.eq.s32.totalorder %s28, 0
      %p333 = por %p331, %p332
      %p334 = scmp.le.s32.totalorder 1, %s22
      %p335 = scmp.lt.s32.totalorder %s22, 3
      %p336 = pnand %p334, %p335
      %p337 = pneg %p336
      // Predicated region
      $region9: #{pointnet_feature_extractor.5} parent=5 // pred_check
        _
      $region10: #{pointnet_feature_extractor.5} parent=5 // pred_check_branch
        %339 = sbr.rel (%p336) target = $region12
      $region11: #{pointnet_feature_extractor.5} parent=5 // pred_region
        %s340 = ssub.s32 %s22, 1
        // Predicated region
        $region13: #{pointnet_feature_extractor.5} parent=11 // pred_check
          %p341 = pneg %p69
        $region14: #{pointnet_feature_extractor.5} parent=11 // pred_check_branch
          %343 = sbr.rel (%p341) target = $region16
        $region15: #{pointnet_feature_extractor.5} parent=11 // pred_region
          _
        $region16: #{pointnet_feature_extractor.5} parent=11 // pred_fallthru
          _
        // Predicated region
        $region17: #{pointnet_feature_extractor.5} parent=11 // pred_check
          %p344 = pneg %p90
        $region18: #{pointnet_feature_extractor.5} parent=11 // pred_check_branch
          %346 = sbr.rel (%p344) target = $region20
        $region19: #{pointnet_feature_extractor.5} parent=11 // pred_region
          _
        $region20: #{pointnet_feature_extractor.5} parent=11 // pred_fallthru
          _
        // Predicated region
        $region21: #{pointnet_feature_extractor.5} parent=11 // pred_check
          %p347 = pneg %p111
        $region22: #{pointnet_feature_extractor.5} parent=11 // pred_check_branch
          %349 = sbr.rel (%p347) target = $region24
        $region23: #{pointnet_feature_extractor.5} parent=11 // pred_region
          _
        $region24: #{pointnet_feature_extractor.5} parent=11 // pred_fallthru
          _
        // Predicated region
        $region25: #{pointnet_feature_extractor.5} parent=11 // pred_check
          %p350 = pneg %p132
        $region26: #{pointnet_feature_extractor.5} parent=11 // pred_check_branch
          %352 = sbr.rel (%p350) target = $region28
        $region27: #{pointnet_feature_extractor.5} parent=11 // pred_region
          _
        $region28: #{pointnet_feature_extractor.5} parent=11 // pred_fallthru
          _
        // Predicated region
        $region29: #{pointnet_feature_extractor.5} parent=11 // pred_check
          %p353 = pneg %p153
        $region30: #{pointnet_feature_extractor.5} parent=11 // pred_check_branch
          %355 = sbr.rel (%p353) target = $region32
        $region31: #{pointnet_feature_extractor.5} parent=11 // pred_region
          _
        $region32: #{pointnet_feature_extractor.5} parent=11 // pred_fallthru
          _
        // Predicated region
        $region33: #{pointnet_feature_extractor.5} parent=11 // pred_check
          %p356 = pneg %p174
        $region34: #{pointnet_feature_extractor.5} parent=11 // pred_check_branch
          %358 = sbr.rel (%p356) target = $region36
        $region35: #{pointnet_feature_extractor.5} parent=11 // pred_region
          _
        $region36: #{pointnet_feature_extractor.5} parent=11 // pred_fallthru
          _
        // Predicated region
        $region37: #{pointnet_feature_extractor.5} parent=11 // pred_check
          %p359 = pneg %p195
        $region38: #{pointnet_feature_extractor.5} parent=11 // pred_check_branch
          %361 = sbr.rel (%p359) target = $region40
        $region39: #{pointnet_feature_extractor.5} parent=11 // pred_region
          _
        $region40: #{pointnet_feature_extractor.5} parent=11 // pred_fallthru
          _
        // Predicated region
        $region41: #{pointnet_feature_extractor.5} parent=11 // pred_check
          %p362 = pneg %p216
        $region42: #{pointnet_feature_extractor.5} parent=11 // pred_check_branch
          %364 = sbr.rel (%p362) target = $region44
        $region43: #{pointnet_feature_extractor.5} parent=11 // pred_region
          _
        $region44: #{pointnet_feature_extractor.5} parent=11 // pred_fallthru
          _
        // Predicated region
        $region45: #{pointnet_feature_extractor.5} parent=11 // pred_check
          %p365 = pneg %p237
        $region46: #{pointnet_feature_extractor.5} parent=11 // pred_check_branch
          %367 = sbr.rel (%p365) target = $region48
        $region47: #{pointnet_feature_extractor.5} parent=11 // pred_region
          _
        $region48: #{pointnet_feature_extractor.5} parent=11 // pred_fallthru
          _
        // Predicated region
        $region49: #{pointnet_feature_extractor.5} parent=11 // pred_check
          %p368 = pneg %p258
        $region50: #{pointnet_feature_extractor.5} parent=11 // pred_check_branch
          %370 = sbr.rel (%p368) target = $region52
        $region51: #{pointnet_feature_extractor.5} parent=11 // pred_region
          _
        $region52: #{pointnet_feature_extractor.5} parent=11 // pred_fallthru
          _
        // Predicated region
        $region53: #{pointnet_feature_extractor.5} parent=11 // pred_check
          %p371 = pneg %p279
        $region54: #{pointnet_feature_extractor.5} parent=11 // pred_check_branch
          %373 = sbr.rel (%p371) target = $region56
        $region55: #{pointnet_feature_extractor.5} parent=11 // pred_region
          _
        $region56: #{pointnet_feature_extractor.5} parent=11 // pred_fallthru
          _
        // Predicated region
        $region57: #{pointnet_feature_extractor.5} parent=11 // pred_check
          %p374 = pneg %p300
        $region58: #{pointnet_feature_extractor.5} parent=11 // pred_check_branch
          %376 = sbr.rel (%p374) target = $region60
        $region59: #{pointnet_feature_extractor.5} parent=11 // pred_region
          _
        $region60: #{pointnet_feature_extractor.5} parent=11 // pred_fallthru
          _
      $region12: #{pointnet_feature_extractor.5} parent=5 // pred_fallthru
        _
      %p377 = scmp.lt.s32.totalorder %s22, 2
      // Predicated region
      $region61: #{pointnet_feature_extractor.5} parent=5 // pred_check
        %p378 = pneg %p377
      $region62: #{pointnet_feature_extractor.5} parent=5 // pred_check_branch
        %380 = sbr.rel (%p378) target = $region64
      $region63: #{pointnet_feature_extractor.5} parent=5 // pred_region
        // Predicated region
        $region65: #{pointnet_feature_extractor.5} parent=63 // pred_check
          %p381 = pneg %p42
        $region66: #{pointnet_feature_extractor.5} parent=63 // pred_check_branch
          %383 = sbr.rel (%p381) target = $region68
        $region67: #{pointnet_feature_extractor.5} parent=63 // pred_region
          %s384 = smul.u32 16, %s22
          %p385 = scmp.lt.s32.totalorder %s384, 31
          %s386 = scalar_select %p385, %s384, 31
          %s387 = smul.addr %s386, 8
          %s388 = scalar_lea.vmem %s0, %s387
          %s389 = smul.u32 16, %s22
        $region68: #{pointnet_feature_extractor.5} parent=63 // pred_fallthru
          _
      $region64: #{pointnet_feature_extractor.5} parent=5 // pred_fallthru
        _
      %p390 = scmp.le.s32.totalorder 1, %s22
      %p391 = scmp.lt.s32.totalorder %s22, 3
      %p392 = pnand %p390, %p391
      %p393 = pneg %p392
      // Predicated region
      $region69: #{pointnet_feature_extractor.5} parent=5 // pred_check
        _
      $region70: #{pointnet_feature_extractor.5} parent=5 // pred_check_branch
        %395 = sbr.rel (%p392) target = $region72
      $region71: #{pointnet_feature_extractor.5} parent=5 // pred_region
        %s396 = ssub.s32 %s22, 1
        %s397 = smul.u32 16, %s27
        %p398 = scmp.lt.s32.totalorder %s397, 31
        %s399 = scalar_select %p398, %s397, 31
        %s400 = smul.addr %s399, 8
        %s401 = scalar_lea.vmem %s0, %s400
        %p402 = pneg %p48
        %p403 = pneg %p45
        %p404 = pneg %p69
        %p405 = pneg %p66
        %p406 = pneg %p90
        %p407 = pneg %p87
        %p408 = pneg %p111
        %p409 = pneg %p108
        %p410 = pneg %p132
        %p411 = pneg %p129
        %p412 = pneg %p153
        %p413 = pneg %p150
        %p414 = pneg %p174
        %p415 = pneg %p171
        %p416 = pneg %p195
        %p417 = pneg %p192
        %p418 = pneg %p216
        %p419 = pneg %p213
        %p420 = pneg %p237
        %p421 = pneg %p234
        %p422 = pneg %p258
        %p423 = pneg %p255
        %p424 = pneg %p279
        %p425 = pneg %p276
        %p426 = pneg %p300
        %p427 = pneg %p297
        %p428 = pneg %p326
        %p429 = pneg %p323
        %s430 = sand.u32 %s313, 1
        %s431 = scalar_lea.sflag [#allocation3], %s430
        %s432 = sand.u32 %s313, 1
        %s433 = smul.addr %s432, 128
        %s434 = scalar_lea.vmem [#allocation2], %s433
        %s435 = smul.u32 16, %s27
        %p436 = scmp.lt.s32.totalorder %s435, 31
        %s437 = scalar_select %p436, %s435, 31
        %s438 = smul.addr %s437, 8
        %s439 = scalar_lea.vmem %s0, %s438
        %s440 = smul.u32 16, %s27
        %s441 = smul.u32 16, %s27
        %v443 = vld [vmem:[%s439] sm:$0xff]
        %v444 = vld [vmem:[%s439 + $0x8] sm:$0xff]
        %v445 = vld [vmem:[%s439 + $0x10] sm:$0xff]
        %v446 = vld [vmem:[%s439 + $0x18] sm:$0xff]
        %v447 = vld [vmem:[%s439 + $0x20] sm:$0xff]
        %v448 = vld [vmem:[%s439 + $0x28] sm:$0xff]
        %v449 = vld [vmem:[%s439 + $0x30] sm:$0xff]
        %v450 = vld [vmem:[%s439 + $0x38] sm:$0xff]
        %v451 = vld [vmem:[%s439 + $0x40] sm:$0xff]
        %v452 = vld [vmem:[%s439 + $0x48] sm:$0xff]
        %v453 = vld [vmem:[%s439 + $0x50] sm:$0xff]
        %v454 = vld [vmem:[%s439 + $0x58] sm:$0xff]
        %v455 = vld [vmem:[%s439 + $0x60] sm:$0xff]
        %v456 = vld [vmem:[%s439 + $0x68] sm:$0xff]
        %v457 = vld [vmem:[%s439 + $0x70] sm:$0xff]
        %v458 = vld [vmem:[%s439 + $0x78] sm:$0xff]
        %v459 = vld [vmem:[%s1] sm:$0x7]
        %v460 = vld [vmem:[%s2] sm:$0x1]
        %462 = vset.pattern.permute.xlu0 0
        %463 = vperm.xlu0 %462, %v443
        %v464 = vpop.permute.xlu0 %463
        %467 = vset.pattern.permute.xlu0 0
        %468 = vperm.xlu0 %467, %v444
        %v469 = vpop.permute.xlu0 %468
        %472 = vset.pattern.permute.xlu0 0
        %473 = vperm.xlu0 %472, %v445
        %v474 = vpop.permute.xlu0 %473
        %477 = vset.pattern.permute.xlu0 0
        %478 = vperm.xlu0 %477, %v446
        %v479 = vpop.permute.xlu0 %478
        %482 = vset.pattern.permute.xlu0 0
        %483 = vperm.xlu0 %482, %v447
        %v484 = vpop.permute.xlu0 %483
        %487 = vset.pattern.permute.xlu0 0
        %488 = vperm.xlu0 %487, %v448
        %v489 = vpop.permute.xlu0 %488
        %492 = vset.pattern.permute.xlu0 0
        %493 = vperm.xlu0 %492, %v449
        %v494 = vpop.permute.xlu0 %493
        %497 = vset.pattern.permute.xlu0 0
        %498 = vperm.xlu0 %497, %v450
        %v499 = vpop.permute.xlu0 %498
        %502 = vset.pattern.permute.xlu0 0
        %503 = vperm.xlu0 %502, %v451
        %v504 = vpop.permute.xlu0 %503
        %507 = vset.pattern.permute.xlu0 0
        %508 = vperm.xlu0 %507, %v452
        %v509 = vpop.permute.xlu0 %508
        %512 = vset.pattern.permute.xlu0 0
        %513 = vperm.xlu0 %512, %v453
        %v514 = vpop.permute.xlu0 %513
        %517 = vset.pattern.permute.xlu0 0
        %518 = vperm.xlu0 %517, %v454
        %v519 = vpop.permute.xlu0 %518
        %522 = vset.pattern.permute.xlu0 0
        %523 = vperm.xlu0 %522, %v455
        %v524 = vpop.permute.xlu0 %523
        %527 = vset.pattern.permute.xlu0 0
        %528 = vperm.xlu0 %527, %v456
        %v529 = vpop.permute.xlu0 %528
        %532 = vset.pattern.permute.xlu0 0
        %533 = vperm.xlu0 %532, %v457
        %v534 = vpop.permute.xlu0 %533
        %537 = vset.pattern.permute.xlu0 0
        %538 = vperm.xlu0 %537, %v458
        %v539 = vpop.permute.xlu0 %538
        %v541 = vlaneseq
        %v542 = vshrl.u32 %v541, 7
        %v543 = vsub.s32 0, %v542
        %v544 = vrot.slane %v459, %v543
        %v545 = vmul.f32 %v464, %v544
        %v546 = vmul.f32 %v469, %v544
        %v547 = vmul.f32 %v474, %v544
        %v548 = vmul.f32 %v479, %v544
        %v549 = vmul.f32 %v484, %v544
        %v550 = vmul.f32 %v489, %v544
        %v551 = vmul.f32 %v494, %v544
        %v552 = vmul.f32 %v499, %v544
        %v553 = vmul.f32 %v504, %v544
        %v554 = vmul.f32 %v509, %v544
        %v555 = vmul.f32 %v514, %v544
        %v556 = vmul.f32 %v519, %v544
        %v557 = vmul.f32 %v524, %v544
        %v558 = vmul.f32 %v529, %v544
        %v559 = vmul.f32 %v534, %v544
        %v560 = vmul.f32 %v539, %v544
        %v562 = vlaneseq
        %v563 = vshrl.u32 %v562, 7
        %v564 = vsub.s32 0, %v563
        %v565 = vrot.slane %v460, %v564
        %v567 = vadd.f32 %v565, %v545
        %v568 = vadd.f32 %v565, %v546
        %v569 = vadd.f32 %v565, %v547
        %v570 = vadd.f32 %v565, %v548
        %v571 = vadd.f32 %v565, %v549
        %v572 = vadd.f32 %v565, %v550
        %v573 = vadd.f32 %v565, %v551
        %v574 = vadd.f32 %v565, %v552
        %v575 = vadd.f32 %v565, %v553
        %v576 = vadd.f32 %v565, %v554
        %v577 = vadd.f32 %v565, %v555
        %v578 = vadd.f32 %v565, %v556
        %v579 = vadd.f32 %v565, %v557
        %v580 = vadd.f32 %v565, %v558
        %v581 = vadd.f32 %v565, %v559
        %v582 = vadd.f32 %v565, %v560
        %583 = vset.pattern.permute.xlu0 1
        %584 = vperm.xlu0 %583, %v443
        %v585 = vpop.permute.xlu0 %584
        %587 = vset.pattern.permute.xlu0 1
        %588 = vperm.xlu0 %587, %v444
        %v589 = vpop.permute.xlu0 %588
        %591 = vset.pattern.permute.xlu0 1
        %592 = vperm.xlu0 %591, %v445
        %v593 = vpop.permute.xlu0 %592
        %595 = vset.pattern.permute.xlu0 1
        %596 = vperm.xlu0 %595, %v446
        %v597 = vpop.permute.xlu0 %596
        %599 = vset.pattern.permute.xlu0 1
        %600 = vperm.xlu0 %599, %v447
        %v601 = vpop.permute.xlu0 %600
        %603 = vset.pattern.permute.xlu0 1
        %604 = vperm.xlu0 %603, %v448
        %v605 = vpop.permute.xlu0 %604
        %607 = vset.pattern.permute.xlu0 1
        %608 = vperm.xlu0 %607, %v449
        %v609 = vpop.permute.xlu0 %608
        %611 = vset.pattern.permute.xlu0 1
        %612 = vperm.xlu0 %611, %v450
        %v613 = vpop.permute.xlu0 %612
        %615 = vset.pattern.permute.xlu0 1
        %616 = vperm.xlu0 %615, %v451
        %v617 = vpop.permute.xlu0 %616
        %619 = vset.pattern.permute.xlu0 1
        %620 = vperm.xlu0 %619, %v452
        %v621 = vpop.permute.xlu0 %620
        %623 = vset.pattern.permute.xlu0 1
        %624 = vperm.xlu0 %623, %v453
        %v625 = vpop.permute.xlu0 %624
        %627 = vset.pattern.permute.xlu0 1
        %628 = vperm.xlu0 %627, %v454
        %v629 = vpop.permute.xlu0 %628
        %631 = vset.pattern.permute.xlu0 1
        %632 = vperm.xlu0 %631, %v455
        %v633 = vpop.permute.xlu0 %632
        %635 = vset.pattern.permute.xlu0 1
        %636 = vperm.xlu0 %635, %v456
        %v637 = vpop.permute.xlu0 %636
        %639 = vset.pattern.permute.xlu0 1
        %640 = vperm.xlu0 %639, %v457
        %v641 = vpop.permute.xlu0 %640
        %643 = vset.pattern.permute.xlu0 1
        %644 = vperm.xlu0 %643, %v458
        %v645 = vpop.permute.xlu0 %644
        %v647 = vlaneseq
        %v648 = vshrl.u32 %v647, 7
        %v649 = vsub.s32 1, %v648
        %v650 = vrot.slane %v459, %v649
        %v651 = vmul.f32 %v585, %v650
        %v652 = vmul.f32 %v589, %v650
        %v653 = vmul.f32 %v593, %v650
        %v654 = vmul.f32 %v597, %v650
        %v655 = vmul.f32 %v601, %v650
        %v656 = vmul.f32 %v605, %v650
        %v657 = vmul.f32 %v609, %v650
        %v658 = vmul.f32 %v613, %v650
        %v659 = vmul.f32 %v617, %v650
        %v660 = vmul.f32 %v621, %v650
        %v661 = vmul.f32 %v625, %v650
        %v662 = vmul.f32 %v629, %v650
        %v663 = vmul.f32 %v633, %v650
        %v664 = vmul.f32 %v637, %v650
        %v665 = vmul.f32 %v641, %v650
        %v666 = vmul.f32 %v645, %v650
        %v667 = vadd.f32 %v567, %v651
        %v668 = vadd.f32 %v568, %v652
        %v669 = vadd.f32 %v569, %v653
        %v670 = vadd.f32 %v570, %v654
        %v671 = vadd.f32 %v571, %v655
        %v672 = vadd.f32 %v572, %v656
        %v673 = vadd.f32 %v573, %v657
        %v674 = vadd.f32 %v574, %v658
        %v675 = vadd.f32 %v575, %v659
        %v676 = vadd.f32 %v576, %v660
        %v677 = vadd.f32 %v577, %v661
        %v678 = vadd.f32 %v578, %v662
        %v679 = vadd.f32 %v579, %v663
        %v680 = vadd.f32 %v580, %v664
        %v681 = vadd.f32 %v581, %v665
        %v682 = vadd.f32 %v582, %v666
        %683 = vset.pattern.permute.xlu0 2
        %684 = vperm.xlu0 %683, %v443
        %v685 = vpop.permute.xlu0 %684
        %687 = vset.pattern.permute.xlu0 2
        %688 = vperm.xlu0 %687, %v444
        %v689 = vpop.permute.xlu0 %688
        %691 = vset.pattern.permute.xlu0 2
        %692 = vperm.xlu0 %691, %v445
        %v693 = vpop.permute.xlu0 %692
        %695 = vset.pattern.permute.xlu0 2
        %696 = vperm.xlu0 %695, %v446
        %v697 = vpop.permute.xlu0 %696
        %699 = vset.pattern.permute.xlu0 2
        %700 = vperm.xlu0 %699, %v447
        %v701 = vpop.permute.xlu0 %700
        %703 = vset.pattern.permute.xlu0 2
        %704 = vperm.xlu0 %703, %v448
        %v705 = vpop.permute.xlu0 %704
        %707 = vset.pattern.permute.xlu0 2
        %708 = vperm.xlu0 %707, %v449
        %v709 = vpop.permute.xlu0 %708
        %711 = vset.pattern.permute.xlu0 2
        %712 = vperm.xlu0 %711, %v450
        %v713 = vpop.permute.xlu0 %712
        %715 = vset.pattern.permute.xlu0 2
        %716 = vperm.xlu0 %715, %v451
        %v717 = vpop.permute.xlu0 %716
        %719 = vset.pattern.permute.xlu0 2
        %720 = vperm.xlu0 %719, %v452
        %v721 = vpop.permute.xlu0 %720
        %723 = vset.pattern.permute.xlu0 2
        %724 = vperm.xlu0 %723, %v453
        %v725 = vpop.permute.xlu0 %724
        %727 = vset.pattern.permute.xlu0 2
        %728 = vperm.xlu0 %727, %v454
        %v729 = vpop.permute.xlu0 %728
        %731 = vset.pattern.permute.xlu0 2
        %732 = vperm.xlu0 %731, %v455
        %v733 = vpop.permute.xlu0 %732
        %735 = vset.pattern.permute.xlu0 2
        %736 = vperm.xlu0 %735, %v456
        %v737 = vpop.permute.xlu0 %736
        %739 = vset.pattern.permute.xlu0 2
        %740 = vperm.xlu0 %739, %v457
        %v741 = vpop.permute.xlu0 %740
        %743 = vset.pattern.permute.xlu0 2
        %744 = vperm.xlu0 %743, %v458
        %v745 = vpop.permute.xlu0 %744
        %v747 = vlaneseq
        %v748 = vshrl.u32 %v747, 7
        %v749 = vsub.s32 2, %v748
        %v750 = vrot.slane %v459, %v749
        %v751 = vmul.f32 %v685, %v750
        %v752 = vmul.f32 %v689, %v750
        %v753 = vmul.f32 %v693, %v750
        %v754 = vmul.f32 %v697, %v750
        %v755 = vmul.f32 %v701, %v750
        %v756 = vmul.f32 %v705, %v750
        %v757 = vmul.f32 %v709, %v750
        %v758 = vmul.f32 %v713, %v750
        %v759 = vmul.f32 %v717, %v750
        %v760 = vmul.f32 %v721, %v750
        %v761 = vmul.f32 %v725, %v750
        %v762 = vmul.f32 %v729, %v750
        %v763 = vmul.f32 %v733, %v750
        %v764 = vmul.f32 %v737, %v750
        %v765 = vmul.f32 %v741, %v750
        %v766 = vmul.f32 %v745, %v750
        %v767 = vadd.f32 %v667, %v751
        %v768 = vadd.f32 %v668, %v752
        %v769 = vadd.f32 %v669, %v753
        %v770 = vadd.f32 %v670, %v754
        %v771 = vadd.f32 %v671, %v755
        %v772 = vadd.f32 %v672, %v756
        %v773 = vadd.f32 %v673, %v757
        %v774 = vadd.f32 %v674, %v758
        %v775 = vadd.f32 %v675, %v759
        %v776 = vadd.f32 %v676, %v760
        %v777 = vadd.f32 %v677, %v761
        %v778 = vadd.f32 %v678, %v762
        %v779 = vadd.f32 %v679, %v763
        %v780 = vadd.f32 %v680, %v764
        %v781 = vadd.f32 %v681, %v765
        %v782 = vadd.f32 %v682, %v766
        %v783 = vmax.f32 %v767, 0.0
        %v784 = vmax.f32 %v768, 0.0
        %v785 = vmax.f32 %v769, 0.0
        %v786 = vmax.f32 %v770, 0.0
        %v787 = vmax.f32 %v771, 0.0
        %v788 = vmax.f32 %v772, 0.0
        %v789 = vmax.f32 %v773, 0.0
        %v790 = vmax.f32 %v774, 0.0
        %v791 = vmax.f32 %v775, 0.0
        %v792 = vmax.f32 %v776, 0.0
        %v793 = vmax.f32 %v777, 0.0
        %v794 = vmax.f32 %v778, 0.0
        %v795 = vmax.f32 %v779, 0.0
        %v796 = vmax.f32 %v780, 0.0
        %v797 = vmax.f32 %v781, 0.0
        %v798 = vmax.f32 %v782, 0.0
        %v799 = vpack.c.bf16 %v784, %v783
        %v800 = vpack.c.bf16 %v786, %v785
        %v801 = vpack.c.bf16 %v788, %v787
        %v802 = vpack.c.bf16 %v790, %v789
        %v803 = vpack.c.bf16 %v792, %v791
        %v804 = vpack.c.bf16 %v794, %v793
        %v805 = vpack.c.bf16 %v796, %v795
        %v806 = vpack.c.bf16 %v798, %v797
        %v807 = vld [vmem:[%s3] sm:$0xf]
        %v808 = vld [vmem:[%s3 + $0x4] sm:$0xf]
        %v809 = vld [vmem:[%s3 + $0x8] sm:$0xf]
        %v810 = vld [vmem:[%s3 + $0xc] sm:$0xf]
        %v811 = vld [vmem:[%s3 + $0x10] sm:$0xf]
        %v812 = vld [vmem:[%s3 + $0x14] sm:$0xf]
        %v813 = vld [vmem:[%s3 + $0x18] sm:$0xf]
        %v814 = vld [vmem:[%s3 + $0x1c] sm:$0xf]
        %v815 = vld [vmem:[%s4] sm:$0x1]
        %v817 = vlaneseq
        %v818 = vshrl.u32 %v817, 7
        %v819 = vsub.s32 0, %v818
        %v820 = vrot.slane %v815, %v819
        %v830 = vunpack.c.l.b16 %v807
        %v831 = vunpack.c.l.b16 %v808
        %v832 = vunpack.c.l.b16 %v809
        %v833 = vunpack.c.l.b16 %v810
        %v834 = vunpack.c.l.b16 %v811
        %v835 = vunpack.c.l.b16 %v812
        %v836 = vunpack.c.l.b16 %v813
        %v837 = vunpack.c.l.b16 %v814
        %v838 = vpack.c.b16 %v831, %v830
        %v839 = vpack.c.b16 %v833, %v832
        %v840 = vpack.c.b16 %v835, %v834
        %v841 = vpack.c.b16 %v837, %v836
        %vm846 = vcmask 523264
        %v848 = vsel %vm846, %v799, 0
        %v851 = vsel %vm846, %v800, 0
        %v854 = vsel %vm846, %v801, 0
        %v857 = vsel %vm846, %v802, 0
        %v860 = vsel %vm846, %v803, 0
        %v863 = vsel %vm846, %v804, 0
        %v866 = vsel %vm846, %v805, 0
        %v869 = vsel %vm846, %v806, 0
        %871 = vmatprep.subr.bf16.mxu0 0
        %872 = vmatpush1.bf16.msra.mxu0 %v838
        %873 = vmatprep.subr.bf16.mxu0 0
        %874 = vmatpush1.bf16.msra.mxu0 %v839
        %875 = vmatprep.subr.bf16.mxu0 0
        %876 = vmatpush1.bf16.msra.mxu0 %v840
        %877 = vmatprep.subr.bf16.mxu0 0
        %878 = vmatpush1.bf16.msra.mxu0 %v841
        %879 = vmatprep.subr.bf16.mxu0 0
        %880 = vmatpush1.bf16.msra.mxu0 0
        %881 = vmatprep.subr.bf16.mxu0 0
        %882 = vmatpush1.bf16.msra.mxu0 0
        %883 = vmatprep.subr.bf16.mxu0 0
        %884 = vmatpush1.bf16.msra.mxu0 0
        %885 = vmatprep.subr.bf16.mxu0 0
        %886 = vmatpush1.bf16.msra.mxu0 0
        %887 = vmatprep.subr.bf16.mxu0 0
        %888 = vmatpush1.bf16.msra.mxu0 0
        %889 = vmatprep.subr.bf16.mxu0 0
        %890 = vmatpush1.bf16.msra.mxu0 0
        %891 = vmatprep.subr.bf16.mxu0 0
        %892 = vmatpush1.bf16.msra.mxu0 0
        %893 = vmatprep.subr.bf16.mxu0 0
        %894 = vmatpush1.bf16.msra.mxu0 0
        %895 = vmatprep.subr.bf16.mxu0 0
        %896 = vmatpush1.bf16.msra.mxu0 0
        %897 = vmatprep.subr.bf16.mxu0 0
        %898 = vmatpush1.bf16.msra.mxu0 0
        %899 = vmatprep.subr.bf16.mxu0 0
        %900 = vmatpush1.bf16.msra.mxu0 0
        %901 = vmatprep.subr.bf16.mxu0 0
        %902 = vmatpush1.bf16.msra.mxu0 0
        %903 = vmatprep.mubr.bf16.mxu0 0
        %904 = vmatmul.mubr.bf16.gmra.mrb[0].mxu0 %v848
        %v905 = vpop.f32.mrb[0].mxu0
        %v906 = vadd.f32 %v820, %v905
        %v907 = vpop.f32.mrb[0].mxu0
        %v908 = vpop.f32.mrb[0].mxu0
        %v909 = vadd.f32 %v820, %v908
        %v910 = vpop.f32.mrb[0].mxu0
        %911 = vmatprep.mubr.bf16.mxu0 0
        %912 = vmatmul.mubr.bf16.gmra.mrb[0].mxu0 %v851
        %v913 = vpop.f32.mrb[0].mxu0
        %v914 = vadd.f32 %v820, %v913
        %v915 = vpop.f32.mrb[0].mxu0
        %v916 = vpop.f32.mrb[0].mxu0
        %v917 = vadd.f32 %v820, %v916
        %v918 = vpop.f32.mrb[0].mxu0
        %919 = vmatprep.mubr.bf16.mxu0 0
        %920 = vmatmul.mubr.bf16.gmra.mrb[0].mxu0 %v854
        %v921 = vpop.f32.mrb[0].mxu0
        %v922 = vadd.f32 %v820, %v921
        %v923 = vpop.f32.mrb[0].mxu0
        %v924 = vpop.f32.mrb[0].mxu0
        %v925 = vadd.f32 %v820, %v924
        %v926 = vpop.f32.mrb[0].mxu0
        %927 = vmatprep.mubr.bf16.mxu0 0
        %928 = vmatmul.mubr.bf16.gmra.mrb[0].mxu0 %v857
        %v929 = vpop.f32.mrb[0].mxu0
        %v930 = vadd.f32 %v820, %v929
        %v931 = vpop.f32.mrb[0].mxu0
        %v932 = vpop.f32.mrb[0].mxu0
        %v933 = vadd.f32 %v820, %v932
        %v934 = vpop.f32.mrb[0].mxu0
        %935 = vmatprep.mubr.bf16.mxu0 0
        %936 = vmatmul.mubr.bf16.gmra.mrb[0].mxu0 %v860
        %v937 = vpop.f32.mrb[0].mxu0
        %v938 = vadd.f32 %v820, %v937
        %v939 = vpop.f32.mrb[0].mxu0
        %v940 = vpop.f32.mrb[0].mxu0
        %v941 = vadd.f32 %v820, %v940
        %v942 = vpop.f32.mrb[0].mxu0
        %943 = vmatprep.mubr.bf16.mxu0 0
        %944 = vmatmul.mubr.bf16.gmra.mrb[0].mxu0 %v863
        %v945 = vpop.f32.mrb[0].mxu0
        %v946 = vadd.f32 %v820, %v945
        %v947 = vpop.f32.mrb[0].mxu0
        %v948 = vpop.f32.mrb[0].mxu0
        %v949 = vadd.f32 %v820, %v948
        %v950 = vpop.f32.mrb[0].mxu0
        %951 = vmatprep.mubr.bf16.mxu0 0
        %952 = vmatmul.mubr.bf16.gmra.mrb[0].mxu0 %v866
        %v953 = vpop.f32.mrb[0].mxu0
        %v954 = vadd.f32 %v820, %v953
        %v955 = vpop.f32.mrb[0].mxu0
        %v956 = vpop.f32.mrb[0].mxu0
        %v957 = vadd.f32 %v820, %v956
        %v958 = vpop.f32.mrb[0].mxu0
        %959 = vmatprep.mubr.bf16.mxu0 0
        %960 = vmatmul.mubr.bf16.gmra.mrb[0].mxu0 %v869
        %v961 = vpop.f32.mrb[0].mxu0
        %v962 = vadd.f32 %v820, %v961
        %v963 = vpop.f32.mrb[0].mxu0
        %v964 = vpop.f32.mrb[0].mxu0
        %v965 = vadd.f32 %v820, %v964
        %v966 = vpop.f32.mrb[0].mxu0
        %967 = vdwg.mxu0
        %v968 = vmax.f32 %v906, 0.0
        %v969 = vmax.f32 %v909, 0.0
        %v970 = vmax.f32 %v914, 0.0
        %v971 = vmax.f32 %v917, 0.0
        %v972 = vmax.f32 %v922, 0.0
        %v973 = vmax.f32 %v925, 0.0
        %v974 = vmax.f32 %v930, 0.0
        %v975 = vmax.f32 %v933, 0.0
        %v976 = vmax.f32 %v938, 0.0
        %v977 = vmax.f32 %v941, 0.0
        %v978 = vmax.f32 %v946, 0.0
        %v979 = vmax.f32 %v949, 0.0
        %v980 = vmax.f32 %v954, 0.0
        %v981 = vmax.f32 %v957, 0.0
        %v982 = vmax.f32 %v962, 0.0
        %v983 = vmax.f32 %v965, 0.0
        %v984 = vpack.c.bf16 %v969, %v968
        %v985 = vpack.c.bf16 %v971, %v970
        %v986 = vpack.c.bf16 %v973, %v972
        %v987 = vpack.c.bf16 %v975, %v974
        %v988 = vpack.c.bf16 %v977, %v976
        %v989 = vpack.c.bf16 %v979, %v978
        %v990 = vpack.c.bf16 %v981, %v980
        %v991 = vpack.c.bf16 %v983, %v982
        %v992 = vld [vmem:[%s5] sm:$0xf]
        %v993 = vld [vmem:[%s5 + $0x4] sm:$0xf]
        %v994 = vld [vmem:[%s5 + $0x8] sm:$0xf]
        %v995 = vld [vmem:[%s5 + $0xc] sm:$0xf]
        %v996 = vld [vmem:[%s5 + $0x10] sm:$0xf]
        %v997 = vld [vmem:[%s5 + $0x14] sm:$0xf]
        %v998 = vld [vmem:[%s5 + $0x18] sm:$0xf]
        %v999 = vld [vmem:[%s5 + $0x1c] sm:$0xf]
        %v1000 = vld [vmem:[%s6] sm:$0x1]
        %v1002 = vlaneseq
        %v1003 = vshrl.u32 %v1002, 7
        %v1004 = vsub.s32 0, %v1003
        %v1005 = vrot.slane %v1000, %v1004
        %v1015 = vunpack.c.l.b16 %v992
        %v1016 = vunpack.c.l.b16 %v993
        %v1017 = vunpack.c.l.b16 %v994
        %v1018 = vunpack.c.l.b16 %v995
        %v1019 = vunpack.c.l.b16 %v996
        %v1020 = vunpack.c.l.b16 %v997
        %v1021 = vunpack.c.l.b16 %v998
        %v1022 = vunpack.c.l.b16 %v999
        %v1023 = vpack.c.b16 %v1016, %v1015
        %v1024 = vpack.c.b16 %v1018, %v1017
        %v1025 = vpack.c.b16 %v1020, %v1019
        %v1026 = vpack.c.b16 %v1022, %v1021
        %v1032 = vsel %vm846, %v984, 0
        %v1035 = vsel %vm846, %v985, 0
        %v1038 = vsel %vm846, %v986, 0
        %v1041 = vsel %vm846, %v987, 0
        %v1044 = vsel %vm846, %v988, 0
        %v1047 = vsel %vm846, %v989, 0
        %v1050 = vsel %vm846, %v990, 0
        %v1053 = vsel %vm846, %v991, 0
        %1055 = vmatprep.subr.bf16.mxu0 0
        %1056 = vmatpush1.bf16.msra.mxu0 %v1023
        %1057 = vmatprep.subr.bf16.mxu0 0
        %1058 = vmatpush1.bf16.msra.mxu0 %v1024
        %1059 = vmatprep.subr.bf16.mxu0 0
        %1060 = vmatpush1.bf16.msra.mxu0 %v1025
        %1061 = vmatprep.subr.bf16.mxu0 0
        %1062 = vmatpush1.bf16.msra.mxu0 %v1026
        %1063 = vmatprep.subr.bf16.mxu0 0
        %1064 = vmatpush1.bf16.msra.mxu0 0
        %1065 = vmatprep.subr.bf16.mxu0 0
        %1066 = vmatpush1.bf16.msra.mxu0 0
        %1067 = vmatprep.subr.bf16.mxu0 0
        %1068 = vmatpush1.bf16.msra.mxu0 0
        %1069 = vmatprep.subr.bf16.mxu0 0
        %1070 = vmatpush1.bf16.msra.mxu0 0
        %1071 = vmatprep.subr.bf16.mxu0 0
        %1072 = vmatpush1.bf16.msra.mxu0 0
        %1073 = vmatprep.subr.bf16.mxu0 0
        %1074 = vmatpush1.bf16.msra.mxu0 0
        %1075 = vmatprep.subr.bf16.mxu0 0
        %1076 = vmatpush1.bf16.msra.mxu0 0
        %1077 = vmatprep.subr.bf16.mxu0 0
        %1078 = vmatpush1.bf16.msra.mxu0 0
        %1079 = vmatprep.subr.bf16.mxu0 0
        %1080 = vmatpush1.bf16.msra.mxu0 0
        %1081 = vmatprep.subr.bf16.mxu0 0
        %1082 = vmatpush1.bf16.msra.mxu0 0
        %1083 = vmatprep.subr.bf16.mxu0 0
        %1084 = vmatpush1.bf16.msra.mxu0 0
        %1085 = vmatprep.subr.bf16.mxu0 0
        %1086 = vmatpush1.bf16.msra.mxu0 0
        %1087 = vmatprep.mubr.bf16.mxu0 0
        %1088 = vmatmul.mubr.bf16.gmra.mrb[0].mxu0 %v1032
        %v1089 = vpop.f32.mrb[0].mxu0
        %v1090 = vadd.f32 %v1005, %v1089
        %v1091 = vpop.f32.mrb[0].mxu0
        %v1092 = vpop.f32.mrb[0].mxu0
        %v1093 = vadd.f32 %v1005, %v1092
        %v1094 = vpop.f32.mrb[0].mxu0
        %1095 = vmatprep.mubr.bf16.mxu0 0
        %1096 = vmatmul.mubr.bf16.gmra.mrb[0].mxu0 %v1035
        %v1097 = vpop.f32.mrb[0].mxu0
        %v1098 = vadd.f32 %v1005, %v1097
        %v1099 = vpop.f32.mrb[0].mxu0
        %v1100 = vpop.f32.mrb[0].mxu0
        %v1101 = vadd.f32 %v1005, %v1100
        %v1102 = vpop.f32.mrb[0].mxu0
        %1103 = vmatprep.mubr.bf16.mxu0 0
        %1104 = vmatmul.mubr.bf16.gmra.mrb[0].mxu0 %v1038
        %v1105 = vpop.f32.mrb[0].mxu0
        %v1106 = vadd.f32 %v1005, %v1105
        %v1107 = vpop.f32.mrb[0].mxu0
        %v1108 = vpop.f32.mrb[0].mxu0
        %v1109 = vadd.f32 %v1005, %v1108
        %v1110 = vpop.f32.mrb[0].mxu0
        %1111 = vmatprep.mubr.bf16.mxu0 0
        %1112 = vmatmul.mubr.bf16.gmra.mrb[0].mxu0 %v1041
        %v1113 = vpop.f32.mrb[0].mxu0
        %v1114 = vadd.f32 %v1005, %v1113
        %v1115 = vpop.f32.mrb[0].mxu0
        %v1116 = vpop.f32.mrb[0].mxu0
        %v1117 = vadd.f32 %v1005, %v1116
        %v1118 = vpop.f32.mrb[0].mxu0
        %1119 = vmatprep.mubr.bf16.mxu0 0
        %1120 = vmatmul.mubr.bf16.gmra.mrb[0].mxu0 %v1044
        %v1121 = vpop.f32.mrb[0].mxu0
        %v1122 = vadd.f32 %v1005, %v1121
        %v1123 = vpop.f32.mrb[0].mxu0
        %v1124 = vpop.f32.mrb[0].mxu0
        %v1125 = vadd.f32 %v1005, %v1124
        %v1126 = vpop.f32.mrb[0].mxu0
        %1127 = vmatprep.mubr.bf16.mxu0 0
        %1128 = vmatmul.mubr.bf16.gmra.mrb[0].mxu0 %v1047
        %v1129 = vpop.f32.mrb[0].mxu0
        %v1130 = vadd.f32 %v1005, %v1129
        %v1131 = vpop.f32.mrb[0].mxu0
        %v1132 = vpop.f32.mrb[0].mxu0
        %v1133 = vadd.f32 %v1005, %v1132
        %v1134 = vpop.f32.mrb[0].mxu0
        %1135 = vmatprep.mubr.bf16.mxu0 0
        %1136 = vmatmul.mubr.bf16.gmra.mrb[0].mxu0 %v1050
        %v1137 = vpop.f32.mrb[0].mxu0
        %v1138 = vadd.f32 %v1005, %v1137
        %v1139 = vpop.f32.mrb[0].mxu0
        %v1140 = vpop.f32.mrb[0].mxu0
        %v1141 = vadd.f32 %v1005, %v1140
        %v1142 = vpop.f32.mrb[0].mxu0
        %1143 = vmatprep.mubr.bf16.mxu0 0
        %1144 = vmatmul.mubr.bf16.gmra.mrb[0].mxu0 %v1053
        %v1145 = vpop.f32.mrb[0].mxu0
        %v1146 = vadd.f32 %v1005, %v1145
        %v1147 = vpop.f32.mrb[0].mxu0
        %v1148 = vpop.f32.mrb[0].mxu0
        %v1149 = vadd.f32 %v1005, %v1148
        %v1150 = vpop.f32.mrb[0].mxu0
        %1151 = vdwg.mxu0
        %v1152 = vmax.f32 %v1090, 0.0
        %v1153 = vmax.f32 %v1093, 0.0
        %v1154 = vmax.f32 %v1098, 0.0
        %v1155 = vmax.f32 %v1101, 0.0
        %v1156 = vmax.f32 %v1106, 0.0
        %v1157 = vmax.f32 %v1109, 0.0
        %v1158 = vmax.f32 %v1114, 0.0
        %v1159 = vmax.f32 %v1117, 0.0
        %v1160 = vmax.f32 %v1122, 0.0
        %v1161 = vmax.f32 %v1125, 0.0
        %v1162 = vmax.f32 %v1130, 0.0
        %v1163 = vmax.f32 %v1133, 0.0
        %v1164 = vmax.f32 %v1138, 0.0
        %v1165 = vmax.f32 %v1141, 0.0
        %v1166 = vmax.f32 %v1146, 0.0
        %v1167 = vmax.f32 %v1149, 0.0
        %v1168 = vld [vmem:[%s7] ss:$8 sm:$0x3]
        %v1169 = vpack.c.bf16 %v1153, %v1152
        %v1170 = vpack.c.bf16 %v1155, %v1154
        %v1171 = vpack.c.bf16 %v1157, %v1156
        %v1172 = vpack.c.bf16 %v1159, %v1158
        %v1173 = vpack.c.bf16 %v1161, %v1160
        %v1174 = vpack.c.bf16 %v1163, %v1162
        %v1175 = vpack.c.bf16 %v1165, %v1164
        %v1176 = vpack.c.bf16 %v1167, %v1166
        %v1177 = vld [vmem:[%s8] sm:$0xff]
        %v1178 = vld [vmem:[%s8 + $0x8] sm:$0xff]
        %v1179 = vld [vmem:[%s8 + $0x10] sm:$0xff]
        %v1180 = vld [vmem:[%s8 + $0x18] sm:$0xff]
        %v1181 = vld [vmem:[%s8 + $0x20] sm:$0xff]
        %v1182 = vld [vmem:[%s8 + $0x28] sm:$0xff]
        %v1183 = vld [vmem:[%s8 + $0x30] sm:$0xff]
        %v1184 = vld [vmem:[%s8 + $0x38] sm:$0xff]
        %v1185 = vld [vmem:[%s8 + $0x40] sm:$0xff]
        %v1186 = vld [vmem:[%s8 + $0x48] sm:$0xff]
        %v1187 = vld [vmem:[%s8 + $0x50] sm:$0xff]
        %v1188 = vld [vmem:[%s8 + $0x58] sm:$0xff]
        %v1189 = vld [vmem:[%s8 + $0x60] sm:$0xff]
        %v1190 = vld [vmem:[%s8 + $0x68] sm:$0xff]
        %v1191 = vld [vmem:[%s8 + $0x70] sm:$0xff]
        %v1192 = vld [vmem:[%s8 + $0x78] sm:$0xff]
        %v1194 = vlaneseq
        %v1195 = vshrl.u32 %v1194, 7
        %v1196 = vsub.s32 0, %v1195
        %v1197 = vrot.slane %v1168, %v1196
        %v1198 = vlaneseq
        %v1199 = vshrl.u32 %v1198, 7
        %v1200 = vsub.s32 1, %v1199
        %v1201 = vrot.slane %v1168, %v1200
        %v1220 = vunpack.c.l.b16 %v1177
        %v1221 = vunpack.c.h.b16 %v1177
        %v1222 = vunpack.c.l.b16 %v1178
        %v1223 = vunpack.c.h.b16 %v1178
        %v1224 = vunpack.c.l.b16 %v1179
        %v1225 = vunpack.c.h.b16 %v1179
        %v1226 = vunpack.c.l.b16 %v1180
        %v1227 = vunpack.c.h.b16 %v1180
        %v1228 = vunpack.c.l.b16 %v1181
        %v1229 = vunpack.c.h.b16 %v1181
        %v1230 = vunpack.c.l.b16 %v1182
        %v1231 = vunpack.c.h.b16 %v1182
        %v1232 = vunpack.c.l.b16 %v1183
        %v1233 = vunpack.c.h.b16 %v1183
        %v1234 = vunpack.c.l.b16 %v1184
        %v1235 = vunpack.c.h.b16 %v1184
        %v1236 = vunpack.c.l.b16 %v1185
        %v1237 = vunpack.c.h.b16 %v1185
        %v1238 = vunpack.c.l.b16 %v1186
        %v1239 = vunpack.c.h.b16 %v1186
        %v1240 = vunpack.c.l.b16 %v1187
        %v1241 = vunpack.c.h.b16 %v1187
        %v1242 = vunpack.c.l.b16 %v1188
        %v1243 = vunpack.c.h.b16 %v1188
        %v1244 = vunpack.c.l.b16 %v1189
        %v1245 = vunpack.c.h.b16 %v1189
        %v1246 = vunpack.c.l.b16 %v1190
        %v1247 = vunpack.c.h.b16 %v1190
        %v1248 = vunpack.c.l.b16 %v1191
        %v1249 = vunpack.c.h.b16 %v1191
        %v1250 = vunpack.c.l.b16 %v1192
        %v1251 = vunpack.c.h.b16 %v1192
        %v1252 = vpack.c.b16 %v1222, %v1220
        %v1253 = vpack.c.b16 %v1223, %v1221
        %v1254 = vpack.c.b16 %v1226, %v1224
        %v1255 = vpack.c.b16 %v1227, %v1225
        %v1256 = vpack.c.b16 %v1230, %v1228
        %v1257 = vpack.c.b16 %v1231, %v1229
        %v1258 = vpack.c.b16 %v1234, %v1232
        %v1259 = vpack.c.b16 %v1235, %v1233
        %v1260 = vpack.c.b16 %v1238, %v1236
        %v1261 = vpack.c.b16 %v1239, %v1237
        %v1262 = vpack.c.b16 %v1242, %v1240
        %v1263 = vpack.c.b16 %v1243, %v1241
        %v1264 = vpack.c.b16 %v1246, %v1244
        %v1265 = vpack.c.b16 %v1247, %v1245
        %v1266 = vpack.c.b16 %v1250, %v1248
        %v1267 = vpack.c.b16 %v1251, %v1249
        %1284 = vmatprep.subr.bf16.mxu0 %v1253
        %1285 = vmatpush1.bf16.msra.mxu0 %v1252
        %1286 = vmatprep.subr.bf16.mxu0 %v1255
        %1287 = vmatpush1.bf16.msra.mxu0 %v1254
        %1288 = vmatprep.subr.bf16.mxu0 %v1257
        %1289 = vmatpush1.bf16.msra.mxu0 %v1256
        %1290 = vmatprep.subr.bf16.mxu0 %v1259
        %1291 = vmatpush1.bf16.msra.mxu0 %v1258
        %1292 = vmatprep.subr.bf16.mxu0 %v1261
        %1293 = vmatpush1.bf16.msra.mxu0 %v1260
        %1294 = vmatprep.subr.bf16.mxu0 %v1263
        %1295 = vmatpush1.bf16.msra.mxu0 %v1262
        %1296 = vmatprep.subr.bf16.mxu0 %v1265
        %1297 = vmatpush1.bf16.msra.mxu0 %v1264
        %1298 = vmatprep.subr.bf16.mxu0 %v1267
        %1299 = vmatpush1.bf16.msra.mxu0 %v1266
        %1300 = vmatprep.subr.bf16.mxu0 0
        %1301 = vmatpush1.bf16.msra.mxu0 0
        %1302 = vmatprep.subr.bf16.mxu0 0
        %1303 = vmatpush1.bf16.msra.mxu0 0
        %1304 = vmatprep.subr.bf16.mxu0 0
        %1305 = vmatpush1.bf16.msra.mxu0 0
        %1306 = vmatprep.subr.bf16.mxu0 0
        %1307 = vmatpush1.bf16.msra.mxu0 0
        %1308 = vmatprep.subr.bf16.mxu0 0
        %1309 = vmatpush1.bf16.msra.mxu0 0
        %1310 = vmatprep.subr.bf16.mxu0 0
        %1311 = vmatpush1.bf16.msra.mxu0 0
        %1312 = vmatprep.subr.bf16.mxu0 0
        %1313 = vmatpush1.bf16.msra.mxu0 0
        %1314 = vmatprep.subr.bf16.mxu0 0
        %1315 = vmatpush1.bf16.msra.mxu0 0
        %1316 = vmatprep.mubr.bf16.mxu0 0
        %1317 = vmatmul.mubr.bf16.gmra.mrb[0].mxu0 %v1169
        %v1318 = vpop.f32.mrb[0].mxu0
        %v1319 = vadd.f32 %v1197, %v1318
        %v1320 = vpop.f32.mrb[0].mxu0
        %v1321 = vadd.f32 %v1201, %v1320
        %v1322 = vpop.f32.mrb[0].mxu0
        %v1323 = vadd.f32 %v1197, %v1322
        %v1324 = vpop.f32.mrb[0].mxu0
        %v1325 = vadd.f32 %v1201, %v1324
        %1326 = vmatprep.mubr.bf16.mxu0 0
        %1327 = vmatmul.mubr.bf16.gmra.mrb[0].mxu0 %v1170
        %v1328 = vpop.f32.mrb[0].mxu0
        %v1329 = vadd.f32 %v1197, %v1328
        %v1330 = vpop.f32.mrb[0].mxu0
        %v1331 = vadd.f32 %v1201, %v1330
        %v1332 = vpop.f32.mrb[0].mxu0
        %v1333 = vadd.f32 %v1197, %v1332
        %v1334 = vpop.f32.mrb[0].mxu0
        %v1335 = vadd.f32 %v1201, %v1334
        %1336 = vmatprep.mubr.bf16.mxu0 0
        %1337 = vmatmul.mubr.bf16.gmra.mrb[0].mxu0 %v1171
        %v1338 = vpop.f32.mrb[0].mxu0
        %v1339 = vadd.f32 %v1197, %v1338
        %v1340 = vpop.f32.mrb[0].mxu0
        %v1341 = vadd.f32 %v1201, %v1340
        %v1342 = vpop.f32.mrb[0].mxu0
        %v1343 = vadd.f32 %v1197, %v1342
        %v1344 = vpop.f32.mrb[0].mxu0
        %v1345 = vadd.f32 %v1201, %v1344
        %1346 = vmatprep.mubr.bf16.mxu0 0
        %1347 = vmatmul.mubr.bf16.gmra.mrb[0].mxu0 %v1172
        %v1348 = vpop.f32.mrb[0].mxu0
        %v1349 = vadd.f32 %v1197, %v1348
        %v1350 = vpop.f32.mrb[0].mxu0
        %v1351 = vadd.f32 %v1201, %v1350
        %v1352 = vpop.f32.mrb[0].mxu0
        %v1353 = vadd.f32 %v1197, %v1352
        %v1354 = vpop.f32.mrb[0].mxu0
        %v1355 = vadd.f32 %v1201, %v1354
        %1356 = vmatprep.mubr.bf16.mxu0 0
        %1357 = vmatmul.mubr.bf16.gmra.mrb[0].mxu0 %v1173
        %v1358 = vpop.f32.mrb[0].mxu0
        %v1359 = vadd.f32 %v1197, %v1358
        %v1360 = vpop.f32.mrb[0].mxu0
        %v1361 = vadd.f32 %v1201, %v1360
        %v1362 = vpop.f32.mrb[0].mxu0
        %v1363 = vadd.f32 %v1197, %v1362
        %v1364 = vpop.f32.mrb[0].mxu0
        %v1365 = vadd.f32 %v1201, %v1364
        %1366 = vmatprep.mubr.bf16.mxu0 0
        %1367 = vmatmul.mubr.bf16.gmra.mrb[0].mxu0 %v1174
        %v1368 = vpop.f32.mrb[0].mxu0
        %v1369 = vadd.f32 %v1197, %v1368
        %v1370 = vpop.f32.mrb[0].mxu0
        %v1371 = vadd.f32 %v1201, %v1370
        %v1372 = vpop.f32.mrb[0].mxu0
        %v1373 = vadd.f32 %v1197, %v1372
        %v1374 = vpop.f32.mrb[0].mxu0
        %v1375 = vadd.f32 %v1201, %v1374
        %1376 = vmatprep.mubr.bf16.mxu0 0
        %1377 = vmatmul.mubr.bf16.gmra.mrb[0].mxu0 %v1175
        %v1378 = vpop.f32.mrb[0].mxu0
        %v1379 = vadd.f32 %v1197, %v1378
        %v1380 = vpop.f32.mrb[0].mxu0
        %v1381 = vadd.f32 %v1201, %v1380
        %v1382 = vpop.f32.mrb[0].mxu0
        %v1383 = vadd.f32 %v1197, %v1382
        %v1384 = vpop.f32.mrb[0].mxu0
        %v1385 = vadd.f32 %v1201, %v1384
        %1386 = vmatprep.mubr.bf16.mxu0 0
        %1387 = vmatmul.mubr.bf16.gmra.mrb[0].mxu0 %v1176
        %v1388 = vpop.f32.mrb[0].mxu0
        %v1389 = vadd.f32 %v1197, %v1388
        %v1390 = vpop.f32.mrb[0].mxu0
        %v1391 = vadd.f32 %v1201, %v1390
        %v1392 = vpop.f32.mrb[0].mxu0
        %v1393 = vadd.f32 %v1197, %v1392
        %v1394 = vpop.f32.mrb[0].mxu0
        %v1395 = vadd.f32 %v1201, %v1394
        %1396 = vdwg.mxu0
        %v1397 = vmax.f32 %v1319, 0.0
        %v1398 = vmax.f32 %v1321, 0.0
        %v1399 = vmax.f32 %v1323, 0.0
        %v1400 = vmax.f32 %v1325, 0.0
        %v1401 = vmax.f32 %v1329, 0.0
        %v1402 = vmax.f32 %v1331, 0.0
        %v1403 = vmax.f32 %v1333, 0.0
        %v1404 = vmax.f32 %v1335, 0.0
        %v1405 = vmax.f32 %v1339, 0.0
        %v1406 = vmax.f32 %v1341, 0.0
        %v1407 = vmax.f32 %v1343, 0.0
        %v1408 = vmax.f32 %v1345, 0.0
        %v1409 = vmax.f32 %v1349, 0.0
        %v1410 = vmax.f32 %v1351, 0.0
        %v1411 = vmax.f32 %v1353, 0.0
        %v1412 = vmax.f32 %v1355, 0.0
        %v1413 = vmax.f32 %v1359, 0.0
        %v1414 = vmax.f32 %v1361, 0.0
        %v1415 = vmax.f32 %v1363, 0.0
        %v1416 = vmax.f32 %v1365, 0.0
        %v1417 = vmax.f32 %v1369, 0.0
        %v1418 = vmax.f32 %v1371, 0.0
        %v1419 = vmax.f32 %v1373, 0.0
        %v1420 = vmax.f32 %v1375, 0.0
        %v1421 = vmax.f32 %v1379, 0.0
        %v1422 = vmax.f32 %v1381, 0.0
        %v1423 = vmax.f32 %v1383, 0.0
        %v1424 = vmax.f32 %v1385, 0.0
        %v1425 = vmax.f32 %v1389, 0.0
        %v1426 = vmax.f32 %v1391, 0.0
        %v1427 = vmax.f32 %v1393, 0.0
        %v1428 = vmax.f32 %v1395, 0.0
        %v1429 = vpack.c.bf16 %v1399, %v1397
        %v1430 = vpack.c.bf16 %v1400, %v1398
        %v1431 = vpack.c.bf16 %v1403, %v1401
        %v1432 = vpack.c.bf16 %v1404, %v1402
        %v1433 = vpack.c.bf16 %v1407, %v1405
        %v1434 = vpack.c.bf16 %v1408, %v1406
        %v1435 = vpack.c.bf16 %v1411, %v1409
        %v1436 = vpack.c.bf16 %v1412, %v1410
        %v1437 = vpack.c.bf16 %v1415, %v1413
        %v1438 = vpack.c.bf16 %v1416, %v1414
        %v1439 = vpack.c.bf16 %v1419, %v1417
        %v1440 = vpack.c.bf16 %v1420, %v1418
        %v1441 = vpack.c.bf16 %v1423, %v1421
        %v1442 = vpack.c.bf16 %v1424, %v1422
        %v1443 = vpack.c.bf16 %v1427, %v1425
        %v1444 = vpack.c.bf16 %v1428, %v1426
        %v1445 = vld [vmem:[%s9] sm:$0xf]
        %v1446 = vld [vmem:[%s9 + $0x4] sm:$0xf]
        %v1447 = vld [vmem:[%s9 + $0x8] sm:$0xf]
        %v1448 = vld [vmem:[%s9 + $0xc] sm:$0xf]
        %v1449 = vld [vmem:[%s9 + $0x10] sm:$0xf]
        %v1450 = vld [vmem:[%s9 + $0x14] sm:$0xf]
        %v1451 = vld [vmem:[%s9 + $0x18] sm:$0xf]
        %v1452 = vld [vmem:[%s9 + $0x1c] sm:$0xf]
        %v1453 = vld [vmem:[%s9 + $0x20] sm:$0xf]
        %v1454 = vld [vmem:[%s9 + $0x24] sm:$0xf]
        %v1455 = vld [vmem:[%s9 + $0x28] sm:$0xf]
        %v1456 = vld [vmem:[%s9 + $0x2c] sm:$0xf]
        %v1457 = vld [vmem:[%s9 + $0x30] sm:$0xf]
        %v1458 = vld [vmem:[%s9 + $0x34] sm:$0xf]
        %v1459 = vld [vmem:[%s9 + $0x38] sm:$0xf]
        %v1460 = vld [vmem:[%s9 + $0x3c] sm:$0xf]
        %v1461 = vld [vmem:[%s9 + $0x40] sm:$0xf]
        %v1462 = vld [vmem:[%s9 + $0x44] sm:$0xf]
        %v1463 = vld [vmem:[%s9 + $0x48] sm:$0xf]
        %v1464 = vld [vmem:[%s9 + $0x4c] sm:$0xf]
        %v1465 = vld [vmem:[%s9 + $0x50] sm:$0xf]
        %v1466 = vld [vmem:[%s9 + $0x54] sm:$0xf]
        %v1467 = vld [vmem:[%s9 + $0x58] sm:$0xf]
        %v1468 = vld [vmem:[%s9 + $0x5c] sm:$0xf]
        %v1469 = vld [vmem:[%s9 + $0x60] sm:$0xf]
        %v1470 = vld [vmem:[%s9 + $0x64] sm:$0xf]
        %v1471 = vld [vmem:[%s9 + $0x68] sm:$0xf]
        %v1472 = vld [vmem:[%s9 + $0x6c] sm:$0xf]
        %v1473 = vld [vmem:[%s9 + $0x70] sm:$0xf]
        %v1474 = vld [vmem:[%s9 + $0x74] sm:$0xf]
        %v1475 = vld [vmem:[%s9 + $0x78] sm:$0xf]
        %v1476 = vld [vmem:[%s9 + $0x7c] sm:$0xf]
        %v1477 = vld [vmem:[%s10] sm:$0x1]
        %v1479 = vlaneseq
        %v1480 = vshrl.u32 %v1479, 7
        %v1481 = vsub.s32 0, %v1480
        %v1482 = vrot.slane %v1477, %v1481
        %v1516 = vunpack.c.l.b16 %v1445
        %v1517 = vunpack.c.l.b16 %v1446
        %v1518 = vunpack.c.l.b16 %v1447
        %v1519 = vunpack.c.l.b16 %v1448
        %v1520 = vunpack.c.l.b16 %v1449
        %v1521 = vunpack.c.l.b16 %v1450
        %v1522 = vunpack.c.l.b16 %v1451
        %v1523 = vunpack.c.l.b16 %v1452
        %v1524 = vunpack.c.l.b16 %v1453
        %v1525 = vunpack.c.l.b16 %v1454
        %v1526 = vunpack.c.l.b16 %v1455
        %v1527 = vunpack.c.l.b16 %v1456
        %v1528 = vunpack.c.l.b16 %v1457
        %v1529 = vunpack.c.l.b16 %v1458
        %v1530 = vunpack.c.l.b16 %v1459
        %v1531 = vunpack.c.l.b16 %v1460
        %v1532 = vunpack.c.l.b16 %v1461
        %v1533 = vunpack.c.l.b16 %v1462
        %v1534 = vunpack.c.l.b16 %v1463
        %v1535 = vunpack.c.l.b16 %v1464
        %v1536 = vunpack.c.l.b16 %v1465
        %v1537 = vunpack.c.l.b16 %v1466
        %v1538 = vunpack.c.l.b16 %v1467
        %v1539 = vunpack.c.l.b16 %v1468
        %v1540 = vunpack.c.l.b16 %v1469
        %v1541 = vunpack.c.l.b16 %v1470
        %v1542 = vunpack.c.l.b16 %v1471
        %v1543 = vunpack.c.l.b16 %v1472
        %v1544 = vunpack.c.l.b16 %v1473
        %v1545 = vunpack.c.l.b16 %v1474
        %v1546 = vunpack.c.l.b16 %v1475
        %v1547 = vunpack.c.l.b16 %v1476
        %v1548 = vpack.c.b16 %v1517, %v1516
        %v1549 = vpack.c.b16 %v1519, %v1518
        %v1550 = vpack.c.b16 %v1521, %v1520
        %v1551 = vpack.c.b16 %v1523, %v1522
        %v1552 = vpack.c.b16 %v1525, %v1524
        %v1553 = vpack.c.b16 %v1527, %v1526
        %v1554 = vpack.c.b16 %v1529, %v1528
        %v1555 = vpack.c.b16 %v1531, %v1530
        %v1556 = vpack.c.b16 %v1533, %v1532
        %v1557 = vpack.c.b16 %v1535, %v1534
        %v1558 = vpack.c.b16 %v1537, %v1536
        %v1559 = vpack.c.b16 %v1539, %v1538
        %v1560 = vpack.c.b16 %v1541, %v1540
        %v1561 = vpack.c.b16 %v1543, %v1542
        %v1562 = vpack.c.b16 %v1545, %v1544
        %v1563 = vpack.c.b16 %v1547, %v1546
        %1580 = vmatprep.subr.bf16.mxu0 0
        %1581 = vmatpush1.bf16.msra.mxu0 %v1548
        %1582 = vmatprep.subr.bf16.mxu0 0
        %1583 = vmatpush1.bf16.msra.mxu0 %v1549
        %1584 = vmatprep.subr.bf16.mxu0 0
        %1585 = vmatpush1.bf16.msra.mxu0 %v1550
        %1586 = vmatprep.subr.bf16.mxu0 0
        %1587 = vmatpush1.bf16.msra.mxu0 %v1551
        %1588 = vmatprep.subr.bf16.mxu0 0
        %1589 = vmatpush1.bf16.msra.mxu0 %v1552
        %1590 = vmatprep.subr.bf16.mxu0 0
        %1591 = vmatpush1.bf16.msra.mxu0 %v1553
        %1592 = vmatprep.subr.bf16.mxu0 0
        %1593 = vmatpush1.bf16.msra.mxu0 %v1554
        %1594 = vmatprep.subr.bf16.mxu0 0
        %1595 = vmatpush1.bf16.msra.mxu0 %v1555
        %1596 = vmatprep.subr.bf16.mxu0 0
        %1597 = vmatpush1.bf16.msra.mxu0 %v1556
        %1598 = vmatprep.subr.bf16.mxu0 0
        %1599 = vmatpush1.bf16.msra.mxu0 %v1557
        %1600 = vmatprep.subr.bf16.mxu0 0
        %1601 = vmatpush1.bf16.msra.mxu0 %v1558
        %1602 = vmatprep.subr.bf16.mxu0 0
        %1603 = vmatpush1.bf16.msra.mxu0 %v1559
        %1604 = vmatprep.subr.bf16.mxu0 0
        %1605 = vmatpush1.bf16.msra.mxu0 %v1560
        %1606 = vmatprep.subr.bf16.mxu0 0
        %1607 = vmatpush1.bf16.msra.mxu0 %v1561
        %1608 = vmatprep.subr.bf16.mxu0 0
        %1609 = vmatpush1.bf16.msra.mxu0 %v1562
        %1610 = vmatprep.subr.bf16.mxu0 0
        %1611 = vmatpush1.bf16.msra.mxu0 %v1563
        %1612 = vmatprep.mubr.bf16.mxu0 %v1430
        %1613 = vmatmul.mubr.bf16.gmra.mrb[0].mxu0 %v1429
        %v1614 = vpop.f32.mrb[0].mxu0
        %v1615 = vadd.f32 %v1482, %v1614
        %v1616 = vpop.f32.mrb[0].mxu0
        %v1617 = vpop.f32.mrb[0].mxu0
        %v1618 = vadd.f32 %v1482, %v1617
        %v1619 = vpop.f32.mrb[0].mxu0
        %1620 = vmatprep.mubr.bf16.mxu0 %v1432
        %1621 = vmatmul.mubr.bf16.gmra.mrb[0].mxu0 %v1431
        %v1622 = vpop.f32.mrb[0].mxu0
        %v1623 = vadd.f32 %v1482, %v1622
        %v1624 = vpop.f32.mrb[0].mxu0
        %v1625 = vpop.f32.mrb[0].mxu0
        %v1626 = vadd.f32 %v1482, %v1625
        %v1627 = vpop.f32.mrb[0].mxu0
        %1628 = vmatprep.mubr.bf16.mxu0 %v1434
        %1629 = vmatmul.mubr.bf16.gmra.mrb[0].mxu0 %v1433
        %v1630 = vpop.f32.mrb[0].mxu0
        %v1631 = vadd.f32 %v1482, %v1630
        %v1632 = vpop.f32.mrb[0].mxu0
        %v1633 = vpop.f32.mrb[0].mxu0
        %v1634 = vadd.f32 %v1482, %v1633
        %v1635 = vpop.f32.mrb[0].mxu0
        %1636 = vmatprep.mubr.bf16.mxu0 %v1436
        %1637 = vmatmul.mubr.bf16.gmra.mrb[0].mxu0 %v1435
        %v1638 = vpop.f32.mrb[0].mxu0
        %v1639 = vadd.f32 %v1482, %v1638
        %v1640 = vpop.f32.mrb[0].mxu0
        %v1641 = vpop.f32.mrb[0].mxu0
        %v1642 = vadd.f32 %v1482, %v1641
        %v1643 = vpop.f32.mrb[0].mxu0
        %1644 = vmatprep.mubr.bf16.mxu0 %v1438
        %1645 = vmatmul.mubr.bf16.gmra.mrb[0].mxu0 %v1437
        %v1646 = vpop.f32.mrb[0].mxu0
        %v1647 = vadd.f32 %v1482, %v1646
        %v1648 = vpop.f32.mrb[0].mxu0
        %v1649 = vpop.f32.mrb[0].mxu0
        %v1650 = vadd.f32 %v1482, %v1649
        %v1651 = vpop.f32.mrb[0].mxu0
        %1652 = vmatprep.mubr.bf16.mxu0 %v1440
        %1653 = vmatmul.mubr.bf16.gmra.mrb[0].mxu0 %v1439
        %v1654 = vpop.f32.mrb[0].mxu0
        %v1655 = vadd.f32 %v1482, %v1654
        %v1656 = vpop.f32.mrb[0].mxu0
        %v1657 = vpop.f32.mrb[0].mxu0
        %v1658 = vadd.f32 %v1482, %v1657
        %v1659 = vpop.f32.mrb[0].mxu0
        %1660 = vmatprep.mubr.bf16.mxu0 %v1442
        %1661 = vmatmul.mubr.bf16.gmra.mrb[0].mxu0 %v1441
        %v1662 = vpop.f32.mrb[0].mxu0
        %v1663 = vadd.f32 %v1482, %v1662
        %v1664 = vpop.f32.mrb[0].mxu0
        %v1665 = vpop.f32.mrb[0].mxu0
        %v1666 = vadd.f32 %v1482, %v1665
        %v1667 = vpop.f32.mrb[0].mxu0
        %1668 = vmatprep.mubr.bf16.mxu0 %v1444
        %1669 = vmatmul.mubr.bf16.gmra.mrb[0].mxu0 %v1443
        %v1670 = vpop.f32.mrb[0].mxu0
        %v1671 = vadd.f32 %v1482, %v1670
        %v1672 = vpop.f32.mrb[0].mxu0
        %v1673 = vpop.f32.mrb[0].mxu0
        %v1674 = vadd.f32 %v1482, %v1673
        %v1675 = vpop.f32.mrb[0].mxu0
        %1676 = vdwg.mxu0
        %v1677 = vmax.f32 %v1615, 0.0
        %v1678 = vmax.f32 %v1618, 0.0
        %v1679 = vmax.f32 %v1623, 0.0
        %v1680 = vmax.f32 %v1626, 0.0
        %v1681 = vmax.f32 %v1631, 0.0
        %v1682 = vmax.f32 %v1634, 0.0
        %v1683 = vmax.f32 %v1639, 0.0
        %v1684 = vmax.f32 %v1642, 0.0
        %v1685 = vmax.f32 %v1647, 0.0
        %v1686 = vmax.f32 %v1650, 0.0
        %v1687 = vmax.f32 %v1655, 0.0
        %v1688 = vmax.f32 %v1658, 0.0
        %v1689 = vmax.f32 %v1663, 0.0
        %v1690 = vmax.f32 %v1666, 0.0
        %v1691 = vmax.f32 %v1671, 0.0
        %v1692 = vmax.f32 %v1674, 0.0
        %v1693 = vpack.c.bf16 %v1678, %v1677
        %v1694 = vpack.c.bf16 %v1680, %v1679
        %v1695 = vpack.c.bf16 %v1682, %v1681
        %v1696 = vpack.c.bf16 %v1684, %v1683
        %v1697 = vpack.c.bf16 %v1686, %v1685
        %v1698 = vpack.c.bf16 %v1688, %v1687
        %v1699 = vpack.c.bf16 %v1690, %v1689
        %v1700 = vpack.c.bf16 %v1692, %v1691
        %v1701 = vld [vmem:[%s11] sm:$0xf]
        %v1702 = vld [vmem:[%s11 + $0x4] sm:$0xf]
        %v1703 = vld [vmem:[%s11 + $0x8] sm:$0xf]
        %v1704 = vld [vmem:[%s11 + $0xc] sm:$0xf]
        %v1705 = vld [vmem:[%s11 + $0x10] sm:$0xf]
        %v1706 = vld [vmem:[%s11 + $0x14] sm:$0xf]
        %v1707 = vld [vmem:[%s11 + $0x18] sm:$0xf]
        %v1708 = vld [vmem:[%s11 + $0x1c] sm:$0xf]
        %v1709 = vld [vmem:[%s11 + $0x20] sm:$0xf]
        %v1710 = vld [vmem:[%s11 + $0x24] sm:$0xf]
        %v1711 = vld [vmem:[%s11 + $0x28] sm:$0xf]
        %v1712 = vld [vmem:[%s11 + $0x2c] sm:$0xf]
        %v1713 = vld [vmem:[%s11 + $0x30] sm:$0xf]
        %v1714 = vld [vmem:[%s11 + $0x34] sm:$0xf]
        %v1715 = vld [vmem:[%s11 + $0x38] sm:$0xf]
        %v1716 = vld [vmem:[%s11 + $0x3c] sm:$0xf]
        %v1717 = vld [vmem:[%s12] sm:$0x1]
        %v1719 = vlaneseq
        %v1720 = vshrl.u32 %v1719, 7
        %v1721 = vsub.s32 0, %v1720
        %v1722 = vrot.slane %v1717, %v1721
        %v1740 = vunpack.c.l.b16 %v1701
        %v1741 = vunpack.c.l.b16 %v1702
        %v1742 = vunpack.c.l.b16 %v1703
        %v1743 = vunpack.c.l.b16 %v1704
        %v1744 = vunpack.c.l.b16 %v1705
        %v1745 = vunpack.c.l.b16 %v1706
        %v1746 = vunpack.c.l.b16 %v1707
        %v1747 = vunpack.c.l.b16 %v1708
        %v1748 = vunpack.c.l.b16 %v1709
        %v1749 = vunpack.c.l.b16 %v1710
        %v1750 = vunpack.c.l.b16 %v1711
        %v1751 = vunpack.c.l.b16 %v1712
        %v1752 = vunpack.c.l.b16 %v1713
        %v1753 = vunpack.c.l.b16 %v1714
        %v1754 = vunpack.c.l.b16 %v1715
        %v1755 = vunpack.c.l.b16 %v1716
        %v1756 = vpack.c.b16 %v1741, %v1740
        %v1757 = vpack.c.b16 %v1743, %v1742
        %v1758 = vpack.c.b16 %v1745, %v1744
        %v1759 = vpack.c.b16 %v1747, %v1746
        %v1760 = vpack.c.b16 %v1749, %v1748
        %v1761 = vpack.c.b16 %v1751, %v1750
        %v1762 = vpack.c.b16 %v1753, %v1752
        %v1763 = vpack.c.b16 %v1755, %v1754
        %1772 = vmatprep.subr.bf16.mxu0 0
        %1773 = vmatpush1.bf16.msra.mxu0 %v1756
        %1774 = vmatprep.subr.bf16.mxu0 0
        %1775 = vmatpush1.bf16.msra.mxu0 %v1757
        %1776 = vmatprep.subr.bf16.mxu0 0
        %1777 = vmatpush1.bf16.msra.mxu0 %v1758
        %1778 = vmatprep.subr.bf16.mxu0 0
        %1779 = vmatpush1.bf16.msra.mxu0 %v1759
        %1780 = vmatprep.subr.bf16.mxu0 0
        %1781 = vmatpush1.bf16.msra.mxu0 %v1760
        %1782 = vmatprep.subr.bf16.mxu0 0
        %1783 = vmatpush1.bf16.msra.mxu0 %v1761
        %1784 = vmatprep.subr.bf16.mxu0 0
        %1785 = vmatpush1.bf16.msra.mxu0 %v1762
        %1786 = vmatprep.subr.bf16.mxu0 0
        %1787 = vmatpush1.bf16.msra.mxu0 %v1763
        %1788 = vmatprep.subr.bf16.mxu0 0
        %1789 = vmatpush1.bf16.msra.mxu0 0
        %1790 = vmatprep.subr.bf16.mxu0 0
        %1791 = vmatpush1.bf16.msra.mxu0 0
        %1792 = vmatprep.subr.bf16.mxu0 0
        %1793 = vmatpush1.bf16.msra.mxu0 0
        %1794 = vmatprep.subr.bf16.mxu0 0
        %1795 = vmatpush1.bf16.msra.mxu0 0
        %1796 = vmatprep.subr.bf16.mxu0 0
        %1797 = vmatpush1.bf16.msra.mxu0 0
        %1798 = vmatprep.subr.bf16.mxu0 0
        %1799 = vmatpush1.bf16.msra.mxu0 0
        %1800 = vmatprep.subr.bf16.mxu0 0
        %1801 = vmatpush1.bf16.msra.mxu0 0
        %1802 = vmatprep.subr.bf16.mxu0 0
        %1803 = vmatpush1.bf16.msra.mxu0 0
        %1804 = vmatprep.mubr.bf16.mxu0 0
        %1805 = vmatmul.mubr.bf16.gmra.mrb[0].mxu0 %v1693
        %v1806 = vpop.f32.mrb[0].mxu0
        %v1807 = vadd.f32 %v1722, %v1806
        %v1808 = vpop.f32.mrb[0].mxu0
        %v1809 = vpop.f32.mrb[0].mxu0
        %v1810 = vadd.f32 %v1722, %v1809
        %v1811 = vpop.f32.mrb[0].mxu0
        %1812 = vmatprep.mubr.bf16.mxu0 0
        %1813 = vmatmul.mubr.bf16.gmra.mrb[0].mxu0 %v1694
        %v1814 = vpop.f32.mrb[0].mxu0
        %v1815 = vadd.f32 %v1722, %v1814
        %v1816 = vpop.f32.mrb[0].mxu0
        %v1817 = vpop.f32.mrb[0].mxu0
        %v1818 = vadd.f32 %v1722, %v1817
        %v1819 = vpop.f32.mrb[0].mxu0
        %1820 = vmatprep.mubr.bf16.mxu0 0
        %1821 = vmatmul.mubr.bf16.gmra.mrb[0].mxu0 %v1695
        %v1822 = vpop.f32.mrb[0].mxu0
        %v1823 = vadd.f32 %v1722, %v1822
        %v1824 = vpop.f32.mrb[0].mxu0
        %v1825 = vpop.f32.mrb[0].mxu0
        %v1826 = vadd.f32 %v1722, %v1825
        %v1827 = vpop.f32.mrb[0].mxu0
        %1828 = vmatprep.mubr.bf16.mxu0 0
        %1829 = vmatmul.mubr.bf16.gmra.mrb[0].mxu0 %v1696
        %v1830 = vpop.f32.mrb[0].mxu0
        %v1831 = vadd.f32 %v1722, %v1830
        %v1832 = vpop.f32.mrb[0].mxu0
        %v1833 = vpop.f32.mrb[0].mxu0
        %v1834 = vadd.f32 %v1722, %v1833
        %v1835 = vpop.f32.mrb[0].mxu0
        %1836 = vmatprep.mubr.bf16.mxu0 0
        %1837 = vmatmul.mubr.bf16.gmra.mrb[0].mxu0 %v1697
        %v1838 = vpop.f32.mrb[0].mxu0
        %v1839 = vadd.f32 %v1722, %v1838
        %v1840 = vpop.f32.mrb[0].mxu0
        %v1841 = vpop.f32.mrb[0].mxu0
        %v1842 = vadd.f32 %v1722, %v1841
        %v1843 = vpop.f32.mrb[0].mxu0
        %1844 = vmatprep.mubr.bf16.mxu0 0
        %1845 = vmatmul.mubr.bf16.gmra.mrb[0].mxu0 %v1698
        %v1846 = vpop.f32.mrb[0].mxu0
        %v1847 = vadd.f32 %v1722, %v1846
        %v1848 = vpop.f32.mrb[0].mxu0
        %v1849 = vpop.f32.mrb[0].mxu0
        %v1850 = vadd.f32 %v1722, %v1849
        %v1851 = vpop.f32.mrb[0].mxu0
        %1852 = vmatprep.mubr.bf16.mxu0 0
        %1853 = vmatmul.mubr.bf16.gmra.mrb[0].mxu0 %v1699
        %v1854 = vpop.f32.mrb[0].mxu0
        %v1855 = vadd.f32 %v1722, %v1854
        %v1856 = vpop.f32.mrb[0].mxu0
        %v1857 = vpop.f32.mrb[0].mxu0
        %v1858 = vadd.f32 %v1722, %v1857
        %v1859 = vpop.f32.mrb[0].mxu0
        %1860 = vmatprep.mubr.bf16.mxu0 0
        %1861 = vmatmul.mubr.bf16.gmra.mrb[0].mxu0 %v1700
        %v1862 = vpop.f32.mrb[0].mxu0
        %v1863 = vadd.f32 %v1722, %v1862
        %v1864 = vpop.f32.mrb[0].mxu0
        %v1865 = vpop.f32.mrb[0].mxu0
        %v1866 = vadd.f32 %v1722, %v1865
        %v1867 = vpop.f32.mrb[0].mxu0
        %1868 = vdwg.mxu0
        %1869 = vst [vmem:[%s434] sm:$0xff] %v1807
        %1870 = vst [vmem:[%s434 + $0x8] sm:$0xff] %v1810
        %1871 = vst [vmem:[%s434 + $0x10] sm:$0xff] %v1815
        %1872 = vst [vmem:[%s434 + $0x18] sm:$0xff] %v1818
        %1873 = vst [vmem:[%s434 + $0x20] sm:$0xff] %v1823
        %1874 = vst [vmem:[%s434 + $0x28] sm:$0xff] %v1826
        %1875 = vst [vmem:[%s434 + $0x30] sm:$0xff] %v1831
        %1876 = vst [vmem:[%s434 + $0x38] sm:$0xff] %v1834
        %1877 = vst [vmem:[%s434 + $0x40] sm:$0xff] %v1839
        %1878 = vst [vmem:[%s434 + $0x48] sm:$0xff] %v1842
        %1879 = vst [vmem:[%s434 + $0x50] sm:$0xff] %v1847
        %1880 = vst [vmem:[%s434 + $0x58] sm:$0xff] %v1850
        %1881 = vst [vmem:[%s434 + $0x60] sm:$0xff] %v1855
        %1882 = vst [vmem:[%s434 + $0x68] sm:$0xff] %v1858
        %1883 = vst [vmem:[%s434 + $0x70] sm:$0xff] %v1863
        %1884 = vst [vmem:[%s434 + $0x78] sm:$0xff] %v1866
        %s1885 = sand.u32 %s313, 1
        %s1886 = scalar_lea.sflag [#allocation3], %s1885
        %s1887 = sand.u32 %s313, 1
        %s1888 = smul.addr %s1887, 128
        %s1889 = scalar_lea.vmem [#allocation2], %s1888
        // Predicated region
        $region73: #{pointnet_feature_extractor.5} parent=71 // pred_check
          %p1890 = pneg %p323
        $region74: #{pointnet_feature_extractor.5} parent=71 // pred_check_branch
          %1892 = sbr.rel (%p1890) target = $region76
        $region75: #{pointnet_feature_extractor.5} parent=71 // pred_region
          %s1893 = smul.u32 16, %s27
          %s1895 = ssub.s32 2048, 2048
          %1896 = vsyncadd %s1886, %s1895
          %s1897 = smul.addr %s1893, 128
          %s1898 = scalar_lea.hbm %s13, %s1897
          %s1899 = sshll.u32 %s1889, 4
          %s1900 = int_to_ptr.vmem [resolvable:$true] %s1899
          %1905 = dma.vmem_to_hbm [thread:$0]  %s1900, 2048, %s1898, %s1886, 128, 128, 8
        $region76: #{pointnet_feature_extractor.5} parent=71 // pred_fallthru
          _
      $region72: #{pointnet_feature_extractor.5} parent=5 // pred_fallthru
        _
      %p1906 = scmp.le.s32.totalorder 2, %s22
      // Predicated region
      $region77: #{pointnet_feature_extractor.5} parent=5 // pred_check
        %p1907 = pneg %p1906
      $region78: #{pointnet_feature_extractor.5} parent=5 // pred_check_branch
        %1909 = sbr.rel (%p1907) target = $region80
      $region79: #{pointnet_feature_extractor.5} parent=5 // pred_region
        %s1910 = ssub.s32 %s22, 2
        // Predicated region
        $region81: #{pointnet_feature_extractor.5} parent=79 // pred_check
          %p1911 = pneg %p329
        $region82: #{pointnet_feature_extractor.5} parent=79 // pred_check_branch
          %1913 = sbr.rel (%p1911) target = $region84
        $region83: #{pointnet_feature_extractor.5} parent=79 // pred_region
          %s1914 = sand.u32 %s314, 1
          %s1915 = scalar_lea.sflag [#allocation3], %s1914
          %s1916 = sand.u32 %s314, 1
          %s1917 = smul.addr %s1916, 128
          %s1918 = scalar_lea.vmem [#allocation2], %s1917
          %1919 = dma.done %s1915, 2048
        $region84: #{pointnet_feature_extractor.5} parent=79 // pred_fallthru
          _
      $region80: #{pointnet_feature_extractor.5} parent=5 // pred_fallthru
        _
    $region6: #{pointnet_feature_extractor.5} parent=1 // loop_footer
      %s26 = sadd.s32 1, %s22
    $region7: #{pointnet_feature_extractor.5} parent=1 // loop_footer_branch
      %21 = sbr.rel target = $region3
    $region8: #{pointnet_feature_extractor.5} parent=1 // loop_exit
      _
    %1920 = vsyncpa [#allocation3], 1
    %s1921 = scalar_lea.sflag [#allocation3], 1
    %1922 = vsyncpa %s1921, 1

</llo_original>
